<compile_context>
chip_gen: v7x
topology: tpu7x:2x2x1
jax: 0.10.0
libtpu: 0.0.40
codegen_flags: <defaults>
</compile_context>

<pallas_src>
import functools
import math

import jax
import jax.numpy as jnp
from jax import lax
from jax.experimental import pallas as pl
from jax.experimental.pallas import tpu as pltpu  # noqa: F401  (TPU backend)

# ---- small BERT config (shapes implied by BertForSequenceClassification) ----
VOCAB = 32
HIDDEN = 32
N_HEADS = 4
HEAD_DIM = HIDDEN // N_HEADS
INTER = 64
N_LAYERS = 2
MAX_POS = 16
TYPE_VOCAB = 2
NUM_LABELS = 2
LN_EPS = 1e-12

EMB_ROWS = VOCAB + MAX_POS + TYPE_VOCAB   # rows of the packed embedding table
LANE = 128                                # lane-aligned packing stride


# --------------------------- in-kernel helpers --------------------------------

def _ln(x, g, b):
    mean = jnp.mean(x, axis=-1, keepdims=True)
    var = jnp.mean(jnp.square(x - mean), axis=-1, keepdims=True)
    return (x - mean) * lax.rsqrt(var + LN_EPS) * g + b


def _gelu(x):
    # tanh-approximate GELU (f32, EUP tanh).  See TODO(synk) above.
    c = math.sqrt(2.0 / math.pi)
    return 0.5 * x * (1.0 + jnp.tanh(c * (x + 0.044715 * x * x * x)))


# ------------------------------ fused kernel ----------------------------------

def _bert_fused_kernel(ids_ref, abias_ref, emb_ref, w1_ref, w2_ref, bvec_ref,
                       hw_ref, hb_ref, o_ref, *, batch, seq):
    f32, bf16 = jnp.float32, jnp.bfloat16
    bs = batch * seq

    # ---- embeddings: one "three-hot" MXU matmul replaces the 3 XLA gathers ---
    ids = ids_ref[...]                                         # (BS, 3), pre-offset
    iota = lax.broadcasted_iota(jnp.int32, (bs, EMB_ROWS), 1)
    hit = ((iota == ids[:, 0:1]) | (iota == ids[:, 1:2]) | (iota == ids[:, 2:3]))
    three_hot = jnp.where(hit, 1.0, 0.0).astype(bf16)          # (BS, EMB_ROWS)
    x = jnp.dot(three_hot, emb_ref[...], preferred_element_type=f32)   # (BS, H)

    hb = hb_ref[...]                                           # (4, 128) f32
    x = _ln(x, hb[0:1, 0:HIDDEN], hb[1:2, 0:HIDDEN])           # embeddings LN

    attn_bias = abias_ref[...]                                 # (BS, BS) additive
    scale = 1.0 / math.sqrt(HEAD_DIM)

    for l in range(N_LAYERS):                                  # unrolled, L = 2
        w1 = w1_ref[l]                                         # (H, 3*LANE) bf16
        wo2 = w2_ref[l]                                        # (I, H)      bf16
        bl = bvec_ref[l]                                       # (8, 128)    f32
        wqkv = w1[:, 0:3 * HIDDEN]                             # lanes 0:96
        wo = w1[:, LANE:LANE + HIDDEN]                         # lanes 128:160
        wi = w1[:, 2 * LANE:2 * LANE + INTER]                  # lanes 256:320

        # --- fused QKV projection (bf16 operands, f32 accumulate) ---
        xb = x.astype(bf16)
        qkv = jnp.dot(xb, wqkv, preferred_element_type=f32) + bl[0:1, 0:3 * HIDDEN]
        q = (qkv[:, 0:HIDDEN] * scale).astype(bf16)
        k = qkv[:, HIDDEN:2 * HIDDEN].astype(bf16)
        v = qkv[:, 2 * HIDDEN:3 * HIDDEN].astype(bf16)

        # --- whole-slab multi-head attention ---
        # Block-diagonal bias removes cross-sequence terms; each head's context
        # is folded straight into the output projection, so no concatenates.
        attn = jnp.zeros((bs, HIDDEN), f32)
        for h in range(N_HEADS):
            lo = h * HEAD_DIM
            qh = q[:, lo:lo + HEAD_DIM]
            kh = k[:, lo:lo + HEAD_DIM]
            vh = v[:, lo:lo + HEAD_DIM]
            sc = lax.dot_general(qh, kh, (((1,), (1,)), ((), ())),
                                 preferred_element_type=f32) + attn_bias
            p = jnp.exp(sc - jnp.max(sc, axis=-1, keepdims=True))
            p = p * pl.reciprocal(jnp.sum(p, axis=-1, keepdims=True), approx=True)
            ctx = jnp.dot(p.astype(bf16), vh, preferred_element_type=f32)
            attn = attn + jnp.dot(ctx.astype(bf16), wo[lo:lo + HEAD_DIM, :],
                                  preferred_element_type=f32)
        x = _ln(x + attn + bl[1:2, 0:HIDDEN],                  # residual + bias
                bl[2:3, 0:HIDDEN], bl[3:4, 0:HIDDEN])

        # --- feed-forward ---
        inter = _gelu(jnp.dot(x.astype(bf16), wi, preferred_element_type=f32)
                      + bl[4:5, 0:INTER])
        ffn = (jnp.dot(inter.astype(bf16), wo2, preferred_element_type=f32)
               + bl[5:6, 0:HIDDEN])
        x = _ln(x + ffn, bl[6:7, 0:HIDDEN], bl[7:8, 0:HIDDEN])

    # ---- pooler + classifier; CLS rows picked via a one-hot selector matmul --
    hw = hw_ref[...]                                           # (H, 2*LANE) bf16
    sel_hit = (lax.broadcasted_iota(jnp.int32, (batch, bs), 1) ==
               seq * lax.broadcasted_iota(jnp.int32, (batch, bs), 0))
    sel = jnp.where(sel_hit, 1.0, 0.0).astype(bf16)            # (B, BS)
    cls_tok = jnp.dot(sel, x.astype(bf16), preferred_element_type=f32)  # (B, H)
    pooled = jnp.tanh(jnp.dot(cls_tok.astype(bf16), hw[:, 0:HIDDEN],
                              preferred_element_type=f32) + hb[2:3, 0:HIDDEN])
    logits = (jnp.dot(pooled.astype(bf16), hw[:, LANE:LANE + NUM_LABELS],
                      preferred_element_type=f32) + hb[3:4, 0:NUM_LABELS])
    o_ref[...] = logits


# --------------------------- parameters (synthetic) ---------------------------

def init_params(key):
    def normal(k, shape):
        return 0.02 * jax.random.normal(k, shape, dtype=jnp.float32)

    keys = iter(jax.random.split(key, 64))
    params = {
        "word_emb": normal(next(keys), (VOCAB, HIDDEN)),
        "pos_emb": normal(next(keys), (MAX_POS, HIDDEN)),
        "type_emb": normal(next(keys), (TYPE_VOCAB, HIDDEN)),
        "emb_ln_g": jnp.ones((HIDDEN,), jnp.float32),
        "emb_ln_b": jnp.zeros((HIDDEN,), jnp.float32),
        "layers": [],
        "pooler_w": normal(next(keys), (HIDDEN, HIDDEN)),
        "pooler_b": jnp.zeros((HIDDEN,), jnp.float32),
        "cls_w": normal(next(keys), (HIDDEN, NUM_LABELS)),
        "cls_b": jnp.zeros((NUM_LABELS,), jnp.float32),
    }
    for _ in range(N_LAYERS):
        params["layers"].append({
            "wqkv": normal(next(keys), (HIDDEN, 3 * HIDDEN)),   # [Wq | Wk | Wv]
            "bqkv": jnp.zeros((3 * HIDDEN,), jnp.float32),
            "wo": normal(next(keys), (HIDDEN, HIDDEN)),
            "bo": jnp.zeros((HIDDEN,), jnp.float32),
            "ln1_g": jnp.ones((HIDDEN,), jnp.float32),
            "ln1_b": jnp.zeros((HIDDEN,), jnp.float32),
            "wi": normal(next(keys), (HIDDEN, INTER)),
            "bi": jnp.zeros((INTER,), jnp.float32),
            "wo2": normal(next(keys), (INTER, HIDDEN)),
            "bo2": jnp.zeros((HIDDEN,), jnp.float32),
            "ln2_g": jnp.ones((HIDDEN,), jnp.float32),
            "ln2_b": jnp.zeros((HIDDEN,), jnp.float32),
        })
    return params


# ------------------------- weight packing (done once) --------------------------

def _pad_lanes(a, width=LANE):
    return jnp.pad(a, ((0, 0), (0, width - a.shape[1])))


def _pad_row(v, width=LANE):
    return jnp.pad(v, (0, width - v.shape[0]))[None, :]


def pack_params(params):
    bf16 = jnp.bfloat16
    emb = jnp.concatenate(
        [params["word_emb"], params["pos_emb"], params["type_emb"]],
        axis=0).astype(bf16)                                   # (EMB_ROWS, H)

    w1_layers, w2_layers, b_layers = [], [], []
    for lyr in params["layers"]:
        w1_layers.append(jnp.concatenate(
            [_pad_lanes(lyr["wqkv"]), _pad_lanes(lyr["wo"]), _pad_lanes(lyr["wi"])],
            axis=1))                                           # (H, 3*LANE)
        w2_layers.append(lyr["wo2"])                           # (I, H)
        b_layers.append(jnp.concatenate(
            [_pad_row(lyr["bqkv"]), _pad_row(lyr["bo"]),
             _pad_row(lyr["ln1_g"]), _pad_row(lyr["ln1_b"]),
             _pad_row(lyr["bi"]), _pad_row(lyr["bo2"]),
             _pad_row(lyr["ln2_g"]), _pad_row(lyr["ln2_b"])], axis=0))  # (8, 128)

    hw = jnp.concatenate([_pad_lanes(params["pooler_w"]),
                          _pad_lanes(params["cls_w"])], axis=1).astype(bf16)
    hb = jnp.concatenate([_pad_row(params["emb_ln_g"]), _pad_row(params["emb_ln_b"]),
                          _pad_row(params["pooler_b"]), _pad_row(params["cls_b"])],
                         axis=0).astype(jnp.float32)           # (4, 128)
    return {
        "emb": emb,
        "w1": jnp.stack(w1_layers, axis=0).astype(bf16),       # (L, H, 3*LANE)
        "w2": jnp.stack(w2_layers, axis=0).astype(bf16),       # (L, I, H)
        "bvec": jnp.stack(b_layers, axis=0).astype(jnp.float32),  # (L, 8, 128)
        "hw": hw,                                              # (H, 2*LANE)
        "hb": hb,                                              # (4, 128)
    }


# ------------------------------ forward pass ----------------------------------

def bert_forward(packed, input_ids, attention_mask=None,
                 token_type_ids=None, position_ids=None):
    b, s = input_ids.shape
    bs = b * s
    if attention_mask is None:
        attention_mask = jnp.ones((b, s), jnp.float32)
    if token_type_ids is None:
        token_type_ids = jnp.zeros((b, s), jnp.int32)
    if position_ids is None:
        position_ids = jnp.broadcast_to(jnp.arange(s, dtype=jnp.int32), (b, s))

    # Tiny glue: ids pre-offset into the packed embedding table so the kernel
    # builds a single "three-hot" matrix, plus the additive attention bias
    # (key-padding + block-diagonal over sequences).  Everything else runs in
    # the single fused Pallas kernel.
    ids3 = jnp.stack(
        [input_ids.reshape(bs).astype(jnp.int32),
         position_ids.reshape(bs).astype(jnp.int32) + VOCAB,
         token_type_ids.reshape(bs).astype(jnp.int32) + VOCAB + MAX_POS],
        axis=1)                                                # (BS, 3) int32

    key_bias = (1.0 - attention_mask.reshape(bs).astype(jnp.float32)) * -1e9
    batch_idx = jnp.arange(bs, dtype=jnp.int32) // s
    same_seq = batch_idx[:, None] == batch_idx[None, :]
    attn_bias = jnp.where(same_seq, key_bias[None, :], -1e9)   # (BS, BS) f32

    # Single grid-less pallas_call: 8 input DMAs, everything VMEM-resident.
    return pl.pallas_call(
        functools.partial(_bert_fused_kernel, batch=b, seq=s),
        out_shape=jax.ShapeDtypeStruct((b, NUM_LABELS), jnp.float32),
    )(ids3, attn_bias, packed["emb"], packed["w1"], packed["w2"],
      packed["bvec"], packed["hw"], packed["hb"])


if __name__ == "__main__":
    key = jax.random.PRNGKey(0)
    pkey, ikey = jax.random.split(key)
    params = init_params(pkey)
    packed = pack_params(params)

    B, S = 2, 8
    input_ids = jax.random.randint(ikey, (B, S), 0, VOCAB, dtype=jnp.int32)
    attention_mask = jnp.ones((B, S), jnp.float32)

    logits = jax.jit(bert_forward)(packed, input_ids, attention_mask)
    logits = jax.block_until_ready(logits)
    assert logits.shape == (B, NUM_LABELS)
    assert bool(jnp.all(jnp.isfinite(logits)))
    print("KERNEL_OK")
</pallas_src>

<mosaic_0001>
module attributes {stable_mosaic.version = 11 : i64} {
  func.func @_bert_fused_kernel(%arg0: memref<16x3xi32, #tpu.memory_space<vmem>>, %arg1: memref<16x16xf32, #tpu.memory_space<vmem>>, %arg2: memref<50x32xbf16, #tpu.memory_space<vmem>>, %arg3: memref<2x32x384xbf16, #tpu.memory_space<vmem>>, %arg4: memref<2x64x32xbf16, #tpu.memory_space<vmem>>, %arg5: memref<2x8x128xf32, #tpu.memory_space<vmem>>, %arg6: memref<32x256xbf16, #tpu.memory_space<vmem>>, %arg7: memref<4x128xf32, #tpu.memory_space<vmem>>, %arg8: memref<2x2xf32, #tpu.memory_space<vmem>>) attributes {dimension_semantics = [], scalar_prefetch = 0 : i64, scratch_operands = 0 : i64, tpu.core_type = #tpu.core_type<tc>} {
    %c0 = arith.constant 0 : index
    %c0_0 = arith.constant 0 : index
    %0 = vector.load %arg0[%c0, %c0_0] : memref<16x3xi32, #tpu.memory_space<vmem>>, vector<16x3xi32>
    %1 = tpu.iota {dimensions = array<i32: 1>} : vector<16x50xi32>
    %2 = vector.extract_strided_slice %0 {offsets = [0, 0], sizes = [16, 1], strides = [1, 1]} : vector<16x3xi32> to vector<16x1xi32>
    %3 = vector.broadcast %2 : vector<16x1xi32> to vector<16x50xi32>
    %4 = arith.cmpi eq, %1, %3 : vector<16x50xi32>
    %5 = vector.extract_strided_slice %0 {offsets = [0, 1], sizes = [16, 1], strides = [1, 1]} : vector<16x3xi32> to vector<16x1xi32>
    %6 = vector.broadcast %5 : vector<16x1xi32> to vector<16x50xi32>
    %7 = arith.cmpi eq, %1, %6 : vector<16x50xi32>
    %8 = arith.ori %4, %7 : vector<16x50xi1>
    %9 = vector.extract_strided_slice %0 {offsets = [0, 2], sizes = [16, 1], strides = [1, 1]} : vector<16x3xi32> to vector<16x1xi32>
    %10 = vector.broadcast %9 : vector<16x1xi32> to vector<16x50xi32>
    %11 = arith.cmpi eq, %1, %10 : vector<16x50xi32>
    %12 = arith.ori %8, %11 : vector<16x50xi1>
    %cst = arith.constant 1.000000e+00 : f32
    %cst_1 = arith.constant 0.000000e+00 : f32
    %13 = vector.broadcast %cst : f32 to vector<16x50xf32>
    %14 = vector.broadcast %cst_1 : f32 to vector<16x50xf32>
    %15 = arith.select %12, %13, %14 : vector<16x50xi1>, vector<16x50xf32>
    %16 = arith.truncf %15 : vector<16x50xf32> to vector<16x50xbf16>
    %c0_2 = arith.constant 0 : index
    %c0_3 = arith.constant 0 : index
    %17 = vector.load %arg2[%c0_2, %c0_3] : memref<50x32xbf16, #tpu.memory_space<vmem>>, vector<50x32xbf16>
    %cst_4 = arith.constant dense<0.000000e+00> : vector<16x32xf32>
    %18 = tpu.matmul %16, %17, %cst_4 {dimension_numbers = #tpu.dot_dimension_numbers<[1], [0], [0], [1], [0, 0, 1, 1], [], []>} : vector<16x50xbf16>, vector<50x32xbf16>, vector<16x32xf32> -> vector<16x32xf32>
    %c0_5 = arith.constant 0 : index
    %c0_6 = arith.constant 0 : index
    %19 = vector.load %arg7[%c0_5, %c0_6] : memref<4x128xf32, #tpu.memory_space<vmem>>, vector<4x128xf32>
    %20 = vector.extract_strided_slice %19 {offsets = [0, 0], sizes = [1, 32], strides = [1, 1]} : vector<4x128xf32> to vector<1x32xf32>
    %21 = vector.extract_strided_slice %19 {offsets = [1, 0], sizes = [1, 32], strides = [1, 1]} : vector<4x128xf32> to vector<1x32xf32>
    %cst_7 = arith.constant dense<0.000000e+00> : vector<16xf32>
    %22 = vector.multi_reduction <add>, %18, %cst_7 [1] : vector<16x32xf32> to vector<16xf32>
    %23 = vector.shape_cast %22 : vector<16xf32> to vector<16x1xf32>
    %cst_8 = arith.constant 3.200000e+01 : f32
    %24 = vector.broadcast %cst_8 : f32 to vector<16x1xf32>
    %25 = arith.divf %23, %24 : vector<16x1xf32>
    %26 = vector.broadcast %25 : vector<16x1xf32> to vector<16x32xf32>
    %27 = arith.subf %18, %26 : vector<16x32xf32>
    %28 = arith.mulf %27, %27 : vector<16x32xf32>
    %cst_9 = arith.constant dense<0.000000e+00> : vector<16xf32>
    %29 = vector.multi_reduction <add>, %28, %cst_9 [1] : vector<16x32xf32> to vector<16xf32>
    %30 = vector.shape_cast %29 : vector<16xf32> to vector<16x1xf32>
    %cst_10 = arith.constant 3.200000e+01 : f32
    %31 = vector.broadcast %cst_10 : f32 to vector<16x1xf32>
    %32 = arith.divf %30, %31 : vector<16x1xf32>
    %33 = vector.broadcast %25 : vector<16x1xf32> to vector<16x32xf32>
    %34 = arith.subf %18, %33 : vector<16x32xf32>
    %cst_11 = arith.constant 9.99999996E-13 : f32
    %35 = vector.broadcast %cst_11 : f32 to vector<16x1xf32>
    %36 = arith.addf %32, %35 : vector<16x1xf32>
    %37 = math.rsqrt %36 : vector<16x1xf32>
    %38 = vector.broadcast %37 : vector<16x1xf32> to vector<16x32xf32>
    %39 = arith.mulf %34, %38 : vector<16x32xf32>
    %40 = vector.broadcast %20 : vector<1x32xf32> to vector<16x32xf32>
    %41 = arith.mulf %39, %40 : vector<16x32xf32>
    %42 = vector.broadcast %21 : vector<1x32xf32> to vector<16x32xf32>
    %43 = arith.addf %41, %42 : vector<16x32xf32>
    %c0_12 = arith.constant 0 : index
    %c0_13 = arith.constant 0 : index
    %44 = vector.load %arg1[%c0_12, %c0_13] : memref<16x16xf32, #tpu.memory_space<vmem>>, vector<16x16xf32>
    %c0_14 = arith.constant 0 : index
    %c0_15 = arith.constant 0 : index
    %c0_16 = arith.constant 0 : index
    %45 = vector.load %arg3[%c0_14, %c0_15, %c0_16] : memref<2x32x384xbf16, #tpu.memory_space<vmem>>, vector<1x32x384xbf16>
    %46 = vector.shape_cast %45 : vector<1x32x384xbf16> to vector<32x384xbf16>
    %c0_17 = arith.constant 0 : index
    %c0_18 = arith.constant 0 : index
    %c0_19 = arith.constant 0 : index
    %47 = vector.load %arg4[%c0_17, %c0_18, %c0_19] : memref<2x64x32xbf16, #tpu.memory_space<vmem>>, vector<1x64x32xbf16>
    %48 = vector.shape_cast %47 : vector<1x64x32xbf16> to vector<64x32xbf16>
    %c0_20 = arith.constant 0 : index
    %c0_21 = arith.constant 0 : index
    %c0_22 = arith.constant 0 : index
    %49 = vector.load %arg5[%c0_20, %c0_21, %c0_22] : memref<2x8x128xf32, #tpu.memory_space<vmem>>, vector<1x8x128xf32>
    %50 = vector.shape_cast %49 : vector<1x8x128xf32> to vector<8x128xf32>
    %51 = vector.extract_strided_slice %46 {offsets = [0, 0], sizes = [32, 96], strides = [1, 1]} : vector<32x384xbf16> to vector<32x96xbf16>
    %52 = vector.extract_strided_slice %46 {offsets = [0, 128], sizes = [32, 32], strides = [1, 1]} : vector<32x384xbf16> to vector<32x32xbf16>
    %53 = vector.extract_strided_slice %46 {offsets = [0, 256], sizes = [32, 64], strides = [1, 1]} : vector<32x384xbf16> to vector<32x64xbf16>
    %54 = arith.truncf %43 : vector<16x32xf32> to vector<16x32xbf16>
    %cst_23 = arith.constant dense<0.000000e+00> : vector<16x96xf32>
    %55 = tpu.matmul %54, %51, %cst_23 {dimension_numbers = #tpu.dot_dimension_numbers<[1], [0], [0], [1], [0, 0, 1, 1], [], []>} : vector<16x32xbf16>, vector<32x96xbf16>, vector<16x96xf32> -> vector<16x96xf32>
    %56 = vector.extract_strided_slice %50 {offsets = [0, 0], sizes = [1, 96], strides = [1, 1]} : vector<8x128xf32> to vector<1x96xf32>
    %57 = vector.broadcast %56 : vector<1x96xf32> to vector<16x96xf32>
    %58 = arith.addf %55, %57 : vector<16x96xf32>
    %59 = vector.extract_strided_slice %58 {offsets = [0, 0], sizes = [16, 32], strides = [1, 1]} : vector<16x96xf32> to vector<16x32xf32>
    %cst_24 = arith.constant 0.353553385 : f32
    %60 = vector.broadcast %cst_24 : f32 to vector<16x32xf32>
    %61 = arith.mulf %59, %60 : vector<16x32xf32>
    %62 = arith.truncf %61 : vector<16x32xf32> to vector<16x32xbf16>
    %63 = vector.extract_strided_slice %58 {offsets = [0, 32], sizes = [16, 32], strides = [1, 1]} : vector<16x96xf32> to vector<16x32xf32>
    %64 = arith.truncf %63 : vector<16x32xf32> to vector<16x32xbf16>
    %65 = vector.extract_strided_slice %58 {offsets = [0, 64], sizes = [16, 32], strides = [1, 1]} : vector<16x96xf32> to vector<16x32xf32>
    %66 = arith.truncf %65 : vector<16x32xf32> to vector<16x32xbf16>
    %cst_25 = arith.constant 0.000000e+00 : f32
    %67 = vector.broadcast %cst_25 : f32 to vector<16x32xf32>
    %68 = vector.extract_strided_slice %62 {offsets = [0, 0], sizes = [16, 8], strides = [1, 1]} : vector<16x32xbf16> to vector<16x8xbf16>
    %69 = vector.extract_strided_slice %64 {offsets = [0, 0], sizes = [16, 8], strides = [1, 1]} : vector<16x32xbf16> to vector<16x8xbf16>
    %70 = vector.extract_strided_slice %66 {offsets = [0, 0], sizes = [16, 8], strides = [1, 1]} : vector<16x32xbf16> to vector<16x8xbf16>
    %cst_26 = arith.constant dense<0.000000e+00> : vector<16x16xf32>
    %71 = tpu.matmul %68, %69, %cst_26 {dimension_numbers = #tpu.dot_dimension_numbers<[1], [1], [0], [0], [0, 0, 1, 0], [], []>} : vector<16x8xbf16>, vector<16x8xbf16>, vector<16x16xf32> -> vector<16x16xf32>
    %72 = arith.addf %71, %44 : vector<16x16xf32>
    %cst_27 = arith.constant dense<0xFF800000> : vector<16xf32>
    %73 = vector.multi_reduction <maximumf>, %72, %cst_27 [1] : vector<16x16xf32> to vector<16xf32>
    %74 = vector.shape_cast %73 : vector<16xf32> to vector<16x1xf32>
    %75 = vector.broadcast %74 : vector<16x1xf32> to vector<16x16xf32>
    %76 = arith.subf %72, %75 : vector<16x16xf32>
    %77 = math.exp %76 : vector<16x16xf32>
    %cst_28 = arith.constant dense<0.000000e+00> : vector<16xf32>
    %78 = vector.multi_reduction <add>, %77, %cst_28 [1] : vector<16x16xf32> to vector<16xf32>
    %79 = vector.shape_cast %78 : vector<16xf32> to vector<16x1xf32>
    %80 = tpu.reciprocal %79 {approx = true} : vector<16x1xf32> -> vector<16x1xf32>
    %81 = vector.broadcast %80 : vector<16x1xf32> to vector<16x16xf32>
    %82 = arith.mulf %77, %81 : vector<16x16xf32>
    %83 = arith.truncf %82 : vector<16x16xf32> to vector<16x16xbf16>
    %cst_29 = arith.constant dense<0.000000e+00> : vector<16x8xf32>
    %84 = tpu.matmul %83, %70, %cst_29 {dimension_numbers = #tpu.dot_dimension_numbers<[1], [0], [0], [1], [0, 0, 1, 1], [], []>} : vector<16x16xbf16>, vector<16x8xbf16>, vector<16x8xf32> -> vector<16x8xf32>
    %85 = arith.truncf %84 : vector<16x8xf32> to vector<16x8xbf16>
    %86 = vector.extract_strided_slice %52 {offsets = [0, 0], sizes = [8, 32], strides = [1, 1]} : vector<32x32xbf16> to vector<8x32xbf16>
    %cst_30 = arith.constant dense<0.000000e+00> : vector<16x32xf32>
    %87 = tpu.matmul %85, %86, %cst_30 {dimension_numbers = #tpu.dot_dimension_numbers<[1], [0], [0], [1], [0, 0, 1, 1], [], []>} : vector<16x8xbf16>, vector<8x32xbf16>, vector<16x32xf32> -> vector<16x32xf32>
    %88 = arith.addf %67, %87 : vector<16x32xf32>
    %89 = vector.extract_strided_slice %62 {offsets = [0, 8], sizes = [16, 8], strides = [1, 1]} : vector<16x32xbf16> to vector<16x8xbf16>
    %90 = vector.extract_strided_slice %64 {offsets = [0, 8], sizes = [16, 8], strides = [1, 1]} : vector<16x32xbf16> to vector<16x8xbf16>
    %91 = vector.extract_strided_slice %66 {offsets = [0, 8], sizes = [16, 8], strides = [1, 1]} : vector<16x32xbf16> to vector<16x8xbf16>
    %cst_31 = arith.constant dense<0.000000e+00> : vector<16x16xf32>
    %92 = tpu.matmul %89, %90, %cst_31 {dimension_numbers = #tpu.dot_dimension_numbers<[1], [1], [0], [0], [0, 0, 1, 0], [], []>} : vector<16x8xbf16>, vector<16x8xbf16>, vector<16x16xf32> -> vector<16x16xf32>
    %93 = arith.addf %92, %44 : vector<16x16xf32>
    %cst_32 = arith.constant dense<0xFF800000> : vector<16xf32>
    %94 = vector.multi_reduction <maximumf>, %93, %cst_32 [1] : vector<16x16xf32> to vector<16xf32>
    %95 = vector.shape_cast %94 : vector<16xf32> to vector<16x1xf32>
    %96 = vector.broadcast %95 : vector<16x1xf32> to vector<16x16xf32>
    %97 = arith.subf %93, %96 : vector<16x16xf32>
    %98 = math.exp %97 : vector<16x16xf32>
    %cst_33 = arith.constant dense<0.000000e+00> : vector<16xf32>
    %99 = vector.multi_reduction <add>, %98, %cst_33 [1] : vector<16x16xf32> to vector<16xf32>
    %100 = vector.shape_cast %99 : vector<16xf32> to vector<16x1xf32>
    %101 = tpu.reciprocal %100 {approx = true} : vector<16x1xf32> -> vector<16x1xf32>
    %102 = vector.broadcast %101 : vector<16x1xf32> to vector<16x16xf32>
    %103 = arith.mulf %98, %102 : vector<16x16xf32>
    %104 = arith.truncf %103 : vector<16x16xf32> to vector<16x16xbf16>
    %cst_34 = arith.constant dense<0.000000e+00> : vector<16x8xf32>
    %105 = tpu.matmul %104, %91, %cst_34 {dimension_numbers = #tpu.dot_dimension_numbers<[1], [0], [0], [1], [0, 0, 1, 1], [], []>} : vector<16x16xbf16>, vector<16x8xbf16>, vector<16x8xf32> -> vector<16x8xf32>
    %106 = arith.truncf %105 : vector<16x8xf32> to vector<16x8xbf16>
    %107 = vector.extract_strided_slice %52 {offsets = [8, 0], sizes = [8, 32], strides = [1, 1]} : vector<32x32xbf16> to vector<8x32xbf16>
    %cst_35 = arith.constant dense<0.000000e+00> : vector<16x32xf32>
    %108 = tpu.matmul %106, %107, %cst_35 {dimension_numbers = #tpu.dot_dimension_numbers<[1], [0], [0], [1], [0, 0, 1, 1], [], []>} : vector<16x8xbf16>, vector<8x32xbf16>, vector<16x32xf32> -> vector<16x32xf32>
    %109 = arith.addf %88, %108 : vector<16x32xf32>
    %110 = vector.extract_strided_slice %62 {offsets = [0, 16], sizes = [16, 8], strides = [1, 1]} : vector<16x32xbf16> to vector<16x8xbf16>
    %111 = vector.extract_strided_slice %64 {offsets = [0, 16], sizes = [16, 8], strides = [1, 1]} : vector<16x32xbf16> to vector<16x8xbf16>
    %112 = vector.extract_strided_slice %66 {offsets = [0, 16], sizes = [16, 8], strides = [1, 1]} : vector<16x32xbf16> to vector<16x8xbf16>
    %cst_36 = arith.constant dense<0.000000e+00> : vector<16x16xf32>
    %113 = tpu.matmul %110, %111, %cst_36 {dimension_numbers = #tpu.dot_dimension_numbers<[1], [1], [0], [0], [0, 0, 1, 0], [], []>} : vector<16x8xbf16>, vector<16x8xbf16>, vector<16x16xf32> -> vector<16x16xf32>
    %114 = arith.addf %113, %44 : vector<16x16xf32>
    %cst_37 = arith.constant dense<0xFF800000> : vector<16xf32>
    %115 = vector.multi_reduction <maximumf>, %114, %cst_37 [1] : vector<16x16xf32> to vector<16xf32>
    %116 = vector.shape_cast %115 : vector<16xf32> to vector<16x1xf32>
    %117 = vector.broadcast %116 : vector<16x1xf32> to vector<16x16xf32>
    %118 = arith.subf %114, %117 : vector<16x16xf32>
    %119 = math.exp %118 : vector<16x16xf32>
    %cst_38 = arith.constant dense<0.000000e+00> : vector<16xf32>
    %120 = vector.multi_reduction <add>, %119, %cst_38 [1] : vector<16x16xf32> to vector<16xf32>
    %121 = vector.shape_cast %120 : vector<16xf32> to vector<16x1xf32>
    %122 = tpu.reciprocal %121 {approx = true} : vector<16x1xf32> -> vector<16x1xf32>
    %123 = vector.broadcast %122 : vector<16x1xf32> to vector<16x16xf32>
    %124 = arith.mulf %119, %123 : vector<16x16xf32>
    %125 = arith.truncf %124 : vector<16x16xf32> to vector<16x16xbf16>
    %cst_39 = arith.constant dense<0.000000e+00> : vector<16x8xf32>
    %126 = tpu.matmul %125, %112, %cst_39 {dimension_numbers = #tpu.dot_dimension_numbers<[1], [0], [0], [1], [0, 0, 1, 1], [], []>} : vector<16x16xbf16>, vector<16x8xbf16>, vector<16x8xf32> -> vector<16x8xf32>
    %127 = arith.truncf %126 : vector<16x8xf32> to vector<16x8xbf16>
    %128 = vector.extract_strided_slice %52 {offsets = [16, 0], sizes = [8, 32], strides = [1, 1]} : vector<32x32xbf16> to vector<8x32xbf16>
    %cst_40 = arith.constant dense<0.000000e+00> : vector<16x32xf32>
    %129 = tpu.matmul %127, %128, %cst_40 {dimension_numbers = #tpu.dot_dimension_numbers<[1], [0], [0], [1], [0, 0, 1, 1], [], []>} : vector<16x8xbf16>, vector<8x32xbf16>, vector<16x32xf32> -> vector<16x32xf32>
    %130 = arith.addf %109, %129 : vector<16x32xf32>
    %131 = vector.extract_strided_slice %62 {offsets = [0, 24], sizes = [16, 8], strides = [1, 1]} : vector<16x32xbf16> to vector<16x8xbf16>
    %132 = vector.extract_strided_slice %64 {offsets = [0, 24], sizes = [16, 8], strides = [1, 1]} : vector<16x32xbf16> to vector<16x8xbf16>
    %133 = vector.extract_strided_slice %66 {offsets = [0, 24], sizes = [16, 8], strides = [1, 1]} : vector<16x32xbf16> to vector<16x8xbf16>
    %cst_41 = arith.constant dense<0.000000e+00> : vector<16x16xf32>
    %134 = tpu.matmul %131, %132, %cst_41 {dimension_numbers = #tpu.dot_dimension_numbers<[1], [1], [0], [0], [0, 0, 1, 0], [], []>} : vector<16x8xbf16>, vector<16x8xbf16>, vector<16x16xf32> -> vector<16x16xf32>
    %135 = arith.addf %134, %44 : vector<16x16xf32>
    %cst_42 = arith.constant dense<0xFF800000> : vector<16xf32>
    %136 = vector.multi_reduction <maximumf>, %135, %cst_42 [1] : vector<16x16xf32> to vector<16xf32>
    %137 = vector.shape_cast %136 : vector<16xf32> to vector<16x1xf32>
    %138 = vector.broadcast %137 : vector<16x1xf32> to vector<16x16xf32>
    %139 = arith.subf %135, %138 : vector<16x16xf32>
    %140 = math.exp %139 : vector<16x16xf32>
    %cst_43 = arith.constant dense<0.000000e+00> : vector<16xf32>
    %141 = vector.multi_reduction <add>, %140, %cst_43 [1] : vector<16x16xf32> to vector<16xf32>
    %142 = vector.shape_cast %141 : vector<16xf32> to vector<16x1xf32>
    %143 = tpu.reciprocal %142 {approx = true} : vector<16x1xf32> -> vector<16x1xf32>
    %144 = vector.broadcast %143 : vector<16x1xf32> to vector<16x16xf32>
    %145 = arith.mulf %140, %144 : vector<16x16xf32>
    %146 = arith.truncf %145 : vector<16x16xf32> to vector<16x16xbf16>
    %cst_44 = arith.constant dense<0.000000e+00> : vector<16x8xf32>
    %147 = tpu.matmul %146, %133, %cst_44 {dimension_numbers = #tpu.dot_dimension_numbers<[1], [0], [0], [1], [0, 0, 1, 1], [], []>} : vector<16x16xbf16>, vector<16x8xbf16>, vector<16x8xf32> -> vector<16x8xf32>
    %148 = arith.truncf %147 : vector<16x8xf32> to vector<16x8xbf16>
    %149 = vector.extract_strided_slice %52 {offsets = [24, 0], sizes = [8, 32], strides = [1, 1]} : vector<32x32xbf16> to vector<8x32xbf16>
    %cst_45 = arith.constant dense<0.000000e+00> : vector<16x32xf32>
    %150 = tpu.matmul %148, %149, %cst_45 {dimension_numbers = #tpu.dot_dimension_numbers<[1], [0], [0], [1], [0, 0, 1, 1], [], []>} : vector<16x8xbf16>, vector<8x32xbf16>, vector<16x32xf32> -> vector<16x32xf32>
    %151 = arith.addf %130, %150 : vector<16x32xf32>
    %152 = arith.addf %43, %151 : vector<16x32xf32>
    %153 = vector.extract_strided_slice %50 {offsets = [1, 0], sizes = [1, 32], strides = [1, 1]} : vector<8x128xf32> to vector<1x32xf32>
    %154 = vector.broadcast %153 : vector<1x32xf32> to vector<16x32xf32>
    %155 = arith.addf %152, %154 : vector<16x32xf32>
    %156 = vector.extract_strided_slice %50 {offsets = [2, 0], sizes = [1, 32], strides = [1, 1]} : vector<8x128xf32> to vector<1x32xf32>
    %157 = vector.extract_strided_slice %50 {offsets = [3, 0], sizes = [1, 32], strides = [1, 1]} : vector<8x128xf32> to vector<1x32xf32>
    %cst_46 = arith.constant dense<0.000000e+00> : vector<16xf32>
    %158 = vector.multi_reduction <add>, %155, %cst_46 [1] : vector<16x32xf32> to vector<16xf32>
    %159 = vector.shape_cast %158 : vector<16xf32> to vector<16x1xf32>
    %cst_47 = arith.constant 3.200000e+01 : f32
    %160 = vector.broadcast %cst_47 : f32 to vector<16x1xf32>
    %161 = arith.divf %159, %160 : vector<16x1xf32>
    %162 = vector.broadcast %161 : vector<16x1xf32> to vector<16x32xf32>
    %163 = arith.subf %155, %162 : vector<16x32xf32>
    %164 = arith.mulf %163, %163 : vector<16x32xf32>
    %cst_48 = arith.constant dense<0.000000e+00> : vector<16xf32>
    %165 = vector.multi_reduction <add>, %164, %cst_48 [1] : vector<16x32xf32> to vector<16xf32>
    %166 = vector.shape_cast %165 : vector<16xf32> to vector<16x1xf32>
    %cst_49 = arith.constant 3.200000e+01 : f32
    %167 = vector.broadcast %cst_49 : f32 to vector<16x1xf32>
    %168 = arith.divf %166, %167 : vector<16x1xf32>
    %169 = vector.broadcast %161 : vector<16x1xf32> to vector<16x32xf32>
    %170 = arith.subf %155, %169 : vector<16x32xf32>
    %cst_50 = arith.constant 9.99999996E-13 : f32
    %171 = vector.broadcast %cst_50 : f32 to vector<16x1xf32>
    %172 = arith.addf %168, %171 : vector<16x1xf32>
    %173 = math.rsqrt %172 : vector<16x1xf32>
    %174 = vector.broadcast %173 : vector<16x1xf32> to vector<16x32xf32>
    %175 = arith.mulf %170, %174 : vector<16x32xf32>
    %176 = vector.broadcast %156 : vector<1x32xf32> to vector<16x32xf32>
    %177 = arith.mulf %175, %176 : vector<16x32xf32>
    %178 = vector.broadcast %157 : vector<1x32xf32> to vector<16x32xf32>
    %179 = arith.addf %177, %178 : vector<16x32xf32>
    %180 = arith.truncf %179 : vector<16x32xf32> to vector<16x32xbf16>
    %cst_51 = arith.constant dense<0.000000e+00> : vector<16x64xf32>
    %181 = tpu.matmul %180, %53, %cst_51 {dimension_numbers = #tpu.dot_dimension_numbers<[1], [0], [0], [1], [0, 0, 1, 1], [], []>} : vector<16x32xbf16>, vector<32x64xbf16>, vector<16x64xf32> -> vector<16x64xf32>
    %182 = vector.extract_strided_slice %50 {offsets = [4, 0], sizes = [1, 64], strides = [1, 1]} : vector<8x128xf32> to vector<1x64xf32>
    %183 = vector.broadcast %182 : vector<1x64xf32> to vector<16x64xf32>
    %184 = arith.addf %181, %183 : vector<16x64xf32>
    %cst_52 = arith.constant 5.000000e-01 : f32
    %185 = vector.broadcast %cst_52 : f32 to vector<16x64xf32>
    %186 = arith.mulf %185, %184 : vector<16x64xf32>
    %cst_53 = arith.constant 4.471500e-02 : f32
    %187 = vector.broadcast %cst_53 : f32 to vector<16x64xf32>
    %188 = arith.mulf %187, %184 : vector<16x64xf32>
    %189 = arith.mulf %188, %184 : vector<16x64xf32>
    %190 = arith.mulf %189, %184 : vector<16x64xf32>
    %191 = arith.addf %184, %190 : vector<16x64xf32>
    %cst_54 = arith.constant 0.797884583 : f32
    %192 = vector.broadcast %cst_54 : f32 to vector<16x64xf32>
    %193 = arith.mulf %192, %191 : vector<16x64xf32>
    %194 = math.tanh %193 : vector<16x64xf32>
    %cst_55 = arith.constant 1.000000e+00 : f32
    %195 = vector.broadcast %cst_55 : f32 to vector<16x64xf32>
    %196 = arith.addf %195, %194 : vector<16x64xf32>
    %197 = arith.mulf %186, %196 : vector<16x64xf32>
    %198 = arith.truncf %197 : vector<16x64xf32> to vector<16x64xbf16>
    %cst_56 = arith.constant dense<0.000000e+00> : vector<16x32xf32>
    %199 = tpu.matmul %198, %48, %cst_56 {dimension_numbers = #tpu.dot_dimension_numbers<[1], [0], [0], [1], [0, 0, 1, 1], [], []>} : vector<16x64xbf16>, vector<64x32xbf16>, vector<16x32xf32> -> vector<16x32xf32>
    %200 = vector.extract_strided_slice %50 {offsets = [5, 0], sizes = [1, 32], strides = [1, 1]} : vector<8x128xf32> to vector<1x32xf32>
    %201 = vector.broadcast %200 : vector<1x32xf32> to vector<16x32xf32>
    %202 = arith.addf %199, %201 : vector<16x32xf32>
    %203 = arith.addf %179, %202 : vector<16x32xf32>
    %204 = vector.extract_strided_slice %50 {offsets = [6, 0], sizes = [1, 32], strides = [1, 1]} : vector<8x128xf32> to vector<1x32xf32>
    %205 = vector.extract_strided_slice %50 {offsets = [7, 0], sizes = [1, 32], strides = [1, 1]} : vector<8x128xf32> to vector<1x32xf32>
    %cst_57 = arith.constant dense<0.000000e+00> : vector<16xf32>
    %206 = vector.multi_reduction <add>, %203, %cst_57 [1] : vector<16x32xf32> to vector<16xf32>
    %207 = vector.shape_cast %206 : vector<16xf32> to vector<16x1xf32>
    %cst_58 = arith.constant 3.200000e+01 : f32
    %208 = vector.broadcast %cst_58 : f32 to vector<16x1xf32>
    %209 = arith.divf %207, %208 : vector<16x1xf32>
    %210 = vector.broadcast %209 : vector<16x1xf32> to vector<16x32xf32>
    %211 = arith.subf %203, %210 : vector<16x32xf32>
    %212 = arith.mulf %211, %211 : vector<16x32xf32>
    %cst_59 = arith.constant dense<0.000000e+00> : vector<16xf32>
    %213 = vector.multi_reduction <add>, %212, %cst_59 [1] : vector<16x32xf32> to vector<16xf32>
    %214 = vector.shape_cast %213 : vector<16xf32> to vector<16x1xf32>
    %cst_60 = arith.constant 3.200000e+01 : f32
    %215 = vector.broadcast %cst_60 : f32 to vector<16x1xf32>
    %216 = arith.divf %214, %215 : vector<16x1xf32>
    %217 = vector.broadcast %209 : vector<16x1xf32> to vector<16x32xf32>
    %218 = arith.subf %203, %217 : vector<16x32xf32>
    %cst_61 = arith.constant 9.99999996E-13 : f32
    %219 = vector.broadcast %cst_61 : f32 to vector<16x1xf32>
    %220 = arith.addf %216, %219 : vector<16x1xf32>
    %221 = math.rsqrt %220 : vector<16x1xf32>
    %222 = vector.broadcast %221 : vector<16x1xf32> to vector<16x32xf32>
    %223 = arith.mulf %218, %222 : vector<16x32xf32>
    %224 = vector.broadcast %204 : vector<1x32xf32> to vector<16x32xf32>
    %225 = arith.mulf %223, %224 : vector<16x32xf32>
    %226 = vector.broadcast %205 : vector<1x32xf32> to vector<16x32xf32>
    %227 = arith.addf %225, %226 : vector<16x32xf32>
    %c1 = arith.constant 1 : index
    %c0_62 = arith.constant 0 : index
    %c0_63 = arith.constant 0 : index
    %228 = vector.load %arg3[%c1, %c0_62, %c0_63] : memref<2x32x384xbf16, #tpu.memory_space<vmem>>, vector<1x32x384xbf16>
    %229 = vector.shape_cast %228 : vector<1x32x384xbf16> to vector<32x384xbf16>
    %c1_64 = arith.constant 1 : index
    %c0_65 = arith.constant 0 : index
    %c0_66 = arith.constant 0 : index
    %230 = vector.load %arg4[%c1_64, %c0_65, %c0_66] : memref<2x64x32xbf16, #tpu.memory_space<vmem>>, vector<1x64x32xbf16>
    %231 = vector.shape_cast %230 : vector<1x64x32xbf16> to vector<64x32xbf16>
    %c1_67 = arith.constant 1 : index
    %c0_68 = arith.constant 0 : index
    %c0_69 = arith.constant 0 : index
    %232 = vector.load %arg5[%c1_67, %c0_68, %c0_69] : memref<2x8x128xf32, #tpu.memory_space<vmem>>, vector<1x8x128xf32>
    %233 = vector.shape_cast %232 : vector<1x8x128xf32> to vector<8x128xf32>
    %234 = vector.extract_strided_slice %229 {offsets = [0, 0], sizes = [32, 96], strides = [1, 1]} : vector<32x384xbf16> to vector<32x96xbf16>
    %235 = vector.extract_strided_slice %229 {offsets = [0, 128], sizes = [32, 32], strides = [1, 1]} : vector<32x384xbf16> to vector<32x32xbf16>
    %236 = vector.extract_strided_slice %229 {offsets = [0, 256], sizes = [32, 64], strides = [1, 1]} : vector<32x384xbf16> to vector<32x64xbf16>
    %237 = arith.truncf %227 : vector<16x32xf32> to vector<16x32xbf16>
    %cst_70 = arith.constant dense<0.000000e+00> : vector<16x96xf32>
    %238 = tpu.matmul %237, %234, %cst_70 {dimension_numbers = #tpu.dot_dimension_numbers<[1], [0], [0], [1], [0, 0, 1, 1], [], []>} : vector<16x32xbf16>, vector<32x96xbf16>, vector<16x96xf32> -> vector<16x96xf32>
    %239 = vector.extract_strided_slice %233 {offsets = [0, 0], sizes = [1, 96], strides = [1, 1]} : vector<8x128xf32> to vector<1x96xf32>
    %240 = vector.broadcast %239 : vector<1x96xf32> to vector<16x96xf32>
    %241 = arith.addf %238, %240 : vector<16x96xf32>
    %242 = vector.extract_strided_slice %241 {offsets = [0, 0], sizes = [16, 32], strides = [1, 1]} : vector<16x96xf32> to vector<16x32xf32>
    %cst_71 = arith.constant 0.353553385 : f32
    %243 = vector.broadcast %cst_71 : f32 to vector<16x32xf32>
    %244 = arith.mulf %242, %243 : vector<16x32xf32>
    %245 = arith.truncf %244 : vector<16x32xf32> to vector<16x32xbf16>
    %246 = vector.extract_strided_slice %241 {offsets = [0, 32], sizes = [16, 32], strides = [1, 1]} : vector<16x96xf32> to vector<16x32xf32>
    %247 = arith.truncf %246 : vector<16x32xf32> to vector<16x32xbf16>
    %248 = vector.extract_strided_slice %241 {offsets = [0, 64], sizes = [16, 32], strides = [1, 1]} : vector<16x96xf32> to vector<16x32xf32>
    %249 = arith.truncf %248 : vector<16x32xf32> to vector<16x32xbf16>
    %cst_72 = arith.constant 0.000000e+00 : f32
    %250 = vector.broadcast %cst_72 : f32 to vector<16x32xf32>
    %251 = vector.extract_strided_slice %245 {offsets = [0, 0], sizes = [16, 8], strides = [1, 1]} : vector<16x32xbf16> to vector<16x8xbf16>
    %252 = vector.extract_strided_slice %247 {offsets = [0, 0], sizes = [16, 8], strides = [1, 1]} : vector<16x32xbf16> to vector<16x8xbf16>
    %253 = vector.extract_strided_slice %249 {offsets = [0, 0], sizes = [16, 8], strides = [1, 1]} : vector<16x32xbf16> to vector<16x8xbf16>
    %cst_73 = arith.constant dense<0.000000e+00> : vector<16x16xf32>
    %254 = tpu.matmul %251, %252, %cst_73 {dimension_numbers = #tpu.dot_dimension_numbers<[1], [1], [0], [0], [0, 0, 1, 0], [], []>} : vector<16x8xbf16>, vector<16x8xbf16>, vector<16x16xf32> -> vector<16x16xf32>
    %255 = arith.addf %254, %44 : vector<16x16xf32>
    %cst_74 = arith.constant dense<0xFF800000> : vector<16xf32>
    %256 = vector.multi_reduction <maximumf>, %255, %cst_74 [1] : vector<16x16xf32> to vector<16xf32>
    %257 = vector.shape_cast %256 : vector<16xf32> to vector<16x1xf32>
    %258 = vector.broadcast %257 : vector<16x1xf32> to vector<16x16xf32>
    %259 = arith.subf %255, %258 : vector<16x16xf32>
    %260 = math.exp %259 : vector<16x16xf32>
    %cst_75 = arith.constant dense<0.000000e+00> : vector<16xf32>
    %261 = vector.multi_reduction <add>, %260, %cst_75 [1] : vector<16x16xf32> to vector<16xf32>
    %262 = vector.shape_cast %261 : vector<16xf32> to vector<16x1xf32>
    %263 = tpu.reciprocal %262 {approx = true} : vector<16x1xf32> -> vector<16x1xf32>
    %264 = vector.broadcast %263 : vector<16x1xf32> to vector<16x16xf32>
    %265 = arith.mulf %260, %264 : vector<16x16xf32>
    %266 = arith.truncf %265 : vector<16x16xf32> to vector<16x16xbf16>
    %cst_76 = arith.constant dense<0.000000e+00> : vector<16x8xf32>
    %267 = tpu.matmul %266, %253, %cst_76 {dimension_numbers = #tpu.dot_dimension_numbers<[1], [0], [0], [1], [0, 0, 1, 1], [], []>} : vector<16x16xbf16>, vector<16x8xbf16>, vector<16x8xf32> -> vector<16x8xf32>
    %268 = arith.truncf %267 : vector<16x8xf32> to vector<16x8xbf16>
    %269 = vector.extract_strided_slice %235 {offsets = [0, 0], sizes = [8, 32], strides = [1, 1]} : vector<32x32xbf16> to vector<8x32xbf16>
    %cst_77 = arith.constant dense<0.000000e+00> : vector<16x32xf32>
    %270 = tpu.matmul %268, %269, %cst_77 {dimension_numbers = #tpu.dot_dimension_numbers<[1], [0], [0], [1], [0, 0, 1, 1], [], []>} : vector<16x8xbf16>, vector<8x32xbf16>, vector<16x32xf32> -> vector<16x32xf32>
    %271 = arith.addf %250, %270 : vector<16x32xf32>
    %272 = vector.extract_strided_slice %245 {offsets = [0, 8], sizes = [16, 8], strides = [1, 1]} : vector<16x32xbf16> to vector<16x8xbf16>
    %273 = vector.extract_strided_slice %247 {offsets = [0, 8], sizes = [16, 8], strides = [1, 1]} : vector<16x32xbf16> to vector<16x8xbf16>
    %274 = vector.extract_strided_slice %249 {offsets = [0, 8], sizes = [16, 8], strides = [1, 1]} : vector<16x32xbf16> to vector<16x8xbf16>
    %cst_78 = arith.constant dense<0.000000e+00> : vector<16x16xf32>
    %275 = tpu.matmul %272, %273, %cst_78 {dimension_numbers = #tpu.dot_dimension_numbers<[1], [1], [0], [0], [0, 0, 1, 0], [], []>} : vector<16x8xbf16>, vector<16x8xbf16>, vector<16x16xf32> -> vector<16x16xf32>
    %276 = arith.addf %275, %44 : vector<16x16xf32>
    %cst_79 = arith.constant dense<0xFF800000> : vector<16xf32>
    %277 = vector.multi_reduction <maximumf>, %276, %cst_79 [1] : vector<16x16xf32> to vector<16xf32>
    %278 = vector.shape_cast %277 : vector<16xf32> to vector<16x1xf32>
    %279 = vector.broadcast %278 : vector<16x1xf32> to vector<16x16xf32>
    %280 = arith.subf %276, %279 : vector<16x16xf32>
    %281 = math.exp %280 : vector<16x16xf32>
    %cst_80 = arith.constant dense<0.000000e+00> : vector<16xf32>
    %282 = vector.multi_reduction <add>, %281, %cst_80 [1] : vector<16x16xf32> to vector<16xf32>
    %283 = vector.shape_cast %282 : vector<16xf32> to vector<16x1xf32>
    %284 = tpu.reciprocal %283 {approx = true} : vector<16x1xf32> -> vector<16x1xf32>
    %285 = vector.broadcast %284 : vector<16x1xf32> to vector<16x16xf32>
    %286 = arith.mulf %281, %285 : vector<16x16xf32>
    %287 = arith.truncf %286 : vector<16x16xf32> to vector<16x16xbf16>
    %cst_81 = arith.constant dense<0.000000e+00> : vector<16x8xf32>
    %288 = tpu.matmul %287, %274, %cst_81 {dimension_numbers = #tpu.dot_dimension_numbers<[1], [0], [0], [1], [0, 0, 1, 1], [], []>} : vector<16x16xbf16>, vector<16x8xbf16>, vector<16x8xf32> -> vector<16x8xf32>
    %289 = arith.truncf %288 : vector<16x8xf32> to vector<16x8xbf16>
    %290 = vector.extract_strided_slice %235 {offsets = [8, 0], sizes = [8, 32], strides = [1, 1]} : vector<32x32xbf16> to vector<8x32xbf16>
    %cst_82 = arith.constant dense<0.000000e+00> : vector<16x32xf32>
    %291 = tpu.matmul %289, %290, %cst_82 {dimension_numbers = #tpu.dot_dimension_numbers<[1], [0], [0], [1], [0, 0, 1, 1], [], []>} : vector<16x8xbf16>, vector<8x32xbf16>, vector<16x32xf32> -> vector<16x32xf32>
    %292 = arith.addf %271, %291 : vector<16x32xf32>
    %293 = vector.extract_strided_slice %245 {offsets = [0, 16], sizes = [16, 8], strides = [1, 1]} : vector<16x32xbf16> to vector<16x8xbf16>
    %294 = vector.extract_strided_slice %247 {offsets = [0, 16], sizes = [16, 8], strides = [1, 1]} : vector<16x32xbf16> to vector<16x8xbf16>
    %295 = vector.extract_strided_slice %249 {offsets = [0, 16], sizes = [16, 8], strides = [1, 1]} : vector<16x32xbf16> to vector<16x8xbf16>
    %cst_83 = arith.constant dense<0.000000e+00> : vector<16x16xf32>
    %296 = tpu.matmul %293, %294, %cst_83 {dimension_numbers = #tpu.dot_dimension_numbers<[1], [1], [0], [0], [0, 0, 1, 0], [], []>} : vector<16x8xbf16>, vector<16x8xbf16>, vector<16x16xf32> -> vector<16x16xf32>
    %297 = arith.addf %296, %44 : vector<16x16xf32>
    %cst_84 = arith.constant dense<0xFF800000> : vector<16xf32>
    %298 = vector.multi_reduction <maximumf>, %297, %cst_84 [1] : vector<16x16xf32> to vector<16xf32>
    %299 = vector.shape_cast %298 : vector<16xf32> to vector<16x1xf32>
    %300 = vector.broadcast %299 : vector<16x1xf32> to vector<16x16xf32>
    %301 = arith.subf %297, %300 : vector<16x16xf32>
    %302 = math.exp %301 : vector<16x16xf32>
    %cst_85 = arith.constant dense<0.000000e+00> : vector<16xf32>
    %303 = vector.multi_reduction <add>, %302, %cst_85 [1] : vector<16x16xf32> to vector<16xf32>
    %304 = vector.shape_cast %303 : vector<16xf32> to vector<16x1xf32>
    %305 = tpu.reciprocal %304 {approx = true} : vector<16x1xf32> -> vector<16x1xf32>
    %306 = vector.broadcast %305 : vector<16x1xf32> to vector<16x16xf32>
    %307 = arith.mulf %302, %306 : vector<16x16xf32>
    %308 = arith.truncf %307 : vector<16x16xf32> to vector<16x16xbf16>
    %cst_86 = arith.constant dense<0.000000e+00> : vector<16x8xf32>
    %309 = tpu.matmul %308, %295, %cst_86 {dimension_numbers = #tpu.dot_dimension_numbers<[1], [0], [0], [1], [0, 0, 1, 1], [], []>} : vector<16x16xbf16>, vector<16x8xbf16>, vector<16x8xf32> -> vector<16x8xf32>
    %310 = arith.truncf %309 : vector<16x8xf32> to vector<16x8xbf16>
    %311 = vector.extract_strided_slice %235 {offsets = [16, 0], sizes = [8, 32], strides = [1, 1]} : vector<32x32xbf16> to vector<8x32xbf16>
    %cst_87 = arith.constant dense<0.000000e+00> : vector<16x32xf32>
    %312 = tpu.matmul %310, %311, %cst_87 {dimension_numbers = #tpu.dot_dimension_numbers<[1], [0], [0], [1], [0, 0, 1, 1], [], []>} : vector<16x8xbf16>, vector<8x32xbf16>, vector<16x32xf32> -> vector<16x32xf32>
    %313 = arith.addf %292, %312 : vector<16x32xf32>
    %314 = vector.extract_strided_slice %245 {offsets = [0, 24], sizes = [16, 8], strides = [1, 1]} : vector<16x32xbf16> to vector<16x8xbf16>
    %315 = vector.extract_strided_slice %247 {offsets = [0, 24], sizes = [16, 8], strides = [1, 1]} : vector<16x32xbf16> to vector<16x8xbf16>
    %316 = vector.extract_strided_slice %249 {offsets = [0, 24], sizes = [16, 8], strides = [1, 1]} : vector<16x32xbf16> to vector<16x8xbf16>
    %cst_88 = arith.constant dense<0.000000e+00> : vector<16x16xf32>
    %317 = tpu.matmul %314, %315, %cst_88 {dimension_numbers = #tpu.dot_dimension_numbers<[1], [1], [0], [0], [0, 0, 1, 0], [], []>} : vector<16x8xbf16>, vector<16x8xbf16>, vector<16x16xf32> -> vector<16x16xf32>
    %318 = arith.addf %317, %44 : vector<16x16xf32>
    %cst_89 = arith.constant dense<0xFF800000> : vector<16xf32>
    %319 = vector.multi_reduction <maximumf>, %318, %cst_89 [1] : vector<16x16xf32> to vector<16xf32>
    %320 = vector.shape_cast %319 : vector<16xf32> to vector<16x1xf32>
    %321 = vector.broadcast %320 : vector<16x1xf32> to vector<16x16xf32>
    %322 = arith.subf %318, %321 : vector<16x16xf32>
    %323 = math.exp %322 : vector<16x16xf32>
    %cst_90 = arith.constant dense<0.000000e+00> : vector<16xf32>
    %324 = vector.multi_reduction <add>, %323, %cst_90 [1] : vector<16x16xf32> to vector<16xf32>
    %325 = vector.shape_cast %324 : vector<16xf32> to vector<16x1xf32>
    %326 = tpu.reciprocal %325 {approx = true} : vector<16x1xf32> -> vector<16x1xf32>
    %327 = vector.broadcast %326 : vector<16x1xf32> to vector<16x16xf32>
    %328 = arith.mulf %323, %327 : vector<16x16xf32>
    %329 = arith.truncf %328 : vector<16x16xf32> to vector<16x16xbf16>
    %cst_91 = arith.constant dense<0.000000e+00> : vector<16x8xf32>
    %330 = tpu.matmul %329, %316, %cst_91 {dimension_numbers = #tpu.dot_dimension_numbers<[1], [0], [0], [1], [0, 0, 1, 1], [], []>} : vector<16x16xbf16>, vector<16x8xbf16>, vector<16x8xf32> -> vector<16x8xf32>
    %331 = arith.truncf %330 : vector<16x8xf32> to vector<16x8xbf16>
    %332 = vector.extract_strided_slice %235 {offsets = [24, 0], sizes = [8, 32], strides = [1, 1]} : vector<32x32xbf16> to vector<8x32xbf16>
    %cst_92 = arith.constant dense<0.000000e+00> : vector<16x32xf32>
    %333 = tpu.matmul %331, %332, %cst_92 {dimension_numbers = #tpu.dot_dimension_numbers<[1], [0], [0], [1], [0, 0, 1, 1], [], []>} : vector<16x8xbf16>, vector<8x32xbf16>, vector<16x32xf32> -> vector<16x32xf32>
    %334 = arith.addf %313, %333 : vector<16x32xf32>
    %335 = arith.addf %227, %334 : vector<16x32xf32>
    %336 = vector.extract_strided_slice %233 {offsets = [1, 0], sizes = [1, 32], strides = [1, 1]} : vector<8x128xf32> to vector<1x32xf32>
    %337 = vector.broadcast %336 : vector<1x32xf32> to vector<16x32xf32>
    %338 = arith.addf %335, %337 : vector<16x32xf32>
    %339 = vector.extract_strided_slice %233 {offsets = [2, 0], sizes = [1, 32], strides = [1, 1]} : vector<8x128xf32> to vector<1x32xf32>
    %340 = vector.extract_strided_slice %233 {offsets = [3, 0], sizes = [1, 32], strides = [1, 1]} : vector<8x128xf32> to vector<1x32xf32>
    %cst_93 = arith.constant dense<0.000000e+00> : vector<16xf32>
    %341 = vector.multi_reduction <add>, %338, %cst_93 [1] : vector<16x32xf32> to vector<16xf32>
    %342 = vector.shape_cast %341 : vector<16xf32> to vector<16x1xf32>
    %cst_94 = arith.constant 3.200000e+01 : f32
    %343 = vector.broadcast %cst_94 : f32 to vector<16x1xf32>
    %344 = arith.divf %342, %343 : vector<16x1xf32>
    %345 = vector.broadcast %344 : vector<16x1xf32> to vector<16x32xf32>
    %346 = arith.subf %338, %345 : vector<16x32xf32>
    %347 = arith.mulf %346, %346 : vector<16x32xf32>
    %cst_95 = arith.constant dense<0.000000e+00> : vector<16xf32>
    %348 = vector.multi_reduction <add>, %347, %cst_95 [1] : vector<16x32xf32> to vector<16xf32>
    %349 = vector.shape_cast %348 : vector<16xf32> to vector<16x1xf32>
    %cst_96 = arith.constant 3.200000e+01 : f32
    %350 = vector.broadcast %cst_96 : f32 to vector<16x1xf32>
    %351 = arith.divf %349, %350 : vector<16x1xf32>
    %352 = vector.broadcast %344 : vector<16x1xf32> to vector<16x32xf32>
    %353 = arith.subf %338, %352 : vector<16x32xf32>
    %cst_97 = arith.constant 9.99999996E-13 : f32
    %354 = vector.broadcast %cst_97 : f32 to vector<16x1xf32>
    %355 = arith.addf %351, %354 : vector<16x1xf32>
    %356 = math.rsqrt %355 : vector<16x1xf32>
    %357 = vector.broadcast %356 : vector<16x1xf32> to vector<16x32xf32>
    %358 = arith.mulf %353, %357 : vector<16x32xf32>
    %359 = vector.broadcast %339 : vector<1x32xf32> to vector<16x32xf32>
    %360 = arith.mulf %358, %359 : vector<16x32xf32>
    %361 = vector.broadcast %340 : vector<1x32xf32> to vector<16x32xf32>
    %362 = arith.addf %360, %361 : vector<16x32xf32>
    %363 = arith.truncf %362 : vector<16x32xf32> to vector<16x32xbf16>
    %cst_98 = arith.constant dense<0.000000e+00> : vector<16x64xf32>
    %364 = tpu.matmul %363, %236, %cst_98 {dimension_numbers = #tpu.dot_dimension_numbers<[1], [0], [0], [1], [0, 0, 1, 1], [], []>} : vector<16x32xbf16>, vector<32x64xbf16>, vector<16x64xf32> -> vector<16x64xf32>
    %365 = vector.extract_strided_slice %233 {offsets = [4, 0], sizes = [1, 64], strides = [1, 1]} : vector<8x128xf32> to vector<1x64xf32>
    %366 = vector.broadcast %365 : vector<1x64xf32> to vector<16x64xf32>
    %367 = arith.addf %364, %366 : vector<16x64xf32>
    %cst_99 = arith.constant 5.000000e-01 : f32
    %368 = vector.broadcast %cst_99 : f32 to vector<16x64xf32>
    %369 = arith.mulf %368, %367 : vector<16x64xf32>
    %cst_100 = arith.constant 4.471500e-02 : f32
    %370 = vector.broadcast %cst_100 : f32 to vector<16x64xf32>
    %371 = arith.mulf %370, %367 : vector<16x64xf32>
    %372 = arith.mulf %371, %367 : vector<16x64xf32>
    %373 = arith.mulf %372, %367 : vector<16x64xf32>
    %374 = arith.addf %367, %373 : vector<16x64xf32>
    %cst_101 = arith.constant 0.797884583 : f32
    %375 = vector.broadcast %cst_101 : f32 to vector<16x64xf32>
    %376 = arith.mulf %375, %374 : vector<16x64xf32>
    %377 = math.tanh %376 : vector<16x64xf32>
    %cst_102 = arith.constant 1.000000e+00 : f32
    %378 = vector.broadcast %cst_102 : f32 to vector<16x64xf32>
    %379 = arith.addf %378, %377 : vector<16x64xf32>
    %380 = arith.mulf %369, %379 : vector<16x64xf32>
    %381 = arith.truncf %380 : vector<16x64xf32> to vector<16x64xbf16>
    %cst_103 = arith.constant dense<0.000000e+00> : vector<16x32xf32>
    %382 = tpu.matmul %381, %231, %cst_103 {dimension_numbers = #tpu.dot_dimension_numbers<[1], [0], [0], [1], [0, 0, 1, 1], [], []>} : vector<16x64xbf16>, vector<64x32xbf16>, vector<16x32xf32> -> vector<16x32xf32>
    %383 = vector.extract_strided_slice %233 {offsets = [5, 0], sizes = [1, 32], strides = [1, 1]} : vector<8x128xf32> to vector<1x32xf32>
    %384 = vector.broadcast %383 : vector<1x32xf32> to vector<16x32xf32>
    %385 = arith.addf %382, %384 : vector<16x32xf32>
    %386 = arith.addf %362, %385 : vector<16x32xf32>
    %387 = vector.extract_strided_slice %233 {offsets = [6, 0], sizes = [1, 32], strides = [1, 1]} : vector<8x128xf32> to vector<1x32xf32>
    %388 = vector.extract_strided_slice %233 {offsets = [7, 0], sizes = [1, 32], strides = [1, 1]} : vector<8x128xf32> to vector<1x32xf32>
    %cst_104 = arith.constant dense<0.000000e+00> : vector<16xf32>
    %389 = vector.multi_reduction <add>, %386, %cst_104 [1] : vector<16x32xf32> to vector<16xf32>
    %390 = vector.shape_cast %389 : vector<16xf32> to vector<16x1xf32>
    %cst_105 = arith.constant 3.200000e+01 : f32
    %391 = vector.broadcast %cst_105 : f32 to vector<16x1xf32>
    %392 = arith.divf %390, %391 : vector<16x1xf32>
    %393 = vector.broadcast %392 : vector<16x1xf32> to vector<16x32xf32>
    %394 = arith.subf %386, %393 : vector<16x32xf32>
    %395 = arith.mulf %394, %394 : vector<16x32xf32>
    %cst_106 = arith.constant dense<0.000000e+00> : vector<16xf32>
    %396 = vector.multi_reduction <add>, %395, %cst_106 [1] : vector<16x32xf32> to vector<16xf32>
    %397 = vector.shape_cast %396 : vector<16xf32> to vector<16x1xf32>
    %cst_107 = arith.constant 3.200000e+01 : f32
    %398 = vector.broadcast %cst_107 : f32 to vector<16x1xf32>
    %399 = arith.divf %397, %398 : vector<16x1xf32>
    %400 = vector.broadcast %392 : vector<16x1xf32> to vector<16x32xf32>
    %401 = arith.subf %386, %400 : vector<16x32xf32>
    %cst_108 = arith.constant 9.99999996E-13 : f32
    %402 = vector.broadcast %cst_108 : f32 to vector<16x1xf32>
    %403 = arith.addf %399, %402 : vector<16x1xf32>
    %404 = math.rsqrt %403 : vector<16x1xf32>
    %405 = vector.broadcast %404 : vector<16x1xf32> to vector<16x32xf32>
    %406 = arith.mulf %401, %405 : vector<16x32xf32>
    %407 = vector.broadcast %387 : vector<1x32xf32> to vector<16x32xf32>
    %408 = arith.mulf %406, %407 : vector<16x32xf32>
    %409 = vector.broadcast %388 : vector<1x32xf32> to vector<16x32xf32>
    %410 = arith.addf %408, %409 : vector<16x32xf32>
    %c0_109 = arith.constant 0 : index
    %c0_110 = arith.constant 0 : index
    %411 = vector.load %arg6[%c0_109, %c0_110] : memref<32x256xbf16, #tpu.memory_space<vmem>>, vector<32x256xbf16>
    %412 = tpu.iota {dimensions = array<i32: 1>} : vector<2x16xi32>
    %413 = tpu.iota {dimensions = array<i32: 0>} : vector<2x16xi32>
    %c8_i32 = arith.constant 8 : i32
    %414 = vector.broadcast %c8_i32 : i32 to vector<2x16xi32>
    %415 = arith.muli %414, %413 : vector<2x16xi32>
    %416 = arith.cmpi eq, %412, %415 : vector<2x16xi32>
    %cst_111 = arith.constant 1.000000e+00 : f32
    %cst_112 = arith.constant 0.000000e+00 : f32
    %417 = vector.broadcast %cst_111 : f32 to vector<2x16xf32>
    %418 = vector.broadcast %cst_112 : f32 to vector<2x16xf32>
    %419 = arith.select %416, %417, %418 : vector<2x16xi1>, vector<2x16xf32>
    %420 = arith.truncf %419 : vector<2x16xf32> to vector<2x16xbf16>
    %421 = arith.truncf %410 : vector<16x32xf32> to vector<16x32xbf16>
    %cst_113 = arith.constant dense<0.000000e+00> : vector<2x32xf32>
    %422 = tpu.matmul %420, %421, %cst_113 {dimension_numbers = #tpu.dot_dimension_numbers<[1], [0], [0], [1], [0, 0, 1, 1], [], []>} : vector<2x16xbf16>, vector<16x32xbf16>, vector<2x32xf32> -> vector<2x32xf32>
    %423 = arith.truncf %422 : vector<2x32xf32> to vector<2x32xbf16>
    %424 = vector.extract_strided_slice %411 {offsets = [0, 0], sizes = [32, 32], strides = [1, 1]} : vector<32x256xbf16> to vector<32x32xbf16>
    %cst_114 = arith.constant dense<0.000000e+00> : vector<2x32xf32>
    %425 = tpu.matmul %423, %424, %cst_114 {dimension_numbers = #tpu.dot_dimension_numbers<[1], [0], [0], [1], [0, 0, 1, 1], [], []>} : vector<2x32xbf16>, vector<32x32xbf16>, vector<2x32xf32> -> vector<2x32xf32>
    %426 = vector.extract_strided_slice %19 {offsets = [2, 0], sizes = [1, 32], strides = [1, 1]} : vector<4x128xf32> to vector<1x32xf32>
    %427 = vector.broadcast %426 : vector<1x32xf32> to vector<2x32xf32>
    %428 = arith.addf %425, %427 : vector<2x32xf32>
    %429 = math.tanh %428 : vector<2x32xf32>
    %430 = arith.truncf %429 : vector<2x32xf32> to vector<2x32xbf16>
    %431 = vector.extract_strided_slice %411 {offsets = [0, 128], sizes = [32, 2], strides = [1, 1]} : vector<32x256xbf16> to vector<32x2xbf16>
    %cst_115 = arith.constant dense<0.000000e+00> : vector<2x2xf32>
    %432 = tpu.matmul %430, %431, %cst_115 {dimension_numbers = #tpu.dot_dimension_numbers<[1], [0], [0], [1], [0, 0, 1, 1], [], []>} : vector<2x32xbf16>, vector<32x2xbf16>, vector<2x2xf32> -> vector<2x2xf32>
    %433 = vector.extract_strided_slice %19 {offsets = [3, 0], sizes = [1, 2], strides = [1, 1]} : vector<4x128xf32> to vector<1x2xf32>
    %434 = vector.broadcast %433 : vector<1x2xf32> to vector<2x2xf32>
    %435 = arith.addf %432, %434 : vector<2x2xf32>
    %c0_116 = arith.constant 0 : index
    %c0_117 = arith.constant 0 : index
    %436 = vector.load %arg8[%c0_116, %c0_117] : memref<2x2xf32, #tpu.memory_space<vmem>>, vector<2x2xf32>
    tpu.vector_store %arg8[%c0_116, %c0_117], %435 {strides = array<i32>} : memref<2x2xf32, #tpu.memory_space<vmem>>, vector<2x2xf32>,
    return
  }
}

</mosaic_0001>

<llo_original>
// kernel: bert_forward.1
$region0: #{bert_forward.1}
  #allocation0 [shape = 'u32[]', space=smem, size = 0x4, offset = 0x4, fixed_abs, tag = 'smem constant byte address 0x4 - core index']
  #allocation1 [shape = 'u32[144,128]{1,0:T(1,128)}', space=vmem, size = 0x12000, scoped, tag = 'internal scratch']
  %s0 = inlined_call_operand.vmem [shape: s32[16,3], index: 0, kind: input, shape index: {}]
  %s1 = inlined_call_operand.vmem [shape: f32[16,16], index: 1, kind: input, shape index: {}]
  %s2 = inlined_call_operand.vmem [shape: bf16[50,32], index: 2, kind: input, shape index: {}]
  %s3 = inlined_call_operand.vmem [shape: bf16[2,32,384], index: 3, kind: input, shape index: {}]
  %s4 = inlined_call_operand.vmem [shape: bf16[2,64,32], index: 4, kind: input, shape index: {}]
  %s5 = inlined_call_operand.vmem [shape: f32[2,8,128], index: 5, kind: input, shape index: {}]
  %s6 = inlined_call_operand.vmem [shape: bf16[32,256], index: 6, kind: input, shape index: {}]
  %s7 = inlined_call_operand.vmem [shape: f32[4,128], index: 7, kind: input, shape index: {}]
  %s8 = inlined_call_operand.hbm [shape: f32[2,2], index: 8, kind: output, shape index: {}]
  %s9 = sld [smem:[#allocation0]]
  $region42: #{bert_forward.1} parent=0
    _
  %s11 = ssub.s32 1, %s9
  %s12 = scalar_select 0, %s11, %s9
  $region1: #{bert_forward.1} parent=0
    #allocation2 [shape = 'u8[1024]{0}', space=vmem, size = 0x400, scoped, tag = 'output window, operand 0, single buffered']
    #allocation3 [shape = 's32[1]{0}', space=sflag, size = 0x4, scoped, tag = 'scoped memory for bert_forward.1']
    %13 = vsyncpa [#allocation3], 0
    // Predicated region
    $region2: #{bert_forward.1} parent=1 // pred_check
      _
    $region3: #{bert_forward.1} parent=1 // pred_check_branch
      %15 = sbr.rel (0) target = $region5
    $region4: #{bert_forward.1} parent=1 // pred_region
      _
    $region5: #{bert_forward.1} parent=1 // pred_fallthru
      _
    // Predicated region
    $region6: #{bert_forward.1} parent=1 // pred_check
      _
    $region7: #{bert_forward.1} parent=1 // pred_check_branch
      %17 = sbr.rel (0) target = $region9
    $region8: #{bert_forward.1} parent=1 // pred_region
      _
    $region9: #{bert_forward.1} parent=1 // pred_fallthru
      _
    // Predicated region
    $region10: #{bert_forward.1} parent=1 // pred_check
      _
    $region11: #{bert_forward.1} parent=1 // pred_check_branch
      %19 = sbr.rel (0) target = $region13
    $region12: #{bert_forward.1} parent=1 // pred_region
      _
    $region13: #{bert_forward.1} parent=1 // pred_fallthru
      _
    // Predicated region
    $region14: #{bert_forward.1} parent=1 // pred_check
      _
    $region15: #{bert_forward.1} parent=1 // pred_check_branch
      %21 = sbr.rel (0) target = $region17
    $region16: #{bert_forward.1} parent=1 // pred_region
      _
    $region17: #{bert_forward.1} parent=1 // pred_fallthru
      _
    // Predicated region
    $region18: #{bert_forward.1} parent=1 // pred_check
      _
    $region19: #{bert_forward.1} parent=1 // pred_check_branch
      %23 = sbr.rel (0) target = $region21
    $region20: #{bert_forward.1} parent=1 // pred_region
      _
    $region21: #{bert_forward.1} parent=1 // pred_fallthru
      _
    // Predicated region
    $region22: #{bert_forward.1} parent=1 // pred_check
      _
    $region23: #{bert_forward.1} parent=1 // pred_check_branch
      %25 = sbr.rel (0) target = $region25
    $region24: #{bert_forward.1} parent=1 // pred_region
      _
    $region25: #{bert_forward.1} parent=1 // pred_fallthru
      _
    // Predicated region
    $region26: #{bert_forward.1} parent=1 // pred_check
      _
    $region27: #{bert_forward.1} parent=1 // pred_check_branch
      %27 = sbr.rel (0) target = $region29
    $region28: #{bert_forward.1} parent=1 // pred_region
      _
    $region29: #{bert_forward.1} parent=1 // pred_fallthru
      _
    // Predicated region
    $region30: #{bert_forward.1} parent=1 // pred_check
      _
    $region31: #{bert_forward.1} parent=1 // pred_check_branch
      %29 = sbr.rel (0) target = $region33
    $region32: #{bert_forward.1} parent=1 // pred_region
      _
    $region33: #{bert_forward.1} parent=1 // pred_fallthru
      _
    %v31 = vld [vmem:[%s0] sm:$0xff]
    %v32 = vld [vmem:[%s0 + $0x8] sm:$0xff]
    %v33 = vlaneseq
    %v34 = vand.u32 %v33, 127
    %35 = vset.pattern.permute.xlu0 0
    %36 = vperm.xlu0 %35, %v31
    %v37 = vpop.permute.xlu0 %36
    %38 = vset.pattern.permute.xlu0 0
    %39 = vperm.xlu0 %38, %v32
    %v40 = vpop.permute.xlu0 %39
    %vm41 = vcmp.eq.s32.totalorder %v34, %v37
    %vm42 = vcmp.eq.s32.totalorder %v34, %v40
    %43 = vset.pattern.permute.xlu0 1
    %44 = vperm.xlu0 %43, %v31
    %v45 = vpop.permute.xlu0 %44
    %46 = vset.pattern.permute.xlu0 1
    %47 = vperm.xlu0 %46, %v32
    %v48 = vpop.permute.xlu0 %47
    %vm49 = vcmp.eq.s32.totalorder %v34, %v45
    %vm50 = vcmp.eq.s32.totalorder %v34, %v48
    %vm51 = vmor %vm41, %vm49
    %vm52 = vmor %vm42, %vm50
    %53 = vset.pattern.permute.xlu0 2
    %54 = vperm.xlu0 %53, %v31
    %v55 = vpop.permute.xlu0 %54
    %56 = vset.pattern.permute.xlu0 2
    %57 = vperm.xlu0 %56, %v32
    %v58 = vpop.permute.xlu0 %57
    %vm59 = vcmp.eq.s32.totalorder %v34, %v55
    %vm60 = vcmp.eq.s32.totalorder %v34, %v58
    %vm61 = vmor %vm51, %vm59
    %vm62 = vmor %vm52, %vm60
    %v63 = vsel %vm61, 1.0, 0.0
    %v64 = vsel %vm62, 1.0, 0.0
    %v65 = vpack.c.bf16 %v64, %v63
    %v66 = vld [vmem:[%s2] sm:$0xf]
    %v67 = vld [vmem:[%s2 + $0x4] sm:$0xf]
    %v68 = vld [vmem:[%s2 + $0x8] sm:$0xf]
    %v69 = vld [vmem:[%s2 + $0xc] sm:$0xf]
    %v70 = vld [vmem:[%s2 + $0x10] sm:$0xf]
    %v71 = vld [vmem:[%s2 + $0x14] sm:$0xf]
    %v72 = vld [vmem:[%s2 + $0x18] sm:$0x1]
    %v80 = vunpack.c.l.b16 %v66
    %v81 = vunpack.c.l.b16 %v67
    %v82 = vunpack.c.l.b16 %v68
    %v83 = vunpack.c.l.b16 %v69
    %v84 = vunpack.c.l.b16 %v70
    %v85 = vunpack.c.l.b16 %v71
    %v86 = vunpack.c.l.b16 %v72
    %v87 = vpack.c.b16 %v81, %v80
    %v88 = vpack.c.b16 %v83, %v82
    %v89 = vpack.c.b16 %v85, %v84
    %v90 = vpack.c.b16 %v86, %v86
    %vm94 = vcmask 408576
    %v96 = vsel %vm94, %v65, 0
    %vm98 = vcmask 1040384
    %v100 = vsel %vm98, %v90, 0
    %102 = vmatprep.subr.bf16.mxu0 0
    %103 = vmatpush1.bf16.msra.mxu0 %v87
    %104 = vmatprep.subr.bf16.mxu0 0
    %105 = vmatpush1.bf16.msra.mxu0 %v88
    %106 = vmatprep.subr.bf16.mxu0 0
    %107 = vmatpush1.bf16.msra.mxu0 %v89
    %108 = vmatprep.subr.bf16.mxu0 0
    %109 = vmatpush1.bf16.msra.mxu0 %v100
    %110 = vmatprep.subr.bf16.mxu0 0
    %111 = vmatpush1.bf16.msra.mxu0 0
    %112 = vmatprep.subr.bf16.mxu0 0
    %113 = vmatpush1.bf16.msra.mxu0 0
    %114 = vmatprep.subr.bf16.mxu0 0
    %115 = vmatpush1.bf16.msra.mxu0 0
    %116 = vmatprep.subr.bf16.mxu0 0
    %117 = vmatpush1.bf16.msra.mxu0 0
    %118 = vmatprep.subr.bf16.mxu0 0
    %119 = vmatpush1.bf16.msra.mxu0 0
    %120 = vmatprep.subr.bf16.mxu0 0
    %121 = vmatpush1.bf16.msra.mxu0 0
    %122 = vmatprep.subr.bf16.mxu0 0
    %123 = vmatpush1.bf16.msra.mxu0 0
    %124 = vmatprep.subr.bf16.mxu0 0
    %125 = vmatpush1.bf16.msra.mxu0 0
    %126 = vmatprep.subr.bf16.mxu0 0
    %127 = vmatpush1.bf16.msra.mxu0 0
    %128 = vmatprep.subr.bf16.mxu0 0
    %129 = vmatpush1.bf16.msra.mxu0 0
    %130 = vmatprep.subr.bf16.mxu0 0
    %131 = vmatpush1.bf16.msra.mxu0 0
    %132 = vmatprep.subr.bf16.mxu0 0
    %133 = vmatpush1.bf16.msra.mxu0 0
    %134 = vmatprep.mubr.bf16.mxu0 0
    %135 = vmatmul.mubr.bf16.gmra.mrb[0].mxu0 %v96
    %v136 = vpop.f32.mrb[0].mxu0
    %v137 = vadd.f32 0.0, %v136
    %v138 = vpop.f32.mrb[0].mxu0
    %v139 = vpop.f32.mrb[0].mxu0
    %v140 = vadd.f32 0.0, %v139
    %v141 = vpop.f32.mrb[0].mxu0
    %142 = vdwg.mxu0
    %v143 = vld [vmem:[%s7] sm:$0xf]
    %vm144 = vcmask 261120
    %v145 = vsel %vm144, %v137, 0.0
    %146 = vadd.xlane.f32.xlu0 %v145
    %v147 = vpop.xlane.xlu0 %146
    %v148 = vsel %vm144, %v140, 0.0
    %149 = vadd.xlane.f32.xlu0 %v148
    %v150 = vpop.xlane.xlu0 %149
    %v151 = vrcp.pop 32.0
    %v152 = vmul.f32 %v147, %v151
    %v153 = vmul.f32 %v150, %v151
    %v154 = vsub.f32 %v137, %v152
    %v155 = vsub.f32 %v140, %v153
    %v156 = vmul.f32 %v154, %v154
    %v157 = vmul.f32 %v155, %v155
    %v158 = vsel %vm144, %v156, 0.0
    %159 = vadd.xlane.f32.xlu0 %v158
    %v160 = vpop.xlane.xlu0 %159
    %v161 = vsel %vm144, %v157, 0.0
    %162 = vadd.xlane.f32.xlu0 %v161
    %v163 = vpop.xlane.xlu0 %162
    %v164 = vmul.f32 %v160, %v151
    %v165 = vmul.f32 %v163, %v151
    %v166 = vadd.f32 %v164, 1e-12
    %v167 = vadd.f32 %v165, 1e-12
    %v168 = vrsqrt.pop %v166
    %v169 = vrsqrt.pop %v167
    %v170 = vmul.f32 %v154, %v168
    %v171 = vmul.f32 %v155, %v169
    %v172 = vlaneseq
    %v173 = vshrl.u32 %v172, 7
    %v174 = vsub.s32 0, %v173
    %v175 = vrot.slane %v143, %v174
    %v176 = vmul.f32 %v170, %v175
    %v177 = vmul.f32 %v171, %v175
    %v178 = vlaneseq
    %v179 = vshrl.u32 %v178, 7
    %v180 = vsub.s32 1, %v179
    %v181 = vrot.slane %v143, %v180
    %v182 = vadd.f32 %v176, %v181
    %v183 = vadd.f32 %v177, %v181
    %v184 = vld [vmem:[%s1] sm:$0xff]
    %v185 = vld [vmem:[%s1 + $0x8] sm:$0xff]
    %v186 = vld [vmem:[%s3] sm:$0xff]
    %v187 = vld [vmem:[%s3 + $0x8] sm:$0xf]
    %v188 = vld [vmem:[%s3 + $0xc] sm:$0xff]
    %v189 = vld [vmem:[%s3 + $0x14] sm:$0xf]
    %v190 = vld [vmem:[%s3 + $0x18] sm:$0xff]
    %v191 = vld [vmem:[%s3 + $0x20] sm:$0xf]
    %v192 = vld [vmem:[%s3 + $0x24] sm:$0xff]
    %v193 = vld [vmem:[%s3 + $0x2c] sm:$0xf]
    %v194 = vld [vmem:[%s4] sm:$0xf]
    %v195 = vld [vmem:[%s4 + $0x4] sm:$0xf]
    %v196 = vld [vmem:[%s4 + $0x8] sm:$0xf]
    %v197 = vld [vmem:[%s4 + $0xc] sm:$0xf]
    %v198 = vld [vmem:[%s4 + $0x10] sm:$0xf]
    %v199 = vld [vmem:[%s4 + $0x14] sm:$0xf]
    %v200 = vld [vmem:[%s4 + $0x18] sm:$0xf]
    %v201 = vld [vmem:[%s4 + $0x1c] sm:$0xf]
    %v202 = vld [vmem:[%s5] sm:$0xff]
    %v203 = vpack.c.bf16 %v183, %v182
    %v204 = vlaneseq
    %v205 = vshrl.u32 %v204, 7
    %v206 = vsub.s32 0, %v205
    %v207 = vrot.slane %v202, %v206
    %v212 = vunpack.c.l.b16 %v186
    %v213 = vunpack.c.l.b16 %v188
    %v214 = vunpack.c.l.b16 %v190
    %v215 = vunpack.c.l.b16 %v192
    %v216 = vpack.c.b16 %v213, %v212
    %v217 = vpack.c.b16 %v215, %v214
    %v221 = vsel %vm144, %v203, 0
    %223 = vmatprep.subr.bf16.mxu0 0
    %224 = vmatpush1.bf16.msra.mxu0 %v216
    %225 = vmatprep.subr.bf16.mxu0 0
    %226 = vmatpush1.bf16.msra.mxu0 %v217
    %227 = vmatprep.subr.bf16.mxu0 0
    %228 = vmatpush1.bf16.msra.mxu0 0
    %229 = vmatprep.subr.bf16.mxu0 0
    %230 = vmatpush1.bf16.msra.mxu0 0
    %231 = vmatprep.subr.bf16.mxu0 0
    %232 = vmatpush1.bf16.msra.mxu0 0
    %233 = vmatprep.subr.bf16.mxu0 0
    %234 = vmatpush1.bf16.msra.mxu0 0
    %235 = vmatprep.subr.bf16.mxu0 0
    %236 = vmatpush1.bf16.msra.mxu0 0
    %237 = vmatprep.subr.bf16.mxu0 0
    %238 = vmatpush1.bf16.msra.mxu0 0
    %239 = vmatprep.subr.bf16.mxu0 0
    %240 = vmatpush1.bf16.msra.mxu0 0
    %241 = vmatprep.subr.bf16.mxu0 0
    %242 = vmatpush1.bf16.msra.mxu0 0
    %243 = vmatprep.subr.bf16.mxu0 0
    %244 = vmatpush1.bf16.msra.mxu0 0
    %245 = vmatprep.subr.bf16.mxu0 0
    %246 = vmatpush1.bf16.msra.mxu0 0
    %247 = vmatprep.subr.bf16.mxu0 0
    %248 = vmatpush1.bf16.msra.mxu0 0
    %249 = vmatprep.subr.bf16.mxu0 0
    %250 = vmatpush1.bf16.msra.mxu0 0
    %251 = vmatprep.subr.bf16.mxu0 0
    %252 = vmatpush1.bf16.msra.mxu0 0
    %253 = vmatprep.subr.bf16.mxu0 0
    %254 = vmatpush1.bf16.msra.mxu0 0
    %255 = vmatprep.mubr.bf16.mxu0 0
    %256 = vmatmul.mubr.bf16.gmra.mrb[0].mxu0 %v221
    %v257 = vpop.f32.mrb[0].mxu0
    %v258 = vadd.f32 %v207, %v257
    %v259 = vpop.f32.mrb[0].mxu0
    %v260 = vpop.f32.mrb[0].mxu0
    %v261 = vadd.f32 %v207, %v260
    %v262 = vpop.f32.mrb[0].mxu0
    %263 = vdwg.mxu0
    %v264 = vmul.f32 %v258, 0.35355338
    %v265 = vmul.f32 %v261, 0.35355338
    %v266 = vpack.c.bf16 %v265, %v264
    %v267 = vpack.c.bf16 %v261, %v258
    %269 = vrot.lane.b32.xlu0 %v267, 96
    %v270 = vpop.permute.xlu0 %269
    %vm271 = vcmask 64512
    %v273 = vsel %vm271, %v266, 0
    %v276 = vsel %vm271, %v270, 0
    %278 = vmatprep.subr.bf16.mxu0 0
    %279 = vmatpush1.bf16.xpose.msra.mxu0 %v276
    %280 = vmatprep.subr.bf16.mxu0 0
    %281 = vmatpush1.bf16.xpose.msra.mxu0 0
    %282 = vmatprep.subr.bf16.mxu0 0
    %283 = vmatpush1.bf16.xpose.msra.mxu0 0
    %284 = vmatprep.subr.bf16.mxu0 0
    %285 = vmatpush1.bf16.xpose.msra.mxu0 0
    %286 = vmatprep.subr.bf16.mxu0 0
    %287 = vmatpush1.bf16.xpose.msra.mxu0 0
    %288 = vmatprep.subr.bf16.mxu0 0
    %289 = vmatpush1.bf16.xpose.msra.mxu0 0
    %290 = vmatprep.subr.bf16.mxu0 0
    %291 = vmatpush1.bf16.xpose.msra.mxu0 0
    %292 = vmatprep.subr.bf16.mxu0 0
    %293 = vmatpush1.bf16.xpose.msra.mxu0 0
    %294 = vmatprep.subr.bf16.mxu0 0
    %295 = vmatpush1.bf16.xpose.msra.mxu0 0
    %296 = vmatprep.subr.bf16.mxu0 0
    %297 = vmatpush1.bf16.xpose.msra.mxu0 0
    %298 = vmatprep.subr.bf16.mxu0 0
    %299 = vmatpush1.bf16.xpose.msra.mxu0 0
    %300 = vmatprep.subr.bf16.mxu0 0
    %301 = vmatpush1.bf16.xpose.msra.mxu0 0
    %302 = vmatprep.subr.bf16.mxu0 0
    %303 = vmatpush1.bf16.xpose.msra.mxu0 0
    %304 = vmatprep.subr.bf16.mxu0 0
    %305 = vmatpush1.bf16.xpose.msra.mxu0 0
    %306 = vmatprep.subr.bf16.mxu0 0
    %307 = vmatpush1.bf16.xpose.msra.mxu0 0
    %308 = vmatprep.subr.bf16.mxu0 0
    %309 = vmatpush1.bf16.xpose.msra.mxu0 0
    %310 = vmatprep.mubr.bf16.mxu0 0
    %311 = vmatmul.mubr.bf16.gmra.mrb[0].mxu0 %v273
    %v312 = vpop.f32.mrb[0].mxu0
    %v313 = vadd.f32 %v184, %v312
    %v314 = vpop.f32.mrb[0].mxu0
    %v315 = vpop.f32.mrb[0].mxu0
    %v316 = vadd.f32 %v185, %v315
    %v317 = vpop.f32.mrb[0].mxu0
    %318 = vdwg.mxu0
    %vm319 = vcmask 130048
    %v320 = vsel %vm319, %v313, -inf
    %321 = vmax.xlane.f32.xlu0 %v320
    %v322 = vpop.xlane.xlu0 %321
    %v323 = vsel %vm319, %v316, -inf
    %324 = vmax.xlane.f32.xlu0 %v323
    %v325 = vpop.xlane.xlu0 %324
    %v326 = vsub.f32 %v313, %v322
    %v327 = vsub.f32 %v316, %v325
    %v328 = vmul.f32 %v326, 1.442695
    %v329 = vpow.pop %v328
    %v330 = vmul.f32 %v327, 1.442695
    %v331 = vpow.pop %v330
    %v332 = vsel %vm319, %v329, 0.0
    %333 = vadd.xlane.f32.xlu0 %v332
    %v334 = vpop.xlane.xlu0 %333
    %v335 = vsel %vm319, %v331, 0.0
    %336 = vadd.xlane.f32.xlu0 %v335
    %v337 = vpop.xlane.xlu0 %336
    %v338 = vrcp.pop %v334
    %v339 = vrcp.pop %v337
    %v340 = vmul.f32 %v329, %v338
    %v341 = vmul.f32 %v331, %v339
    %v342 = vpack.c.bf16 %v341, %v340
    %343 = vrot.lane.b32.xlu0 %v267, 64
    %v344 = vpop.permute.xlu0 %343
    %v347 = vsel %vm319, %v342, 0
    %349 = vmatprep.subr.bf16.mxu0 0
    %350 = vmatpush1.bf16.msra.mxu0 %v344
    %351 = vmatprep.subr.bf16.mxu0 0
    %352 = vmatpush1.bf16.msra.mxu0 0
    %353 = vmatprep.subr.bf16.mxu0 0
    %354 = vmatpush1.bf16.msra.mxu0 0
    %355 = vmatprep.subr.bf16.mxu0 0
    %356 = vmatpush1.bf16.msra.mxu0 0
    %357 = vmatprep.subr.bf16.mxu0 0
    %358 = vmatpush1.bf16.msra.mxu0 0
    %359 = vmatprep.subr.bf16.mxu0 0
    %360 = vmatpush1.bf16.msra.mxu0 0
    %361 = vmatprep.subr.bf16.mxu0 0
    %362 = vmatpush1.bf16.msra.mxu0 0
    %363 = vmatprep.subr.bf16.mxu0 0
    %364 = vmatpush1.bf16.msra.mxu0 0
    %365 = vmatprep.subr.bf16.mxu0 0
    %366 = vmatpush1.bf16.msra.mxu0 0
    %367 = vmatprep.subr.bf16.mxu0 0
    %368 = vmatpush1.bf16.msra.mxu0 0
    %369 = vmatprep.subr.bf16.mxu0 0
    %370 = vmatpush1.bf16.msra.mxu0 0
    %371 = vmatprep.subr.bf16.mxu0 0
    %372 = vmatpush1.bf16.msra.mxu0 0
    %373 = vmatprep.subr.bf16.mxu0 0
    %374 = vmatpush1.bf16.msra.mxu0 0
    %375 = vmatprep.subr.bf16.mxu0 0
    %376 = vmatpush1.bf16.msra.mxu0 0
    %377 = vmatprep.subr.bf16.mxu0 0
    %378 = vmatpush1.bf16.msra.mxu0 0
    %379 = vmatprep.subr.bf16.mxu0 0
    %380 = vmatpush1.bf16.msra.mxu0 0
    %381 = vmatprep.mubr.bf16.mxu0 0
    %382 = vmatmul.mubr.bf16.gmra.mrb[0].mxu0 %v347
    %v383 = vpop.f32.mrb[0].mxu0
    %v384 = vadd.f32 0.0, %v383
    %v385 = vpop.f32.mrb[0].mxu0
    %v386 = vpop.f32.mrb[0].mxu0
    %v387 = vadd.f32 0.0, %v386
    %v388 = vpop.f32.mrb[0].mxu0
    %389 = vdwg.mxu0
    %v390 = vpack.c.bf16 %v387, %v384
    %392 = vrot.lane.b32.xlu0 %v266, 120
    %v393 = vpop.permute.xlu0 %392
    %394 = vrot.lane.b32.xlu0 %v267, 88
    %v395 = vpop.permute.xlu0 %394
    %v397 = vsel %vm271, %v393, 0
    %v400 = vsel %vm271, %v395, 0
    %402 = vmatprep.subr.bf16.mxu0 0
    %403 = vmatpush1.bf16.xpose.msra.mxu0 %v400
    %404 = vmatprep.subr.bf16.mxu0 0
    %405 = vmatpush1.bf16.xpose.msra.mxu0 0
    %406 = vmatprep.subr.bf16.mxu0 0
    %407 = vmatpush1.bf16.xpose.msra.mxu0 0
    %408 = vmatprep.subr.bf16.mxu0 0
    %409 = vmatpush1.bf16.xpose.msra.mxu0 0
    %410 = vmatprep.subr.bf16.mxu0 0
    %411 = vmatpush1.bf16.xpose.msra.mxu0 0
    %412 = vmatprep.subr.bf16.mxu0 0
    %413 = vmatpush1.bf16.xpose.msra.mxu0 0
    %414 = vmatprep.subr.bf16.mxu0 0
    %415 = vmatpush1.bf16.xpose.msra.mxu0 0
    %416 = vmatprep.subr.bf16.mxu0 0
    %417 = vmatpush1.bf16.xpose.msra.mxu0 0
    %418 = vmatprep.subr.bf16.mxu0 0
    %419 = vmatpush1.bf16.xpose.msra.mxu0 0
    %420 = vmatprep.subr.bf16.mxu0 0
    %421 = vmatpush1.bf16.xpose.msra.mxu0 0
    %422 = vmatprep.subr.bf16.mxu0 0
    %423 = vmatpush1.bf16.xpose.msra.mxu0 0
    %424 = vmatprep.subr.bf16.mxu0 0
    %425 = vmatpush1.bf16.xpose.msra.mxu0 0
    %426 = vmatprep.subr.bf16.mxu0 0
    %427 = vmatpush1.bf16.xpose.msra.mxu0 0
    %428 = vmatprep.subr.bf16.mxu0 0
    %429 = vmatpush1.bf16.xpose.msra.mxu0 0
    %430 = vmatprep.subr.bf16.mxu0 0
    %431 = vmatpush1.bf16.xpose.msra.mxu0 0
    %432 = vmatprep.subr.bf16.mxu0 0
    %433 = vmatpush1.bf16.xpose.msra.mxu0 0
    %434 = vmatprep.mubr.bf16.mxu0 0
    %435 = vmatmul.mubr.bf16.gmra.mrb[0].mxu0 %v397
    %v436 = vpop.f32.mrb[0].mxu0
    %v437 = vadd.f32 %v184, %v436
    %v438 = vpop.f32.mrb[0].mxu0
    %v439 = vpop.f32.mrb[0].mxu0
    %v440 = vadd.f32 %v185, %v439
    %v441 = vpop.f32.mrb[0].mxu0
    %442 = vdwg.mxu0
    %v443 = vsel %vm319, %v437, -inf
    %444 = vmax.xlane.f32.xlu0 %v443
    %v445 = vpop.xlane.xlu0 %444
    %v446 = vsel %vm319, %v440, -inf
    %447 = vmax.xlane.f32.xlu0 %v446
    %v448 = vpop.xlane.xlu0 %447
    %v449 = vsub.f32 %v437, %v445
    %v450 = vsub.f32 %v440, %v448
    %v451 = vmul.f32 %v449, 1.442695
    %v452 = vpow.pop %v451
    %v453 = vmul.f32 %v450, 1.442695
    %v454 = vpow.pop %v453
    %v455 = vsel %vm319, %v452, 0.0
    %456 = vadd.xlane.f32.xlu0 %v455
    %v457 = vpop.xlane.xlu0 %456
    %v458 = vsel %vm319, %v454, 0.0
    %459 = vadd.xlane.f32.xlu0 %v458
    %v460 = vpop.xlane.xlu0 %459
    %v461 = vrcp.pop %v457
    %v462 = vrcp.pop %v460
    %v463 = vmul.f32 %v452, %v461
    %v464 = vmul.f32 %v454, %v462
    %v465 = vpack.c.bf16 %v464, %v463
    %466 = vrot.lane.b32.xlu0 %v267, 56
    %v467 = vpop.permute.xlu0 %466
    %v470 = vsel %vm319, %v465, 0
    %472 = vmatprep.subr.bf16.mxu0 0
    %473 = vmatpush1.bf16.msra.mxu0 %v467
    %474 = vmatprep.subr.bf16.mxu0 0
    %475 = vmatpush1.bf16.msra.mxu0 0
    %476 = vmatprep.subr.bf16.mxu0 0
    %477 = vmatpush1.bf16.msra.mxu0 0
    %478 = vmatprep.subr.bf16.mxu0 0
    %479 = vmatpush1.bf16.msra.mxu0 0
    %480 = vmatprep.subr.bf16.mxu0 0
    %481 = vmatpush1.bf16.msra.mxu0 0
    %482 = vmatprep.subr.bf16.mxu0 0
    %483 = vmatpush1.bf16.msra.mxu0 0
    %484 = vmatprep.subr.bf16.mxu0 0
    %485 = vmatpush1.bf16.msra.mxu0 0
    %486 = vmatprep.subr.bf16.mxu0 0
    %487 = vmatpush1.bf16.msra.mxu0 0
    %488 = vmatprep.subr.bf16.mxu0 0
    %489 = vmatpush1.bf16.msra.mxu0 0
    %490 = vmatprep.subr.bf16.mxu0 0
    %491 = vmatpush1.bf16.msra.mxu0 0
    %492 = vmatprep.subr.bf16.mxu0 0
    %493 = vmatpush1.bf16.msra.mxu0 0
    %494 = vmatprep.subr.bf16.mxu0 0
    %495 = vmatpush1.bf16.msra.mxu0 0
    %496 = vmatprep.subr.bf16.mxu0 0
    %497 = vmatpush1.bf16.msra.mxu0 0
    %498 = vmatprep.subr.bf16.mxu0 0
    %499 = vmatpush1.bf16.msra.mxu0 0
    %500 = vmatprep.subr.bf16.mxu0 0
    %501 = vmatpush1.bf16.msra.mxu0 0
    %502 = vmatprep.subr.bf16.mxu0 0
    %503 = vmatpush1.bf16.msra.mxu0 0
    %504 = vmatprep.mubr.bf16.mxu0 0
    %505 = vmatmul.mubr.bf16.gmra.mrb[0].mxu0 %v470
    %v506 = vpop.f32.mrb[0].mxu0
    %v507 = vadd.f32 0.0, %v506
    %v508 = vpop.f32.mrb[0].mxu0
    %v509 = vpop.f32.mrb[0].mxu0
    %v510 = vadd.f32 0.0, %v509
    %v511 = vpop.f32.mrb[0].mxu0
    %512 = vdwg.mxu0
    %v513 = vpack.c.bf16 %v510, %v507
    %v514 = vunpack.c.h.b16 %v188
    %v515 = vpack.c.b16 %v514, %v514
    %v517 = vsel %vm271, %v513, 0
    %vm519 = vcmask 1043456
    %v521 = vsel %vm519, %v515, 0
    %523 = vmatprep.subr.bf16.mxu0 0
    %524 = vmatpush1.bf16.msra.mxu0 %v521
    %525 = vmatprep.subr.bf16.mxu0 0
    %526 = vmatpush1.bf16.msra.mxu0 0
    %527 = vmatprep.subr.bf16.mxu0 0
    %528 = vmatpush1.bf16.msra.mxu0 0
    %529 = vmatprep.subr.bf16.mxu0 0
    %530 = vmatpush1.bf16.msra.mxu0 0
    %531 = vmatprep.subr.bf16.mxu0 0
    %532 = vmatpush1.bf16.msra.mxu0 0
    %533 = vmatprep.subr.bf16.mxu0 0
    %534 = vmatpush1.bf16.msra.mxu0 0
    %535 = vmatprep.subr.bf16.mxu0 0
    %536 = vmatpush1.bf16.msra.mxu0 0
    %537 = vmatprep.subr.bf16.mxu0 0
    %538 = vmatpush1.bf16.msra.mxu0 0
    %539 = vmatprep.subr.bf16.mxu0 0
    %540 = vmatpush1.bf16.msra.mxu0 0
    %541 = vmatprep.subr.bf16.mxu0 0
    %542 = vmatpush1.bf16.msra.mxu0 0
    %543 = vmatprep.subr.bf16.mxu0 0
    %544 = vmatpush1.bf16.msra.mxu0 0
    %545 = vmatprep.subr.bf16.mxu0 0
    %546 = vmatpush1.bf16.msra.mxu0 0
    %547 = vmatprep.subr.bf16.mxu0 0
    %548 = vmatpush1.bf16.msra.mxu0 0
    %549 = vmatprep.subr.bf16.mxu0 0
    %550 = vmatpush1.bf16.msra.mxu0 0
    %551 = vmatprep.subr.bf16.mxu0 0
    %552 = vmatpush1.bf16.msra.mxu0 0
    %553 = vmatprep.subr.bf16.mxu0 0
    %554 = vmatpush1.bf16.msra.mxu0 0
    %555 = vmatprep.mubr.bf16.mxu0 0
    %556 = vmatmul.mubr.bf16.gmra.mrb[0].mxu0 %v517
    %v557 = vpop.f32.mrb[0].mxu0
    %v558 = vadd.f32 0.0, %v557
    %v559 = vpop.f32.mrb[0].mxu0
    %v560 = vpop.f32.mrb[0].mxu0
    %v561 = vadd.f32 0.0, %v560
    %v562 = vpop.f32.mrb[0].mxu0
    %563 = vdwg.mxu0
    %v564 = vunpack.c.h.b16 %v186
    %v565 = vpack.c.b16 %v564, %v564
    %v567 = vsel %vm271, %v390, 0
    %v570 = vsel %vm519, %v565, 0
    %572 = vmatprep.subr.bf16.mxu0 0
    %573 = vmatpush1.bf16.msra.mxu0 %v570
    %574 = vmatprep.subr.bf16.mxu0 0
    %575 = vmatpush1.bf16.msra.mxu0 0
    %576 = vmatprep.subr.bf16.mxu0 0
    %577 = vmatpush1.bf16.msra.mxu0 0
    %578 = vmatprep.subr.bf16.mxu0 0
    %579 = vmatpush1.bf16.msra.mxu0 0
    %580 = vmatprep.subr.bf16.mxu0 0
    %581 = vmatpush1.bf16.msra.mxu0 0
    %582 = vmatprep.subr.bf16.mxu0 0
    %583 = vmatpush1.bf16.msra.mxu0 0
    %584 = vmatprep.subr.bf16.mxu0 0
    %585 = vmatpush1.bf16.msra.mxu0 0
    %586 = vmatprep.subr.bf16.mxu0 0
    %587 = vmatpush1.bf16.msra.mxu0 0
    %588 = vmatprep.subr.bf16.mxu0 0
    %589 = vmatpush1.bf16.msra.mxu0 0
    %590 = vmatprep.subr.bf16.mxu0 0
    %591 = vmatpush1.bf16.msra.mxu0 0
    %592 = vmatprep.subr.bf16.mxu0 0
    %593 = vmatpush1.bf16.msra.mxu0 0
    %594 = vmatprep.subr.bf16.mxu0 0
    %595 = vmatpush1.bf16.msra.mxu0 0
    %596 = vmatprep.subr.bf16.mxu0 0
    %597 = vmatpush1.bf16.msra.mxu0 0
    %598 = vmatprep.subr.bf16.mxu0 0
    %599 = vmatpush1.bf16.msra.mxu0 0
    %600 = vmatprep.subr.bf16.mxu0 0
    %601 = vmatpush1.bf16.msra.mxu0 0
    %602 = vmatprep.subr.bf16.mxu0 0
    %603 = vmatpush1.bf16.msra.mxu0 0
    %604 = vmatprep.mubr.bf16.mxu0 0
    %605 = vmatmul.mubr.bf16.gmra.mrb[0].mxu0 %v567
    %v606 = vpop.f32.mrb[0].mxu0
    %v607 = vadd.f32 %v558, %v606
    %v608 = vpop.f32.mrb[0].mxu0
    %v609 = vpop.f32.mrb[0].mxu0
    %v610 = vadd.f32 %v561, %v609
    %v611 = vpop.f32.mrb[0].mxu0
    %612 = vdwg.mxu0
    %613 = vrot.lane.b32.xlu0 %v266, 112
    %v614 = vpop.permute.xlu0 %613
    %615 = vrot.lane.b32.xlu0 %v267, 80
    %v616 = vpop.permute.xlu0 %615
    %v618 = vsel %vm271, %v614, 0
    %v621 = vsel %vm271, %v616, 0
    %623 = vmatprep.subr.bf16.mxu0 0
    %624 = vmatpush1.bf16.xpose.msra.mxu0 %v621
    %625 = vmatprep.subr.bf16.mxu0 0
    %626 = vmatpush1.bf16.xpose.msra.mxu0 0
    %627 = vmatprep.subr.bf16.mxu0 0
    %628 = vmatpush1.bf16.xpose.msra.mxu0 0
    %629 = vmatprep.subr.bf16.mxu0 0
    %630 = vmatpush1.bf16.xpose.msra.mxu0 0
    %631 = vmatprep.subr.bf16.mxu0 0
    %632 = vmatpush1.bf16.xpose.msra.mxu0 0
    %633 = vmatprep.subr.bf16.mxu0 0
    %634 = vmatpush1.bf16.xpose.msra.mxu0 0
    %635 = vmatprep.subr.bf16.mxu0 0
    %636 = vmatpush1.bf16.xpose.msra.mxu0 0
    %637 = vmatprep.subr.bf16.mxu0 0
    %638 = vmatpush1.bf16.xpose.msra.mxu0 0
    %639 = vmatprep.subr.bf16.mxu0 0
    %640 = vmatpush1.bf16.xpose.msra.mxu0 0
    %641 = vmatprep.subr.bf16.mxu0 0
    %642 = vmatpush1.bf16.xpose.msra.mxu0 0
    %643 = vmatprep.subr.bf16.mxu0 0
    %644 = vmatpush1.bf16.xpose.msra.mxu0 0
    %645 = vmatprep.subr.bf16.mxu0 0
    %646 = vmatpush1.bf16.xpose.msra.mxu0 0
    %647 = vmatprep.subr.bf16.mxu0 0
    %648 = vmatpush1.bf16.xpose.msra.mxu0 0
    %649 = vmatprep.subr.bf16.mxu0 0
    %650 = vmatpush1.bf16.xpose.msra.mxu0 0
    %651 = vmatprep.subr.bf16.mxu0 0
    %652 = vmatpush1.bf16.xpose.msra.mxu0 0
    %653 = vmatprep.subr.bf16.mxu0 0
    %654 = vmatpush1.bf16.xpose.msra.mxu0 0
    %655 = vmatprep.mubr.bf16.mxu0 0
    %656 = vmatmul.mubr.bf16.gmra.mrb[0].mxu0 %v618
    %v657 = vpop.f32.mrb[0].mxu0
    %v658 = vadd.f32 %v184, %v657
    %v659 = vpop.f32.mrb[0].mxu0
    %v660 = vpop.f32.mrb[0].mxu0
    %v661 = vadd.f32 %v185, %v660
    %v662 = vpop.f32.mrb[0].mxu0
    %663 = vdwg.mxu0
    %v664 = vsel %vm319, %v658, -inf
    %665 = vmax.xlane.f32.xlu0 %v664
    %v666 = vpop.xlane.xlu0 %665
    %v667 = vsel %vm319, %v661, -inf
    %668 = vmax.xlane.f32.xlu0 %v667
    %v669 = vpop.xlane.xlu0 %668
    %v670 = vsub.f32 %v658, %v666
    %v671 = vsub.f32 %v661, %v669
    %v672 = vmul.f32 %v670, 1.442695
    %v673 = vpow.pop %v672
    %v674 = vmul.f32 %v671, 1.442695
    %v675 = vpow.pop %v674
    %v676 = vsel %vm319, %v673, 0.0
    %677 = vadd.xlane.f32.xlu0 %v676
    %v678 = vpop.xlane.xlu0 %677
    %v679 = vsel %vm319, %v675, 0.0
    %680 = vadd.xlane.f32.xlu0 %v679
    %v681 = vpop.xlane.xlu0 %680
    %v682 = vrcp.pop %v678
    %v683 = vrcp.pop %v681
    %v684 = vmul.f32 %v673, %v682
    %v685 = vmul.f32 %v675, %v683
    %v686 = vpack.c.bf16 %v685, %v684
    %687 = vrot.lane.b32.xlu0 %v267, 48
    %v688 = vpop.permute.xlu0 %687
    %v691 = vsel %vm319, %v686, 0
    %693 = vmatprep.subr.bf16.mxu0 0
    %694 = vmatpush1.bf16.msra.mxu0 %v688
    %695 = vmatprep.subr.bf16.mxu0 0
    %696 = vmatpush1.bf16.msra.mxu0 0
    %697 = vmatprep.subr.bf16.mxu0 0
    %698 = vmatpush1.bf16.msra.mxu0 0
    %699 = vmatprep.subr.bf16.mxu0 0
    %700 = vmatpush1.bf16.msra.mxu0 0
    %701 = vmatprep.subr.bf16.mxu0 0
    %702 = vmatpush1.bf16.msra.mxu0 0
    %703 = vmatprep.subr.bf16.mxu0 0
    %704 = vmatpush1.bf16.msra.mxu0 0
    %705 = vmatprep.subr.bf16.mxu0 0
    %706 = vmatpush1.bf16.msra.mxu0 0
    %707 = vmatprep.subr.bf16.mxu0 0
    %708 = vmatpush1.bf16.msra.mxu0 0
    %709 = vmatprep.subr.bf16.mxu0 0
    %710 = vmatpush1.bf16.msra.mxu0 0
    %711 = vmatprep.subr.bf16.mxu0 0
    %712 = vmatpush1.bf16.msra.mxu0 0
    %713 = vmatprep.subr.bf16.mxu0 0
    %714 = vmatpush1.bf16.msra.mxu0 0
    %715 = vmatprep.subr.bf16.mxu0 0
    %716 = vmatpush1.bf16.msra.mxu0 0
    %717 = vmatprep.subr.bf16.mxu0 0
    %718 = vmatpush1.bf16.msra.mxu0 0
    %719 = vmatprep.subr.bf16.mxu0 0
    %720 = vmatpush1.bf16.msra.mxu0 0
    %721 = vmatprep.subr.bf16.mxu0 0
    %722 = vmatpush1.bf16.msra.mxu0 0
    %723 = vmatprep.subr.bf16.mxu0 0
    %724 = vmatpush1.bf16.msra.mxu0 0
    %725 = vmatprep.mubr.bf16.mxu0 0
    %726 = vmatmul.mubr.bf16.gmra.mrb[0].mxu0 %v691
    %v727 = vpop.f32.mrb[0].mxu0
    %v728 = vadd.f32 0.0, %v727
    %v729 = vpop.f32.mrb[0].mxu0
    %v730 = vpop.f32.mrb[0].mxu0
    %v731 = vadd.f32 0.0, %v730
    %v732 = vpop.f32.mrb[0].mxu0
    %733 = vdwg.mxu0
    %v734 = vpack.c.bf16 %v731, %v728
    %v735 = vunpack.c.h.b16 %v190
    %v736 = vpack.c.b16 %v735, %v735
    %v738 = vsel %vm271, %v734, 0
    %v741 = vsel %vm519, %v736, 0
    %743 = vmatprep.subr.bf16.mxu0 0
    %744 = vmatpush1.bf16.msra.mxu0 %v741
    %745 = vmatprep.subr.bf16.mxu0 0
    %746 = vmatpush1.bf16.msra.mxu0 0
    %747 = vmatprep.subr.bf16.mxu0 0
    %748 = vmatpush1.bf16.msra.mxu0 0
    %749 = vmatprep.subr.bf16.mxu0 0
    %750 = vmatpush1.bf16.msra.mxu0 0
    %751 = vmatprep.subr.bf16.mxu0 0
    %752 = vmatpush1.bf16.msra.mxu0 0
    %753 = vmatprep.subr.bf16.mxu0 0
    %754 = vmatpush1.bf16.msra.mxu0 0
    %755 = vmatprep.subr.bf16.mxu0 0
    %756 = vmatpush1.bf16.msra.mxu0 0
    %757 = vmatprep.subr.bf16.mxu0 0
    %758 = vmatpush1.bf16.msra.mxu0 0
    %759 = vmatprep.subr.bf16.mxu0 0
    %760 = vmatpush1.bf16.msra.mxu0 0
    %761 = vmatprep.subr.bf16.mxu0 0
    %762 = vmatpush1.bf16.msra.mxu0 0
    %763 = vmatprep.subr.bf16.mxu0 0
    %764 = vmatpush1.bf16.msra.mxu0 0
    %765 = vmatprep.subr.bf16.mxu0 0
    %766 = vmatpush1.bf16.msra.mxu0 0
    %767 = vmatprep.subr.bf16.mxu0 0
    %768 = vmatpush1.bf16.msra.mxu0 0
    %769 = vmatprep.subr.bf16.mxu0 0
    %770 = vmatpush1.bf16.msra.mxu0 0
    %771 = vmatprep.subr.bf16.mxu0 0
    %772 = vmatpush1.bf16.msra.mxu0 0
    %773 = vmatprep.subr.bf16.mxu0 0
    %774 = vmatpush1.bf16.msra.mxu0 0
    %775 = vmatprep.mubr.bf16.mxu0 0
    %776 = vmatmul.mubr.bf16.gmra.mrb[0].mxu0 %v738
    %v777 = vpop.f32.mrb[0].mxu0
    %v778 = vadd.f32 0.0, %v777
    %v779 = vpop.f32.mrb[0].mxu0
    %v780 = vpop.f32.mrb[0].mxu0
    %v781 = vadd.f32 0.0, %v780
    %v782 = vpop.f32.mrb[0].mxu0
    %783 = vdwg.mxu0
    %v784 = vadd.f32 %v607, %v778
    %v785 = vadd.f32 %v610, %v781
    %786 = vrot.lane.b32.xlu0 %v266, 104
    %v787 = vpop.permute.xlu0 %786
    %788 = vrot.lane.b32.xlu0 %v267, 72
    %v789 = vpop.permute.xlu0 %788
    %v791 = vsel %vm271, %v787, 0
    %v794 = vsel %vm271, %v789, 0
    %796 = vmatprep.subr.bf16.mxu0 0
    %797 = vmatpush1.bf16.xpose.msra.mxu0 %v794
    %798 = vmatprep.subr.bf16.mxu0 0
    %799 = vmatpush1.bf16.xpose.msra.mxu0 0
    %800 = vmatprep.subr.bf16.mxu0 0
    %801 = vmatpush1.bf16.xpose.msra.mxu0 0
    %802 = vmatprep.subr.bf16.mxu0 0
    %803 = vmatpush1.bf16.xpose.msra.mxu0 0
    %804 = vmatprep.subr.bf16.mxu0 0
    %805 = vmatpush1.bf16.xpose.msra.mxu0 0
    %806 = vmatprep.subr.bf16.mxu0 0
    %807 = vmatpush1.bf16.xpose.msra.mxu0 0
    %808 = vmatprep.subr.bf16.mxu0 0
    %809 = vmatpush1.bf16.xpose.msra.mxu0 0
    %810 = vmatprep.subr.bf16.mxu0 0
    %811 = vmatpush1.bf16.xpose.msra.mxu0 0
    %812 = vmatprep.subr.bf16.mxu0 0
    %813 = vmatpush1.bf16.xpose.msra.mxu0 0
    %814 = vmatprep.subr.bf16.mxu0 0
    %815 = vmatpush1.bf16.xpose.msra.mxu0 0
    %816 = vmatprep.subr.bf16.mxu0 0
    %817 = vmatpush1.bf16.xpose.msra.mxu0 0
    %818 = vmatprep.subr.bf16.mxu0 0
    %819 = vmatpush1.bf16.xpose.msra.mxu0 0
    %820 = vmatprep.subr.bf16.mxu0 0
    %821 = vmatpush1.bf16.xpose.msra.mxu0 0
    %822 = vmatprep.subr.bf16.mxu0 0
    %823 = vmatpush1.bf16.xpose.msra.mxu0 0
    %824 = vmatprep.subr.bf16.mxu0 0
    %825 = vmatpush1.bf16.xpose.msra.mxu0 0
    %826 = vmatprep.subr.bf16.mxu0 0
    %827 = vmatpush1.bf16.xpose.msra.mxu0 0
    %828 = vmatprep.mubr.bf16.mxu0 0
    %829 = vmatmul.mubr.bf16.gmra.mrb[0].mxu0 %v791
    %v830 = vpop.f32.mrb[0].mxu0
    %v831 = vadd.f32 %v184, %v830
    %v832 = vpop.f32.mrb[0].mxu0
    %v833 = vpop.f32.mrb[0].mxu0
    %v834 = vadd.f32 %v185, %v833
    %v835 = vpop.f32.mrb[0].mxu0
    %836 = vdwg.mxu0
    %v837 = vsel %vm319, %v831, -inf
    %838 = vmax.xlane.f32.xlu0 %v837
    %v839 = vpop.xlane.xlu0 %838
    %v840 = vsel %vm319, %v834, -inf
    %841 = vmax.xlane.f32.xlu0 %v840
    %v842 = vpop.xlane.xlu0 %841
    %v843 = vsub.f32 %v831, %v839
    %v844 = vsub.f32 %v834, %v842
    %v845 = vmul.f32 %v843, 1.442695
    %v846 = vpow.pop %v845
    %v847 = vmul.f32 %v844, 1.442695
    %v848 = vpow.pop %v847
    %v849 = vsel %vm319, %v846, 0.0
    %850 = vadd.xlane.f32.xlu0 %v849
    %v851 = vpop.xlane.xlu0 %850
    %v852 = vsel %vm319, %v848, 0.0
    %853 = vadd.xlane.f32.xlu0 %v852
    %v854 = vpop.xlane.xlu0 %853
    %v855 = vrcp.pop %v851
    %v856 = vrcp.pop %v854
    %v857 = vmul.f32 %v846, %v855
    %v858 = vmul.f32 %v848, %v856
    %v859 = vpack.c.bf16 %v858, %v857
    %860 = vrot.lane.b32.xlu0 %v267, 40
    %v861 = vpop.permute.xlu0 %860
    %v864 = vsel %vm319, %v859, 0
    %866 = vmatprep.subr.bf16.mxu0 0
    %867 = vmatpush1.bf16.msra.mxu0 %v861
    %868 = vmatprep.subr.bf16.mxu0 0
    %869 = vmatpush1.bf16.msra.mxu0 0
    %870 = vmatprep.subr.bf16.mxu0 0
    %871 = vmatpush1.bf16.msra.mxu0 0
    %872 = vmatprep.subr.bf16.mxu0 0
    %873 = vmatpush1.bf16.msra.mxu0 0
    %874 = vmatprep.subr.bf16.mxu0 0
    %875 = vmatpush1.bf16.msra.mxu0 0
    %876 = vmatprep.subr.bf16.mxu0 0
    %877 = vmatpush1.bf16.msra.mxu0 0
    %878 = vmatprep.subr.bf16.mxu0 0
    %879 = vmatpush1.bf16.msra.mxu0 0
    %880 = vmatprep.subr.bf16.mxu0 0
    %881 = vmatpush1.bf16.msra.mxu0 0
    %882 = vmatprep.subr.bf16.mxu0 0
    %883 = vmatpush1.bf16.msra.mxu0 0
    %884 = vmatprep.subr.bf16.mxu0 0
    %885 = vmatpush1.bf16.msra.mxu0 0
    %886 = vmatprep.subr.bf16.mxu0 0
    %887 = vmatpush1.bf16.msra.mxu0 0
    %888 = vmatprep.subr.bf16.mxu0 0
    %889 = vmatpush1.bf16.msra.mxu0 0
    %890 = vmatprep.subr.bf16.mxu0 0
    %891 = vmatpush1.bf16.msra.mxu0 0
    %892 = vmatprep.subr.bf16.mxu0 0
    %893 = vmatpush1.bf16.msra.mxu0 0
    %894 = vmatprep.subr.bf16.mxu0 0
    %895 = vmatpush1.bf16.msra.mxu0 0
    %896 = vmatprep.subr.bf16.mxu0 0
    %897 = vmatpush1.bf16.msra.mxu0 0
    %898 = vmatprep.mubr.bf16.mxu0 0
    %899 = vmatmul.mubr.bf16.gmra.mrb[0].mxu0 %v864
    %v900 = vpop.f32.mrb[0].mxu0
    %v901 = vadd.f32 0.0, %v900
    %v902 = vpop.f32.mrb[0].mxu0
    %v903 = vpop.f32.mrb[0].mxu0
    %v904 = vadd.f32 0.0, %v903
    %v905 = vpop.f32.mrb[0].mxu0
    %906 = vdwg.mxu0
    %v907 = vpack.c.bf16 %v904, %v901
    %v908 = vunpack.c.h.b16 %v192
    %v909 = vpack.c.b16 %v908, %v908
    %v911 = vsel %vm271, %v907, 0
    %v914 = vsel %vm519, %v909, 0
    %916 = vmatprep.subr.bf16.mxu0 0
    %917 = vmatpush1.bf16.msra.mxu0 %v914
    %918 = vmatprep.subr.bf16.mxu0 0
    %919 = vmatpush1.bf16.msra.mxu0 0
    %920 = vmatprep.subr.bf16.mxu0 0
    %921 = vmatpush1.bf16.msra.mxu0 0
    %922 = vmatprep.subr.bf16.mxu0 0
    %923 = vmatpush1.bf16.msra.mxu0 0
    %924 = vmatprep.subr.bf16.mxu0 0
    %925 = vmatpush1.bf16.msra.mxu0 0
    %926 = vmatprep.subr.bf16.mxu0 0
    %927 = vmatpush1.bf16.msra.mxu0 0
    %928 = vmatprep.subr.bf16.mxu0 0
    %929 = vmatpush1.bf16.msra.mxu0 0
    %930 = vmatprep.subr.bf16.mxu0 0
    %931 = vmatpush1.bf16.msra.mxu0 0
    %932 = vmatprep.subr.bf16.mxu0 0
    %933 = vmatpush1.bf16.msra.mxu0 0
    %934 = vmatprep.subr.bf16.mxu0 0
    %935 = vmatpush1.bf16.msra.mxu0 0
    %936 = vmatprep.subr.bf16.mxu0 0
    %937 = vmatpush1.bf16.msra.mxu0 0
    %938 = vmatprep.subr.bf16.mxu0 0
    %939 = vmatpush1.bf16.msra.mxu0 0
    %940 = vmatprep.subr.bf16.mxu0 0
    %941 = vmatpush1.bf16.msra.mxu0 0
    %942 = vmatprep.subr.bf16.mxu0 0
    %943 = vmatpush1.bf16.msra.mxu0 0
    %944 = vmatprep.subr.bf16.mxu0 0
    %945 = vmatpush1.bf16.msra.mxu0 0
    %946 = vmatprep.subr.bf16.mxu0 0
    %947 = vmatpush1.bf16.msra.mxu0 0
    %948 = vmatprep.mubr.bf16.mxu0 0
    %949 = vmatmul.mubr.bf16.gmra.mrb[0].mxu0 %v911
    %v950 = vpop.f32.mrb[0].mxu0
    %v951 = vadd.f32 0.0, %v950
    %v952 = vpop.f32.mrb[0].mxu0
    %v953 = vpop.f32.mrb[0].mxu0
    %v954 = vadd.f32 0.0, %v953
    %v955 = vpop.f32.mrb[0].mxu0
    %956 = vdwg.mxu0
    %v957 = vadd.f32 %v784, %v951
    %v958 = vadd.f32 %v785, %v954
    %v959 = vadd.f32 %v182, %v957
    %v960 = vadd.f32 %v183, %v958
    %v961 = vlaneseq
    %v962 = vshrl.u32 %v961, 7
    %v963 = vsub.s32 1, %v962
    %v964 = vrot.slane %v202, %v963
    %v965 = vadd.f32 %v959, %v964
    %v966 = vadd.f32 %v960, %v964
    %v967 = vsel %vm144, %v965, 0.0
    %968 = vadd.xlane.f32.xlu0 %v967
    %v969 = vpop.xlane.xlu0 %968
    %v970 = vsel %vm144, %v966, 0.0
    %971 = vadd.xlane.f32.xlu0 %v970
    %v972 = vpop.xlane.xlu0 %971
    %v973 = vmul.f32 %v969, %v151
    %v974 = vmul.f32 %v972, %v151
    %v975 = vsub.f32 %v965, %v973
    %v976 = vsub.f32 %v966, %v974
    %v977 = vmul.f32 %v975, %v975
    %v978 = vmul.f32 %v976, %v976
    %v979 = vsel %vm144, %v977, 0.0
    %980 = vadd.xlane.f32.xlu0 %v979
    %v981 = vpop.xlane.xlu0 %980
    %v982 = vsel %vm144, %v978, 0.0
    %983 = vadd.xlane.f32.xlu0 %v982
    %v984 = vpop.xlane.xlu0 %983
    %v985 = vmul.f32 %v981, %v151
    %v986 = vmul.f32 %v984, %v151
    %v987 = vadd.f32 %v985, 1e-12
    %v988 = vadd.f32 %v986, 1e-12
    %v989 = vrsqrt.pop %v987
    %v990 = vrsqrt.pop %v988
    %v991 = vmul.f32 %v975, %v989
    %v992 = vmul.f32 %v976, %v990
    %v993 = vlaneseq
    %v994 = vshrl.u32 %v993, 7
    %v995 = vsub.s32 2, %v994
    %v996 = vrot.slane %v202, %v995
    %v997 = vmul.f32 %v991, %v996
    %v998 = vmul.f32 %v992, %v996
    %v999 = vlaneseq
    %v1000 = vshrl.u32 %v999, 7
    %v1001 = vsub.s32 3, %v1000
    %v1002 = vrot.slane %v202, %v1001
    %v1003 = vadd.f32 %v997, %v1002
    %v1004 = vadd.f32 %v998, %v1002
    %v1005 = vpack.c.bf16 %v1004, %v1003
    %v1006 = vlaneseq
    %v1007 = vshrl.u32 %v1006, 7
    %v1008 = vsub.s32 4, %v1007
    %v1009 = vrot.slane %v202, %v1008
    %v1014 = vunpack.c.l.b16 %v187
    %v1015 = vunpack.c.l.b16 %v189
    %v1016 = vunpack.c.l.b16 %v191
    %v1017 = vunpack.c.l.b16 %v193
    %v1018 = vpack.c.b16 %v1015, %v1014
    %v1019 = vpack.c.b16 %v1017, %v1016
    %v1023 = vsel %vm144, %v1005, 0
    %1025 = vmatprep.subr.bf16.mxu0 0
    %1026 = vmatpush1.bf16.msra.mxu0 %v1018
    %1027 = vmatprep.subr.bf16.mxu0 0
    %1028 = vmatpush1.bf16.msra.mxu0 %v1019
    %1029 = vmatprep.subr.bf16.mxu0 0
    %1030 = vmatpush1.bf16.msra.mxu0 0
    %1031 = vmatprep.subr.bf16.mxu0 0
    %1032 = vmatpush1.bf16.msra.mxu0 0
    %1033 = vmatprep.subr.bf16.mxu0 0
    %1034 = vmatpush1.bf16.msra.mxu0 0
    %1035 = vmatprep.subr.bf16.mxu0 0
    %1036 = vmatpush1.bf16.msra.mxu0 0
    %1037 = vmatprep.subr.bf16.mxu0 0
    %1038 = vmatpush1.bf16.msra.mxu0 0
    %1039 = vmatprep.subr.bf16.mxu0 0
    %1040 = vmatpush1.bf16.msra.mxu0 0
    %1041 = vmatprep.subr.bf16.mxu0 0
    %1042 = vmatpush1.bf16.msra.mxu0 0
    %1043 = vmatprep.subr.bf16.mxu0 0
    %1044 = vmatpush1.bf16.msra.mxu0 0
    %1045 = vmatprep.subr.bf16.mxu0 0
    %1046 = vmatpush1.bf16.msra.mxu0 0
    %1047 = vmatprep.subr.bf16.mxu0 0
    %1048 = vmatpush1.bf16.msra.mxu0 0
    %1049 = vmatprep.subr.bf16.mxu0 0
    %1050 = vmatpush1.bf16.msra.mxu0 0
    %1051 = vmatprep.subr.bf16.mxu0 0
    %1052 = vmatpush1.bf16.msra.mxu0 0
    %1053 = vmatprep.subr.bf16.mxu0 0
    %1054 = vmatpush1.bf16.msra.mxu0 0
    %1055 = vmatprep.subr.bf16.mxu0 0
    %1056 = vmatpush1.bf16.msra.mxu0 0
    %1057 = vmatprep.mubr.bf16.mxu0 0
    %1058 = vmatmul.mubr.bf16.gmra.mrb[0].mxu0 %v1023
    %v1059 = vpop.f32.mrb[0].mxu0
    %v1060 = vadd.f32 %v1009, %v1059
    %v1061 = vpop.f32.mrb[0].mxu0
    %v1062 = vpop.f32.mrb[0].mxu0
    %v1063 = vadd.f32 %v1009, %v1062
    %v1064 = vpop.f32.mrb[0].mxu0
    %1065 = vdwg.mxu0
    %v1066 = vmul.f32 %v1060, 0.5
    %v1067 = vmul.f32 %v1063, 0.5
    %v1068 = vmul.f32 %v1060, 0.044715
    %v1069 = vmul.f32 %v1063, 0.044715
    %v1070 = vmul.f32 %v1068, %v1060
    %v1071 = vmul.f32 %v1069, %v1063
    %v1072 = vmul.f32 %v1070, %v1060
    %v1073 = vmul.f32 %v1071, %v1063
    %v1074 = vadd.f32 %v1060, %v1072
    %v1075 = vadd.f32 %v1063, %v1073
    %v1076 = vmul.f32 %v1074, 0.7978846
    %v1077 = vmul.f32 %v1075, 0.7978846
    %v1078 = vtanh.pop %v1076
    %v1079 = vtanh.pop %v1077
    %v1080 = vadd.f32 %v1078, 1.0
    %v1081 = vadd.f32 %v1079, 1.0
    %v1082 = vmul.f32 %v1066, %v1080
    %v1083 = vmul.f32 %v1067, %v1081
    %v1084 = vpack.c.bf16 %v1083, %v1082
    %v1085 = vlaneseq
    %v1086 = vshrl.u32 %v1085, 7
    %v1087 = vsub.s32 5, %v1086
    %v1088 = vrot.slane %v202, %v1087
    %v1097 = vunpack.c.l.b16 %v194
    %v1098 = vunpack.c.l.b16 %v195
    %v1099 = vunpack.c.l.b16 %v196
    %v1100 = vunpack.c.l.b16 %v197
    %v1101 = vunpack.c.l.b16 %v198
    %v1102 = vunpack.c.l.b16 %v199
    %v1103 = vunpack.c.l.b16 %v200
    %v1104 = vunpack.c.l.b16 %v201
    %v1105 = vpack.c.b16 %v1098, %v1097
    %v1106 = vpack.c.b16 %v1100, %v1099
    %v1107 = vpack.c.b16 %v1102, %v1101
    %v1108 = vpack.c.b16 %v1104, %v1103
    %vm1113 = vcmask 523264
    %v1115 = vsel %vm1113, %v1084, 0
    %1117 = vmatprep.subr.bf16.mxu0 0
    %1118 = vmatpush1.bf16.msra.mxu0 %v1105
    %1119 = vmatprep.subr.bf16.mxu0 0
    %1120 = vmatpush1.bf16.msra.mxu0 %v1106
    %1121 = vmatprep.subr.bf16.mxu0 0
    %1122 = vmatpush1.bf16.msra.mxu0 %v1107
    %1123 = vmatprep.subr.bf16.mxu0 0
    %1124 = vmatpush1.bf16.msra.mxu0 %v1108
    %1125 = vmatprep.subr.bf16.mxu0 0
    %1126 = vmatpush1.bf16.msra.mxu0 0
    %1127 = vmatprep.subr.bf16.mxu0 0
    %1128 = vmatpush1.bf16.msra.mxu0 0
    %1129 = vmatprep.subr.bf16.mxu0 0
    %1130 = vmatpush1.bf16.msra.mxu0 0
    %1131 = vmatprep.subr.bf16.mxu0 0
    %1132 = vmatpush1.bf16.msra.mxu0 0
    %1133 = vmatprep.subr.bf16.mxu0 0
    %1134 = vmatpush1.bf16.msra.mxu0 0
    %1135 = vmatprep.subr.bf16.mxu0 0
    %1136 = vmatpush1.bf16.msra.mxu0 0
    %1137 = vmatprep.subr.bf16.mxu0 0
    %1138 = vmatpush1.bf16.msra.mxu0 0
    %1139 = vmatprep.subr.bf16.mxu0 0
    %1140 = vmatpush1.bf16.msra.mxu0 0
    %1141 = vmatprep.subr.bf16.mxu0 0
    %1142 = vmatpush1.bf16.msra.mxu0 0
    %1143 = vmatprep.subr.bf16.mxu0 0
    %1144 = vmatpush1.bf16.msra.mxu0 0
    %1145 = vmatprep.subr.bf16.mxu0 0
    %1146 = vmatpush1.bf16.msra.mxu0 0
    %1147 = vmatprep.subr.bf16.mxu0 0
    %1148 = vmatpush1.bf16.msra.mxu0 0
    %1149 = vmatprep.mubr.bf16.mxu0 0
    %1150 = vmatmul.mubr.bf16.gmra.mrb[0].mxu0 %v1115
    %v1151 = vpop.f32.mrb[0].mxu0
    %v1152 = vadd.f32 %v1088, %v1151
    %v1153 = vpop.f32.mrb[0].mxu0
    %v1154 = vpop.f32.mrb[0].mxu0
    %v1155 = vadd.f32 %v1088, %v1154
    %v1156 = vpop.f32.mrb[0].mxu0
    %1157 = vdwg.mxu0
    %v1158 = vadd.f32 %v1003, %v1152
    %v1159 = vadd.f32 %v1004, %v1155
    %v1160 = vsel %vm144, %v1158, 0.0
    %1161 = vadd.xlane.f32.xlu0 %v1160
    %v1162 = vpop.xlane.xlu0 %1161
    %v1163 = vsel %vm144, %v1159, 0.0
    %1164 = vadd.xlane.f32.xlu0 %v1163
    %v1165 = vpop.xlane.xlu0 %1164
    %v1166 = vmul.f32 %v1162, %v151
    %v1167 = vmul.f32 %v1165, %v151
    %v1168 = vsub.f32 %v1158, %v1166
    %v1169 = vsub.f32 %v1159, %v1167
    %v1170 = vmul.f32 %v1168, %v1168
    %v1171 = vmul.f32 %v1169, %v1169
    %v1172 = vsel %vm144, %v1170, 0.0
    %1173 = vadd.xlane.f32.xlu0 %v1172
    %v1174 = vpop.xlane.xlu0 %1173
    %v1175 = vsel %vm144, %v1171, 0.0
    %1176 = vadd.xlane.f32.xlu0 %v1175
    %v1177 = vpop.xlane.xlu0 %1176
    %v1178 = vmul.f32 %v1174, %v151
    %v1179 = vmul.f32 %v1177, %v151
    %v1180 = vadd.f32 %v1178, 1e-12
    %v1181 = vadd.f32 %v1179, 1e-12
    %v1182 = vrsqrt.pop %v1180
    %v1183 = vrsqrt.pop %v1181
    %v1184 = vmul.f32 %v1168, %v1182
    %v1185 = vmul.f32 %v1169, %v1183
    %v1186 = vlaneseq
    %v1187 = vshrl.u32 %v1186, 7
    %v1188 = vsub.s32 6, %v1187
    %v1189 = vrot.slane %v202, %v1188
    %v1190 = vmul.f32 %v1184, %v1189
    %v1191 = vmul.f32 %v1185, %v1189
    %v1192 = vlaneseq
    %v1193 = vshrl.u32 %v1192, 7
    %v1194 = vsub.s32 7, %v1193
    %v1195 = vrot.slane %v202, %v1194
    %v1196 = vadd.f32 %v1190, %v1195
    %v1197 = vadd.f32 %v1191, %v1195
    %s1198 = scalar_lea.vmem %s3, 48
    %v1199 = vld [vmem:[%s1198] sm:$0xff]
    %v1200 = vld [vmem:[%s1198 + $0x8] sm:$0xf]
    %v1201 = vld [vmem:[%s1198 + $0xc] sm:$0xff]
    %v1202 = vld [vmem:[%s1198 + $0x14] sm:$0xf]
    %v1203 = vld [vmem:[%s1198 + $0x18] sm:$0xff]
    %v1204 = vld [vmem:[%s1198 + $0x20] sm:$0xf]
    %v1205 = vld [vmem:[%s1198 + $0x24] sm:$0xff]
    %v1206 = vld [vmem:[%s1198 + $0x2c] sm:$0xf]
    %s1207 = scalar_lea.vmem %s4, 32
    %v1208 = vld [vmem:[%s1207] sm:$0xf]
    %v1209 = vld [vmem:[%s1207 + $0x4] sm:$0xf]
    %v1210 = vld [vmem:[%s1207 + $0x8] sm:$0xf]
    %v1211 = vld [vmem:[%s1207 + $0xc] sm:$0xf]
    %v1212 = vld [vmem:[%s1207 + $0x10] sm:$0xf]
    %v1213 = vld [vmem:[%s1207 + $0x14] sm:$0xf]
    %v1214 = vld [vmem:[%s1207 + $0x18] sm:$0xf]
    %v1215 = vld [vmem:[%s1207 + $0x1c] sm:$0xf]
    %s1216 = scalar_lea.vmem %s5, 8
    %v1217 = vld [vmem:[%s1216] sm:$0xff]
    %v1218 = vpack.c.bf16 %v1197, %v1196
    %v1219 = vlaneseq
    %v1220 = vshrl.u32 %v1219, 7
    %v1221 = vsub.s32 0, %v1220
    %v1222 = vrot.slane %v1217, %v1221
    %v1227 = vunpack.c.l.b16 %v1199
    %v1228 = vunpack.c.l.b16 %v1201
    %v1229 = vunpack.c.l.b16 %v1203
    %v1230 = vunpack.c.l.b16 %v1205
    %v1231 = vpack.c.b16 %v1228, %v1227
    %v1232 = vpack.c.b16 %v1230, %v1229
    %v1236 = vsel %vm144, %v1218, 0
    %1238 = vmatprep.subr.bf16.mxu0 0
    %1239 = vmatpush1.bf16.msra.mxu0 %v1231
    %1240 = vmatprep.subr.bf16.mxu0 0
    %1241 = vmatpush1.bf16.msra.mxu0 %v1232
    %1242 = vmatprep.subr.bf16.mxu0 0
    %1243 = vmatpush1.bf16.msra.mxu0 0
    %1244 = vmatprep.subr.bf16.mxu0 0
    %1245 = vmatpush1.bf16.msra.mxu0 0
    %1246 = vmatprep.subr.bf16.mxu0 0
    %1247 = vmatpush1.bf16.msra.mxu0 0
    %1248 = vmatprep.subr.bf16.mxu0 0
    %1249 = vmatpush1.bf16.msra.mxu0 0
    %1250 = vmatprep.subr.bf16.mxu0 0
    %1251 = vmatpush1.bf16.msra.mxu0 0
    %1252 = vmatprep.subr.bf16.mxu0 0
    %1253 = vmatpush1.bf16.msra.mxu0 0
    %1254 = vmatprep.subr.bf16.mxu0 0
    %1255 = vmatpush1.bf16.msra.mxu0 0
    %1256 = vmatprep.subr.bf16.mxu0 0
    %1257 = vmatpush1.bf16.msra.mxu0 0
    %1258 = vmatprep.subr.bf16.mxu0 0
    %1259 = vmatpush1.bf16.msra.mxu0 0
    %1260 = vmatprep.subr.bf16.mxu0 0
    %1261 = vmatpush1.bf16.msra.mxu0 0
    %1262 = vmatprep.subr.bf16.mxu0 0
    %1263 = vmatpush1.bf16.msra.mxu0 0
    %1264 = vmatprep.subr.bf16.mxu0 0
    %1265 = vmatpush1.bf16.msra.mxu0 0
    %1266 = vmatprep.subr.bf16.mxu0 0
    %1267 = vmatpush1.bf16.msra.mxu0 0
    %1268 = vmatprep.subr.bf16.mxu0 0
    %1269 = vmatpush1.bf16.msra.mxu0 0
    %1270 = vmatprep.mubr.bf16.mxu0 0
    %1271 = vmatmul.mubr.bf16.gmra.mrb[0].mxu0 %v1236
    %v1272 = vpop.f32.mrb[0].mxu0
    %v1273 = vadd.f32 %v1222, %v1272
    %v1274 = vpop.f32.mrb[0].mxu0
    %v1275 = vpop.f32.mrb[0].mxu0
    %v1276 = vadd.f32 %v1222, %v1275
    %v1277 = vpop.f32.mrb[0].mxu0
    %1278 = vdwg.mxu0
    %v1279 = vmul.f32 %v1273, 0.35355338
    %v1280 = vmul.f32 %v1276, 0.35355338
    %v1281 = vpack.c.bf16 %v1280, %v1279
    %v1282 = vpack.c.bf16 %v1276, %v1273
    %1284 = vrot.lane.b32.xlu0 %v1282, 96
    %v1285 = vpop.permute.xlu0 %1284
    %v1287 = vsel %vm271, %v1281, 0
    %v1290 = vsel %vm271, %v1285, 0
    %1292 = vmatprep.subr.bf16.mxu0 0
    %1293 = vmatpush1.bf16.xpose.msra.mxu0 %v1290
    %1294 = vmatprep.subr.bf16.mxu0 0
    %1295 = vmatpush1.bf16.xpose.msra.mxu0 0
    %1296 = vmatprep.subr.bf16.mxu0 0
    %1297 = vmatpush1.bf16.xpose.msra.mxu0 0
    %1298 = vmatprep.subr.bf16.mxu0 0
    %1299 = vmatpush1.bf16.xpose.msra.mxu0 0
    %1300 = vmatprep.subr.bf16.mxu0 0
    %1301 = vmatpush1.bf16.xpose.msra.mxu0 0
    %1302 = vmatprep.subr.bf16.mxu0 0
    %1303 = vmatpush1.bf16.xpose.msra.mxu0 0
    %1304 = vmatprep.subr.bf16.mxu0 0
    %1305 = vmatpush1.bf16.xpose.msra.mxu0 0
    %1306 = vmatprep.subr.bf16.mxu0 0
    %1307 = vmatpush1.bf16.xpose.msra.mxu0 0
    %1308 = vmatprep.subr.bf16.mxu0 0
    %1309 = vmatpush1.bf16.xpose.msra.mxu0 0
    %1310 = vmatprep.subr.bf16.mxu0 0
    %1311 = vmatpush1.bf16.xpose.msra.mxu0 0
    %1312 = vmatprep.subr.bf16.mxu0 0
    %1313 = vmatpush1.bf16.xpose.msra.mxu0 0
    %1314 = vmatprep.subr.bf16.mxu0 0
    %1315 = vmatpush1.bf16.xpose.msra.mxu0 0
    %1316 = vmatprep.subr.bf16.mxu0 0
    %1317 = vmatpush1.bf16.xpose.msra.mxu0 0
    %1318 = vmatprep.subr.bf16.mxu0 0
    %1319 = vmatpush1.bf16.xpose.msra.mxu0 0
    %1320 = vmatprep.subr.bf16.mxu0 0
    %1321 = vmatpush1.bf16.xpose.msra.mxu0 0
    %1322 = vmatprep.subr.bf16.mxu0 0
    %1323 = vmatpush1.bf16.xpose.msra.mxu0 0
    %1324 = vmatprep.mubr.bf16.mxu0 0
    %1325 = vmatmul.mubr.bf16.gmra.mrb[0].mxu0 %v1287
    %v1326 = vpop.f32.mrb[0].mxu0
    %v1327 = vadd.f32 %v184, %v1326
    %v1328 = vpop.f32.mrb[0].mxu0
    %v1329 = vpop.f32.mrb[0].mxu0
    %v1330 = vadd.f32 %v185, %v1329
    %v1331 = vpop.f32.mrb[0].mxu0
    %1332 = vdwg.mxu0
    %v1333 = vsel %vm319, %v1327, -inf
    %1334 = vmax.xlane.f32.xlu0 %v1333
    %v1335 = vpop.xlane.xlu0 %1334
    %v1336 = vsel %vm319, %v1330, -inf
    %1337 = vmax.xlane.f32.xlu0 %v1336
    %v1338 = vpop.xlane.xlu0 %1337
    %v1339 = vsub.f32 %v1327, %v1335
    %v1340 = vsub.f32 %v1330, %v1338
    %v1341 = vmul.f32 %v1339, 1.442695
    %v1342 = vpow.pop %v1341
    %v1343 = vmul.f32 %v1340, 1.442695
    %v1344 = vpow.pop %v1343
    %v1345 = vsel %vm319, %v1342, 0.0
    %1346 = vadd.xlane.f32.xlu0 %v1345
    %v1347 = vpop.xlane.xlu0 %1346
    %v1348 = vsel %vm319, %v1344, 0.0
    %1349 = vadd.xlane.f32.xlu0 %v1348
    %v1350 = vpop.xlane.xlu0 %1349
    %v1351 = vrcp.pop %v1347
    %v1352 = vrcp.pop %v1350
    %v1353 = vmul.f32 %v1342, %v1351
    %v1354 = vmul.f32 %v1344, %v1352
    %v1355 = vpack.c.bf16 %v1354, %v1353
    %1356 = vrot.lane.b32.xlu0 %v1282, 64
    %v1357 = vpop.permute.xlu0 %1356
    %v1360 = vsel %vm319, %v1355, 0
    %1362 = vmatprep.subr.bf16.mxu0 0
    %1363 = vmatpush1.bf16.msra.mxu0 %v1357
    %1364 = vmatprep.subr.bf16.mxu0 0
    %1365 = vmatpush1.bf16.msra.mxu0 0
    %1366 = vmatprep.subr.bf16.mxu0 0
    %1367 = vmatpush1.bf16.msra.mxu0 0
    %1368 = vmatprep.subr.bf16.mxu0 0
    %1369 = vmatpush1.bf16.msra.mxu0 0
    %1370 = vmatprep.subr.bf16.mxu0 0
    %1371 = vmatpush1.bf16.msra.mxu0 0
    %1372 = vmatprep.subr.bf16.mxu0 0
    %1373 = vmatpush1.bf16.msra.mxu0 0
    %1374 = vmatprep.subr.bf16.mxu0 0
    %1375 = vmatpush1.bf16.msra.mxu0 0
    %1376 = vmatprep.subr.bf16.mxu0 0
    %1377 = vmatpush1.bf16.msra.mxu0 0
    %1378 = vmatprep.subr.bf16.mxu0 0
    %1379 = vmatpush1.bf16.msra.mxu0 0
    %1380 = vmatprep.subr.bf16.mxu0 0
    %1381 = vmatpush1.bf16.msra.mxu0 0
    %1382 = vmatprep.subr.bf16.mxu0 0
    %1383 = vmatpush1.bf16.msra.mxu0 0
    %1384 = vmatprep.subr.bf16.mxu0 0
    %1385 = vmatpush1.bf16.msra.mxu0 0
    %1386 = vmatprep.subr.bf16.mxu0 0
    %1387 = vmatpush1.bf16.msra.mxu0 0
    %1388 = vmatprep.subr.bf16.mxu0 0
    %1389 = vmatpush1.bf16.msra.mxu0 0
    %1390 = vmatprep.subr.bf16.mxu0 0
    %1391 = vmatpush1.bf16.msra.mxu0 0
    %1392 = vmatprep.subr.bf16.mxu0 0
    %1393 = vmatpush1.bf16.msra.mxu0 0
    %1394 = vmatprep.mubr.bf16.mxu0 0
    %1395 = vmatmul.mubr.bf16.gmra.mrb[0].mxu0 %v1360
    %v1396 = vpop.f32.mrb[0].mxu0
    %v1397 = vadd.f32 0.0, %v1396
    %v1398 = vpop.f32.mrb[0].mxu0
    %v1399 = vpop.f32.mrb[0].mxu0
    %v1400 = vadd.f32 0.0, %v1399
    %v1401 = vpop.f32.mrb[0].mxu0
    %1402 = vdwg.mxu0
    %v1403 = vpack.c.bf16 %v1400, %v1397
    %1405 = vrot.lane.b32.xlu0 %v1281, 120
    %v1406 = vpop.permute.xlu0 %1405
    %1407 = vrot.lane.b32.xlu0 %v1282, 88
    %v1408 = vpop.permute.xlu0 %1407
    %v1410 = vsel %vm271, %v1406, 0
    %v1413 = vsel %vm271, %v1408, 0
    %1415 = vmatprep.subr.bf16.mxu0 0
    %1416 = vmatpush1.bf16.xpose.msra.mxu0 %v1413
    %1417 = vmatprep.subr.bf16.mxu0 0
    %1418 = vmatpush1.bf16.xpose.msra.mxu0 0
    %1419 = vmatprep.subr.bf16.mxu0 0
    %1420 = vmatpush1.bf16.xpose.msra.mxu0 0
    %1421 = vmatprep.subr.bf16.mxu0 0
    %1422 = vmatpush1.bf16.xpose.msra.mxu0 0
    %1423 = vmatprep.subr.bf16.mxu0 0
    %1424 = vmatpush1.bf16.xpose.msra.mxu0 0
    %1425 = vmatprep.subr.bf16.mxu0 0
    %1426 = vmatpush1.bf16.xpose.msra.mxu0 0
    %1427 = vmatprep.subr.bf16.mxu0 0
    %1428 = vmatpush1.bf16.xpose.msra.mxu0 0
    %1429 = vmatprep.subr.bf16.mxu0 0
    %1430 = vmatpush1.bf16.xpose.msra.mxu0 0
    %1431 = vmatprep.subr.bf16.mxu0 0
    %1432 = vmatpush1.bf16.xpose.msra.mxu0 0
    %1433 = vmatprep.subr.bf16.mxu0 0
    %1434 = vmatpush1.bf16.xpose.msra.mxu0 0
    %1435 = vmatprep.subr.bf16.mxu0 0
    %1436 = vmatpush1.bf16.xpose.msra.mxu0 0
    %1437 = vmatprep.subr.bf16.mxu0 0
    %1438 = vmatpush1.bf16.xpose.msra.mxu0 0
    %1439 = vmatprep.subr.bf16.mxu0 0
    %1440 = vmatpush1.bf16.xpose.msra.mxu0 0
    %1441 = vmatprep.subr.bf16.mxu0 0
    %1442 = vmatpush1.bf16.xpose.msra.mxu0 0
    %1443 = vmatprep.subr.bf16.mxu0 0
    %1444 = vmatpush1.bf16.xpose.msra.mxu0 0
    %1445 = vmatprep.subr.bf16.mxu0 0
    %1446 = vmatpush1.bf16.xpose.msra.mxu0 0
    %1447 = vmatprep.mubr.bf16.mxu0 0
    %1448 = vmatmul.mubr.bf16.gmra.mrb[0].mxu0 %v1410
    %v1449 = vpop.f32.mrb[0].mxu0
    %v1450 = vadd.f32 %v184, %v1449
    %v1451 = vpop.f32.mrb[0].mxu0
    %v1452 = vpop.f32.mrb[0].mxu0
    %v1453 = vadd.f32 %v185, %v1452
    %v1454 = vpop.f32.mrb[0].mxu0
    %1455 = vdwg.mxu0
    %v1456 = vsel %vm319, %v1450, -inf
    %1457 = vmax.xlane.f32.xlu0 %v1456
    %v1458 = vpop.xlane.xlu0 %1457
    %v1459 = vsel %vm319, %v1453, -inf
    %1460 = vmax.xlane.f32.xlu0 %v1459
    %v1461 = vpop.xlane.xlu0 %1460
    %v1462 = vsub.f32 %v1450, %v1458
    %v1463 = vsub.f32 %v1453, %v1461
    %v1464 = vmul.f32 %v1462, 1.442695
    %v1465 = vpow.pop %v1464
    %v1466 = vmul.f32 %v1463, 1.442695
    %v1467 = vpow.pop %v1466
    %v1468 = vsel %vm319, %v1465, 0.0
    %1469 = vadd.xlane.f32.xlu0 %v1468
    %v1470 = vpop.xlane.xlu0 %1469
    %v1471 = vsel %vm319, %v1467, 0.0
    %1472 = vadd.xlane.f32.xlu0 %v1471
    %v1473 = vpop.xlane.xlu0 %1472
    %v1474 = vrcp.pop %v1470
    %v1475 = vrcp.pop %v1473
    %v1476 = vmul.f32 %v1465, %v1474
    %v1477 = vmul.f32 %v1467, %v1475
    %v1478 = vpack.c.bf16 %v1477, %v1476
    %1479 = vrot.lane.b32.xlu0 %v1282, 56
    %v1480 = vpop.permute.xlu0 %1479
    %v1483 = vsel %vm319, %v1478, 0
    %1485 = vmatprep.subr.bf16.mxu0 0
    %1486 = vmatpush1.bf16.msra.mxu0 %v1480
    %1487 = vmatprep.subr.bf16.mxu0 0
    %1488 = vmatpush1.bf16.msra.mxu0 0
    %1489 = vmatprep.subr.bf16.mxu0 0
    %1490 = vmatpush1.bf16.msra.mxu0 0
    %1491 = vmatprep.subr.bf16.mxu0 0
    %1492 = vmatpush1.bf16.msra.mxu0 0
    %1493 = vmatprep.subr.bf16.mxu0 0
    %1494 = vmatpush1.bf16.msra.mxu0 0
    %1495 = vmatprep.subr.bf16.mxu0 0
    %1496 = vmatpush1.bf16.msra.mxu0 0
    %1497 = vmatprep.subr.bf16.mxu0 0
    %1498 = vmatpush1.bf16.msra.mxu0 0
    %1499 = vmatprep.subr.bf16.mxu0 0
    %1500 = vmatpush1.bf16.msra.mxu0 0
    %1501 = vmatprep.subr.bf16.mxu0 0
    %1502 = vmatpush1.bf16.msra.mxu0 0
    %1503 = vmatprep.subr.bf16.mxu0 0
    %1504 = vmatpush1.bf16.msra.mxu0 0
    %1505 = vmatprep.subr.bf16.mxu0 0
    %1506 = vmatpush1.bf16.msra.mxu0 0
    %1507 = vmatprep.subr.bf16.mxu0 0
    %1508 = vmatpush1.bf16.msra.mxu0 0
    %1509 = vmatprep.subr.bf16.mxu0 0
    %1510 = vmatpush1.bf16.msra.mxu0 0
    %1511 = vmatprep.subr.bf16.mxu0 0
    %1512 = vmatpush1.bf16.msra.mxu0 0
    %1513 = vmatprep.subr.bf16.mxu0 0
    %1514 = vmatpush1.bf16.msra.mxu0 0
    %1515 = vmatprep.subr.bf16.mxu0 0
    %1516 = vmatpush1.bf16.msra.mxu0 0
    %1517 = vmatprep.mubr.bf16.mxu0 0
    %1518 = vmatmul.mubr.bf16.gmra.mrb[0].mxu0 %v1483
    %v1519 = vpop.f32.mrb[0].mxu0
    %v1520 = vadd.f32 0.0, %v1519
    %v1521 = vpop.f32.mrb[0].mxu0
    %v1522 = vpop.f32.mrb[0].mxu0
    %v1523 = vadd.f32 0.0, %v1522
    %v1524 = vpop.f32.mrb[0].mxu0
    %1525 = vdwg.mxu0
    %v1526 = vpack.c.bf16 %v1523, %v1520
    %v1527 = vunpack.c.h.b16 %v1201
    %v1528 = vpack.c.b16 %v1527, %v1527
    %v1530 = vsel %vm271, %v1526, 0
    %v1533 = vsel %vm519, %v1528, 0
    %1535 = vmatprep.subr.bf16.mxu0 0
    %1536 = vmatpush1.bf16.msra.mxu0 %v1533
    %1537 = vmatprep.subr.bf16.mxu0 0
    %1538 = vmatpush1.bf16.msra.mxu0 0
    %1539 = vmatprep.subr.bf16.mxu0 0
    %1540 = vmatpush1.bf16.msra.mxu0 0
    %1541 = vmatprep.subr.bf16.mxu0 0
    %1542 = vmatpush1.bf16.msra.mxu0 0
    %1543 = vmatprep.subr.bf16.mxu0 0
    %1544 = vmatpush1.bf16.msra.mxu0 0
    %1545 = vmatprep.subr.bf16.mxu0 0
    %1546 = vmatpush1.bf16.msra.mxu0 0
    %1547 = vmatprep.subr.bf16.mxu0 0
    %1548 = vmatpush1.bf16.msra.mxu0 0
    %1549 = vmatprep.subr.bf16.mxu0 0
    %1550 = vmatpush1.bf16.msra.mxu0 0
    %1551 = vmatprep.subr.bf16.mxu0 0
    %1552 = vmatpush1.bf16.msra.mxu0 0
    %1553 = vmatprep.subr.bf16.mxu0 0
    %1554 = vmatpush1.bf16.msra.mxu0 0
    %1555 = vmatprep.subr.bf16.mxu0 0
    %1556 = vmatpush1.bf16.msra.mxu0 0
    %1557 = vmatprep.subr.bf16.mxu0 0
    %1558 = vmatpush1.bf16.msra.mxu0 0
    %1559 = vmatprep.subr.bf16.mxu0 0
    %1560 = vmatpush1.bf16.msra.mxu0 0
    %1561 = vmatprep.subr.bf16.mxu0 0
    %1562 = vmatpush1.bf16.msra.mxu0 0
    %1563 = vmatprep.subr.bf16.mxu0 0
    %1564 = vmatpush1.bf16.msra.mxu0 0
    %1565 = vmatprep.subr.bf16.mxu0 0
    %1566 = vmatpush1.bf16.msra.mxu0 0
    %1567 = vmatprep.mubr.bf16.mxu0 0
    %1568 = vmatmul.mubr.bf16.gmra.mrb[0].mxu0 %v1530
    %v1569 = vpop.f32.mrb[0].mxu0
    %v1570 = vadd.f32 0.0, %v1569
    %v1571 = vpop.f32.mrb[0].mxu0
    %v1572 = vpop.f32.mrb[0].mxu0
    %v1573 = vadd.f32 0.0, %v1572
    %v1574 = vpop.f32.mrb[0].mxu0
    %1575 = vdwg.mxu0
    %v1576 = vunpack.c.h.b16 %v1199
    %v1577 = vpack.c.b16 %v1576, %v1576
    %v1579 = vsel %vm271, %v1403, 0
    %v1582 = vsel %vm519, %v1577, 0
    %1584 = vmatprep.subr.bf16.mxu0 0
    %1585 = vmatpush1.bf16.msra.mxu0 %v1582
    %1586 = vmatprep.subr.bf16.mxu0 0
    %1587 = vmatpush1.bf16.msra.mxu0 0
    %1588 = vmatprep.subr.bf16.mxu0 0
    %1589 = vmatpush1.bf16.msra.mxu0 0
    %1590 = vmatprep.subr.bf16.mxu0 0
    %1591 = vmatpush1.bf16.msra.mxu0 0
    %1592 = vmatprep.subr.bf16.mxu0 0
    %1593 = vmatpush1.bf16.msra.mxu0 0
    %1594 = vmatprep.subr.bf16.mxu0 0
    %1595 = vmatpush1.bf16.msra.mxu0 0
    %1596 = vmatprep.subr.bf16.mxu0 0
    %1597 = vmatpush1.bf16.msra.mxu0 0
    %1598 = vmatprep.subr.bf16.mxu0 0
    %1599 = vmatpush1.bf16.msra.mxu0 0
    %1600 = vmatprep.subr.bf16.mxu0 0
    %1601 = vmatpush1.bf16.msra.mxu0 0
    %1602 = vmatprep.subr.bf16.mxu0 0
    %1603 = vmatpush1.bf16.msra.mxu0 0
    %1604 = vmatprep.subr.bf16.mxu0 0
    %1605 = vmatpush1.bf16.msra.mxu0 0
    %1606 = vmatprep.subr.bf16.mxu0 0
    %1607 = vmatpush1.bf16.msra.mxu0 0
    %1608 = vmatprep.subr.bf16.mxu0 0
    %1609 = vmatpush1.bf16.msra.mxu0 0
    %1610 = vmatprep.subr.bf16.mxu0 0
    %1611 = vmatpush1.bf16.msra.mxu0 0
    %1612 = vmatprep.subr.bf16.mxu0 0
    %1613 = vmatpush1.bf16.msra.mxu0 0
    %1614 = vmatprep.subr.bf16.mxu0 0
    %1615 = vmatpush1.bf16.msra.mxu0 0
    %1616 = vmatprep.mubr.bf16.mxu0 0
    %1617 = vmatmul.mubr.bf16.gmra.mrb[0].mxu0 %v1579
    %v1618 = vpop.f32.mrb[0].mxu0
    %v1619 = vadd.f32 %v1570, %v1618
    %v1620 = vpop.f32.mrb[0].mxu0
    %v1621 = vpop.f32.mrb[0].mxu0
    %v1622 = vadd.f32 %v1573, %v1621
    %v1623 = vpop.f32.mrb[0].mxu0
    %1624 = vdwg.mxu0
    %1625 = vrot.lane.b32.xlu0 %v1281, 112
    %v1626 = vpop.permute.xlu0 %1625
    %1627 = vrot.lane.b32.xlu0 %v1282, 80
    %v1628 = vpop.permute.xlu0 %1627
    %v1630 = vsel %vm271, %v1626, 0
    %v1633 = vsel %vm271, %v1628, 0
    %1635 = vmatprep.subr.bf16.mxu0 0
    %1636 = vmatpush1.bf16.xpose.msra.mxu0 %v1633
    %1637 = vmatprep.subr.bf16.mxu0 0
    %1638 = vmatpush1.bf16.xpose.msra.mxu0 0
    %1639 = vmatprep.subr.bf16.mxu0 0
    %1640 = vmatpush1.bf16.xpose.msra.mxu0 0
    %1641 = vmatprep.subr.bf16.mxu0 0
    %1642 = vmatpush1.bf16.xpose.msra.mxu0 0
    %1643 = vmatprep.subr.bf16.mxu0 0
    %1644 = vmatpush1.bf16.xpose.msra.mxu0 0
    %1645 = vmatprep.subr.bf16.mxu0 0
    %1646 = vmatpush1.bf16.xpose.msra.mxu0 0
    %1647 = vmatprep.subr.bf16.mxu0 0
    %1648 = vmatpush1.bf16.xpose.msra.mxu0 0
    %1649 = vmatprep.subr.bf16.mxu0 0
    %1650 = vmatpush1.bf16.xpose.msra.mxu0 0
    %1651 = vmatprep.subr.bf16.mxu0 0
    %1652 = vmatpush1.bf16.xpose.msra.mxu0 0
    %1653 = vmatprep.subr.bf16.mxu0 0
    %1654 = vmatpush1.bf16.xpose.msra.mxu0 0
    %1655 = vmatprep.subr.bf16.mxu0 0
    %1656 = vmatpush1.bf16.xpose.msra.mxu0 0
    %1657 = vmatprep.subr.bf16.mxu0 0
    %1658 = vmatpush1.bf16.xpose.msra.mxu0 0
    %1659 = vmatprep.subr.bf16.mxu0 0
    %1660 = vmatpush1.bf16.xpose.msra.mxu0 0
    %1661 = vmatprep.subr.bf16.mxu0 0
    %1662 = vmatpush1.bf16.xpose.msra.mxu0 0
    %1663 = vmatprep.subr.bf16.mxu0 0
    %1664 = vmatpush1.bf16.xpose.msra.mxu0 0
    %1665 = vmatprep.subr.bf16.mxu0 0
    %1666 = vmatpush1.bf16.xpose.msra.mxu0 0
    %1667 = vmatprep.mubr.bf16.mxu0 0
    %1668 = vmatmul.mubr.bf16.gmra.mrb[0].mxu0 %v1630
    %v1669 = vpop.f32.mrb[0].mxu0
    %v1670 = vadd.f32 %v184, %v1669
    %v1671 = vpop.f32.mrb[0].mxu0
    %v1672 = vpop.f32.mrb[0].mxu0
    %v1673 = vadd.f32 %v185, %v1672
    %v1674 = vpop.f32.mrb[0].mxu0
    %1675 = vdwg.mxu0
    %v1676 = vsel %vm319, %v1670, -inf
    %1677 = vmax.xlane.f32.xlu0 %v1676
    %v1678 = vpop.xlane.xlu0 %1677
    %v1679 = vsel %vm319, %v1673, -inf
    %1680 = vmax.xlane.f32.xlu0 %v1679
    %v1681 = vpop.xlane.xlu0 %1680
    %v1682 = vsub.f32 %v1670, %v1678
    %v1683 = vsub.f32 %v1673, %v1681
    %v1684 = vmul.f32 %v1682, 1.442695
    %v1685 = vpow.pop %v1684
    %v1686 = vmul.f32 %v1683, 1.442695
    %v1687 = vpow.pop %v1686
    %v1688 = vsel %vm319, %v1685, 0.0
    %1689 = vadd.xlane.f32.xlu0 %v1688
    %v1690 = vpop.xlane.xlu0 %1689
    %v1691 = vsel %vm319, %v1687, 0.0
    %1692 = vadd.xlane.f32.xlu0 %v1691
    %v1693 = vpop.xlane.xlu0 %1692
    %v1694 = vrcp.pop %v1690
    %v1695 = vrcp.pop %v1693
    %v1696 = vmul.f32 %v1685, %v1694
    %v1697 = vmul.f32 %v1687, %v1695
    %v1698 = vpack.c.bf16 %v1697, %v1696
    %1699 = vrot.lane.b32.xlu0 %v1282, 48
    %v1700 = vpop.permute.xlu0 %1699
    %v1703 = vsel %vm319, %v1698, 0
    %1705 = vmatprep.subr.bf16.mxu0 0
    %1706 = vmatpush1.bf16.msra.mxu0 %v1700
    %1707 = vmatprep.subr.bf16.mxu0 0
    %1708 = vmatpush1.bf16.msra.mxu0 0
    %1709 = vmatprep.subr.bf16.mxu0 0
    %1710 = vmatpush1.bf16.msra.mxu0 0
    %1711 = vmatprep.subr.bf16.mxu0 0
    %1712 = vmatpush1.bf16.msra.mxu0 0
    %1713 = vmatprep.subr.bf16.mxu0 0
    %1714 = vmatpush1.bf16.msra.mxu0 0
    %1715 = vmatprep.subr.bf16.mxu0 0
    %1716 = vmatpush1.bf16.msra.mxu0 0
    %1717 = vmatprep.subr.bf16.mxu0 0
    %1718 = vmatpush1.bf16.msra.mxu0 0
    %1719 = vmatprep.subr.bf16.mxu0 0
    %1720 = vmatpush1.bf16.msra.mxu0 0
    %1721 = vmatprep.subr.bf16.mxu0 0
    %1722 = vmatpush1.bf16.msra.mxu0 0
    %1723 = vmatprep.subr.bf16.mxu0 0
    %1724 = vmatpush1.bf16.msra.mxu0 0
    %1725 = vmatprep.subr.bf16.mxu0 0
    %1726 = vmatpush1.bf16.msra.mxu0 0
    %1727 = vmatprep.subr.bf16.mxu0 0
    %1728 = vmatpush1.bf16.msra.mxu0 0
    %1729 = vmatprep.subr.bf16.mxu0 0
    %1730 = vmatpush1.bf16.msra.mxu0 0
    %1731 = vmatprep.subr.bf16.mxu0 0
    %1732 = vmatpush1.bf16.msra.mxu0 0
    %1733 = vmatprep.subr.bf16.mxu0 0
    %1734 = vmatpush1.bf16.msra.mxu0 0
    %1735 = vmatprep.subr.bf16.mxu0 0
    %1736 = vmatpush1.bf16.msra.mxu0 0
    %1737 = vmatprep.mubr.bf16.mxu0 0
    %1738 = vmatmul.mubr.bf16.gmra.mrb[0].mxu0 %v1703
    %v1739 = vpop.f32.mrb[0].mxu0
    %v1740 = vadd.f32 0.0, %v1739
    %v1741 = vpop.f32.mrb[0].mxu0
    %v1742 = vpop.f32.mrb[0].mxu0
    %v1743 = vadd.f32 0.0, %v1742
    %v1744 = vpop.f32.mrb[0].mxu0
    %1745 = vdwg.mxu0
    %v1746 = vpack.c.bf16 %v1743, %v1740
    %v1747 = vunpack.c.h.b16 %v1203
    %v1748 = vpack.c.b16 %v1747, %v1747
    %v1750 = vsel %vm271, %v1746, 0
    %v1753 = vsel %vm519, %v1748, 0
    %1755 = vmatprep.subr.bf16.mxu0 0
    %1756 = vmatpush1.bf16.msra.mxu0 %v1753
    %1757 = vmatprep.subr.bf16.mxu0 0
    %1758 = vmatpush1.bf16.msra.mxu0 0
    %1759 = vmatprep.subr.bf16.mxu0 0
    %1760 = vmatpush1.bf16.msra.mxu0 0
    %1761 = vmatprep.subr.bf16.mxu0 0
    %1762 = vmatpush1.bf16.msra.mxu0 0
    %1763 = vmatprep.subr.bf16.mxu0 0
    %1764 = vmatpush1.bf16.msra.mxu0 0
    %1765 = vmatprep.subr.bf16.mxu0 0
    %1766 = vmatpush1.bf16.msra.mxu0 0
    %1767 = vmatprep.subr.bf16.mxu0 0
    %1768 = vmatpush1.bf16.msra.mxu0 0
    %1769 = vmatprep.subr.bf16.mxu0 0
    %1770 = vmatpush1.bf16.msra.mxu0 0
    %1771 = vmatprep.subr.bf16.mxu0 0
    %1772 = vmatpush1.bf16.msra.mxu0 0
    %1773 = vmatprep.subr.bf16.mxu0 0
    %1774 = vmatpush1.bf16.msra.mxu0 0
    %1775 = vmatprep.subr.bf16.mxu0 0
    %1776 = vmatpush1.bf16.msra.mxu0 0
    %1777 = vmatprep.subr.bf16.mxu0 0
    %1778 = vmatpush1.bf16.msra.mxu0 0
    %1779 = vmatprep.subr.bf16.mxu0 0
    %1780 = vmatpush1.bf16.msra.mxu0 0
    %1781 = vmatprep.subr.bf16.mxu0 0
    %1782 = vmatpush1.bf16.msra.mxu0 0
    %1783 = vmatprep.subr.bf16.mxu0 0
    %1784 = vmatpush1.bf16.msra.mxu0 0
    %1785 = vmatprep.subr.bf16.mxu0 0
    %1786 = vmatpush1.bf16.msra.mxu0 0
    %1787 = vmatprep.mubr.bf16.mxu0 0
    %1788 = vmatmul.mubr.bf16.gmra.mrb[0].mxu0 %v1750
    %v1789 = vpop.f32.mrb[0].mxu0
    %v1790 = vadd.f32 0.0, %v1789
    %v1791 = vpop.f32.mrb[0].mxu0
    %v1792 = vpop.f32.mrb[0].mxu0
    %v1793 = vadd.f32 0.0, %v1792
    %v1794 = vpop.f32.mrb[0].mxu0
    %1795 = vdwg.mxu0
    %v1796 = vadd.f32 %v1619, %v1790
    %v1797 = vadd.f32 %v1622, %v1793
    %1798 = vrot.lane.b32.xlu0 %v1281, 104
    %v1799 = vpop.permute.xlu0 %1798
    %1800 = vrot.lane.b32.xlu0 %v1282, 72
    %v1801 = vpop.permute.xlu0 %1800
    %v1803 = vsel %vm271, %v1799, 0
    %v1806 = vsel %vm271, %v1801, 0
    %1808 = vmatprep.subr.bf16.mxu0 0
    %1809 = vmatpush1.bf16.xpose.msra.mxu0 %v1806
    %1810 = vmatprep.subr.bf16.mxu0 0
    %1811 = vmatpush1.bf16.xpose.msra.mxu0 0
    %1812 = vmatprep.subr.bf16.mxu0 0
    %1813 = vmatpush1.bf16.xpose.msra.mxu0 0
    %1814 = vmatprep.subr.bf16.mxu0 0
    %1815 = vmatpush1.bf16.xpose.msra.mxu0 0
    %1816 = vmatprep.subr.bf16.mxu0 0
    %1817 = vmatpush1.bf16.xpose.msra.mxu0 0
    %1818 = vmatprep.subr.bf16.mxu0 0
    %1819 = vmatpush1.bf16.xpose.msra.mxu0 0
    %1820 = vmatprep.subr.bf16.mxu0 0
    %1821 = vmatpush1.bf16.xpose.msra.mxu0 0
    %1822 = vmatprep.subr.bf16.mxu0 0
    %1823 = vmatpush1.bf16.xpose.msra.mxu0 0
    %1824 = vmatprep.subr.bf16.mxu0 0
    %1825 = vmatpush1.bf16.xpose.msra.mxu0 0
    %1826 = vmatprep.subr.bf16.mxu0 0
    %1827 = vmatpush1.bf16.xpose.msra.mxu0 0
    %1828 = vmatprep.subr.bf16.mxu0 0
    %1829 = vmatpush1.bf16.xpose.msra.mxu0 0
    %1830 = vmatprep.subr.bf16.mxu0 0
    %1831 = vmatpush1.bf16.xpose.msra.mxu0 0
    %1832 = vmatprep.subr.bf16.mxu0 0
    %1833 = vmatpush1.bf16.xpose.msra.mxu0 0
    %1834 = vmatprep.subr.bf16.mxu0 0
    %1835 = vmatpush1.bf16.xpose.msra.mxu0 0
    %1836 = vmatprep.subr.bf16.mxu0 0
    %1837 = vmatpush1.bf16.xpose.msra.mxu0 0
    %1838 = vmatprep.subr.bf16.mxu0 0
    %1839 = vmatpush1.bf16.xpose.msra.mxu0 0
    %1840 = vmatprep.mubr.bf16.mxu0 0
    %1841 = vmatmul.mubr.bf16.gmra.mrb[0].mxu0 %v1803
    %v1842 = vpop.f32.mrb[0].mxu0
    %v1843 = vadd.f32 %v184, %v1842
    %v1844 = vpop.f32.mrb[0].mxu0
    %v1845 = vpop.f32.mrb[0].mxu0
    %v1846 = vadd.f32 %v185, %v1845
    %v1847 = vpop.f32.mrb[0].mxu0
    %1848 = vdwg.mxu0
    %v1849 = vsel %vm319, %v1843, -inf
    %1850 = vmax.xlane.f32.xlu0 %v1849
    %v1851 = vpop.xlane.xlu0 %1850
    %v1852 = vsel %vm319, %v1846, -inf
    %1853 = vmax.xlane.f32.xlu0 %v1852
    %v1854 = vpop.xlane.xlu0 %1853
    %v1855 = vsub.f32 %v1843, %v1851
    %v1856 = vsub.f32 %v1846, %v1854
    %v1857 = vmul.f32 %v1855, 1.442695
    %v1858 = vpow.pop %v1857
    %v1859 = vmul.f32 %v1856, 1.442695
    %v1860 = vpow.pop %v1859
    %v1861 = vsel %vm319, %v1858, 0.0
    %1862 = vadd.xlane.f32.xlu0 %v1861
    %v1863 = vpop.xlane.xlu0 %1862
    %v1864 = vsel %vm319, %v1860, 0.0
    %1865 = vadd.xlane.f32.xlu0 %v1864
    %v1866 = vpop.xlane.xlu0 %1865
    %v1867 = vrcp.pop %v1863
    %v1868 = vrcp.pop %v1866
    %v1869 = vmul.f32 %v1858, %v1867
    %v1870 = vmul.f32 %v1860, %v1868
    %v1871 = vpack.c.bf16 %v1870, %v1869
    %1872 = vrot.lane.b32.xlu0 %v1282, 40
    %v1873 = vpop.permute.xlu0 %1872
    %v1876 = vsel %vm319, %v1871, 0
    %1878 = vmatprep.subr.bf16.mxu0 0
    %1879 = vmatpush1.bf16.msra.mxu0 %v1873
    %1880 = vmatprep.subr.bf16.mxu0 0
    %1881 = vmatpush1.bf16.msra.mxu0 0
    %1882 = vmatprep.subr.bf16.mxu0 0
    %1883 = vmatpush1.bf16.msra.mxu0 0
    %1884 = vmatprep.subr.bf16.mxu0 0
    %1885 = vmatpush1.bf16.msra.mxu0 0
    %1886 = vmatprep.subr.bf16.mxu0 0
    %1887 = vmatpush1.bf16.msra.mxu0 0
    %1888 = vmatprep.subr.bf16.mxu0 0
    %1889 = vmatpush1.bf16.msra.mxu0 0
    %1890 = vmatprep.subr.bf16.mxu0 0
    %1891 = vmatpush1.bf16.msra.mxu0 0
    %1892 = vmatprep.subr.bf16.mxu0 0
    %1893 = vmatpush1.bf16.msra.mxu0 0
    %1894 = vmatprep.subr.bf16.mxu0 0
    %1895 = vmatpush1.bf16.msra.mxu0 0
    %1896 = vmatprep.subr.bf16.mxu0 0
    %1897 = vmatpush1.bf16.msra.mxu0 0
    %1898 = vmatprep.subr.bf16.mxu0 0
    %1899 = vmatpush1.bf16.msra.mxu0 0
    %1900 = vmatprep.subr.bf16.mxu0 0
    %1901 = vmatpush1.bf16.msra.mxu0 0
    %1902 = vmatprep.subr.bf16.mxu0 0
    %1903 = vmatpush1.bf16.msra.mxu0 0
    %1904 = vmatprep.subr.bf16.mxu0 0
    %1905 = vmatpush1.bf16.msra.mxu0 0
    %1906 = vmatprep.subr.bf16.mxu0 0
    %1907 = vmatpush1.bf16.msra.mxu0 0
    %1908 = vmatprep.subr.bf16.mxu0 0
    %1909 = vmatpush1.bf16.msra.mxu0 0
    %1910 = vmatprep.mubr.bf16.mxu0 0
    %1911 = vmatmul.mubr.bf16.gmra.mrb[0].mxu0 %v1876
    %v1912 = vpop.f32.mrb[0].mxu0
    %v1913 = vadd.f32 0.0, %v1912
    %v1914 = vpop.f32.mrb[0].mxu0
    %v1915 = vpop.f32.mrb[0].mxu0
    %v1916 = vadd.f32 0.0, %v1915
    %v1917 = vpop.f32.mrb[0].mxu0
    %1918 = vdwg.mxu0
    %v1919 = vpack.c.bf16 %v1916, %v1913
    %v1920 = vunpack.c.h.b16 %v1205
    %v1921 = vpack.c.b16 %v1920, %v1920
    %v1923 = vsel %vm271, %v1919, 0
    %v1926 = vsel %vm519, %v1921, 0
    %1928 = vmatprep.subr.bf16.mxu0 0
    %1929 = vmatpush1.bf16.msra.mxu0 %v1926
    %1930 = vmatprep.subr.bf16.mxu0 0
    %1931 = vmatpush1.bf16.msra.mxu0 0
    %1932 = vmatprep.subr.bf16.mxu0 0
    %1933 = vmatpush1.bf16.msra.mxu0 0
    %1934 = vmatprep.subr.bf16.mxu0 0
    %1935 = vmatpush1.bf16.msra.mxu0 0
    %1936 = vmatprep.subr.bf16.mxu0 0
    %1937 = vmatpush1.bf16.msra.mxu0 0
    %1938 = vmatprep.subr.bf16.mxu0 0
    %1939 = vmatpush1.bf16.msra.mxu0 0
    %1940 = vmatprep.subr.bf16.mxu0 0
    %1941 = vmatpush1.bf16.msra.mxu0 0
    %1942 = vmatprep.subr.bf16.mxu0 0
    %1943 = vmatpush1.bf16.msra.mxu0 0
    %1944 = vmatprep.subr.bf16.mxu0 0
    %1945 = vmatpush1.bf16.msra.mxu0 0
    %1946 = vmatprep.subr.bf16.mxu0 0
    %1947 = vmatpush1.bf16.msra.mxu0 0
    %1948 = vmatprep.subr.bf16.mxu0 0
    %1949 = vmatpush1.bf16.msra.mxu0 0
    %1950 = vmatprep.subr.bf16.mxu0 0
    %1951 = vmatpush1.bf16.msra.mxu0 0
    %1952 = vmatprep.subr.bf16.mxu0 0
    %1953 = vmatpush1.bf16.msra.mxu0 0
    %1954 = vmatprep.subr.bf16.mxu0 0
    %1955 = vmatpush1.bf16.msra.mxu0 0
    %1956 = vmatprep.subr.bf16.mxu0 0
    %1957 = vmatpush1.bf16.msra.mxu0 0
    %1958 = vmatprep.subr.bf16.mxu0 0
    %1959 = vmatpush1.bf16.msra.mxu0 0
    %1960 = vmatprep.mubr.bf16.mxu0 0
    %1961 = vmatmul.mubr.bf16.gmra.mrb[0].mxu0 %v1923
    %v1962 = vpop.f32.mrb[0].mxu0
    %v1963 = vadd.f32 0.0, %v1962
    %v1964 = vpop.f32.mrb[0].mxu0
    %v1965 = vpop.f32.mrb[0].mxu0
    %v1966 = vadd.f32 0.0, %v1965
    %v1967 = vpop.f32.mrb[0].mxu0
    %1968 = vdwg.mxu0
    %v1969 = vadd.f32 %v1796, %v1963
    %v1970 = vadd.f32 %v1797, %v1966
    %v1971 = vadd.f32 %v1196, %v1969
    %v1972 = vadd.f32 %v1197, %v1970
    %v1973 = vlaneseq
    %v1974 = vshrl.u32 %v1973, 7
    %v1975 = vsub.s32 1, %v1974
    %v1976 = vrot.slane %v1217, %v1975
    %v1977 = vadd.f32 %v1971, %v1976
    %v1978 = vadd.f32 %v1972, %v1976
    %v1979 = vsel %vm144, %v1977, 0.0
    %1980 = vadd.xlane.f32.xlu0 %v1979
    %v1981 = vpop.xlane.xlu0 %1980
    %v1982 = vsel %vm144, %v1978, 0.0
    %1983 = vadd.xlane.f32.xlu0 %v1982
    %v1984 = vpop.xlane.xlu0 %1983
    %v1985 = vmul.f32 %v1981, %v151
    %v1986 = vmul.f32 %v1984, %v151
    %v1987 = vsub.f32 %v1977, %v1985
    %v1988 = vsub.f32 %v1978, %v1986
    %v1989 = vmul.f32 %v1987, %v1987
    %v1990 = vmul.f32 %v1988, %v1988
    %v1991 = vsel %vm144, %v1989, 0.0
    %1992 = vadd.xlane.f32.xlu0 %v1991
    %v1993 = vpop.xlane.xlu0 %1992
    %v1994 = vsel %vm144, %v1990, 0.0
    %1995 = vadd.xlane.f32.xlu0 %v1994
    %v1996 = vpop.xlane.xlu0 %1995
    %v1997 = vmul.f32 %v1993, %v151
    %v1998 = vmul.f32 %v1996, %v151
    %v1999 = vadd.f32 %v1997, 1e-12
    %v2000 = vadd.f32 %v1998, 1e-12
    %v2001 = vrsqrt.pop %v1999
    %v2002 = vrsqrt.pop %v2000
    %v2003 = vmul.f32 %v1987, %v2001
    %v2004 = vmul.f32 %v1988, %v2002
    %v2005 = vlaneseq
    %v2006 = vshrl.u32 %v2005, 7
    %v2007 = vsub.s32 2, %v2006
    %v2008 = vrot.slane %v1217, %v2007
    %v2009 = vmul.f32 %v2003, %v2008
    %v2010 = vmul.f32 %v2004, %v2008
    %v2011 = vlaneseq
    %v2012 = vshrl.u32 %v2011, 7
    %v2013 = vsub.s32 3, %v2012
    %v2014 = vrot.slane %v1217, %v2013
    %v2015 = vadd.f32 %v2009, %v2014
    %v2016 = vadd.f32 %v2010, %v2014
    %v2017 = vpack.c.bf16 %v2016, %v2015
    %v2018 = vlaneseq
    %v2019 = vshrl.u32 %v2018, 7
    %v2020 = vsub.s32 4, %v2019
    %v2021 = vrot.slane %v1217, %v2020
    %v2026 = vunpack.c.l.b16 %v1200
    %v2027 = vunpack.c.l.b16 %v1202
    %v2028 = vunpack.c.l.b16 %v1204
    %v2029 = vunpack.c.l.b16 %v1206
    %v2030 = vpack.c.b16 %v2027, %v2026
    %v2031 = vpack.c.b16 %v2029, %v2028
    %v2035 = vsel %vm144, %v2017, 0
    %2037 = vmatprep.subr.bf16.mxu0 0
    %2038 = vmatpush1.bf16.msra.mxu0 %v2030
    %2039 = vmatprep.subr.bf16.mxu0 0
    %2040 = vmatpush1.bf16.msra.mxu0 %v2031
    %2041 = vmatprep.subr.bf16.mxu0 0
    %2042 = vmatpush1.bf16.msra.mxu0 0
    %2043 = vmatprep.subr.bf16.mxu0 0
    %2044 = vmatpush1.bf16.msra.mxu0 0
    %2045 = vmatprep.subr.bf16.mxu0 0
    %2046 = vmatpush1.bf16.msra.mxu0 0
    %2047 = vmatprep.subr.bf16.mxu0 0
    %2048 = vmatpush1.bf16.msra.mxu0 0
    %2049 = vmatprep.subr.bf16.mxu0 0
    %2050 = vmatpush1.bf16.msra.mxu0 0
    %2051 = vmatprep.subr.bf16.mxu0 0
    %2052 = vmatpush1.bf16.msra.mxu0 0
    %2053 = vmatprep.subr.bf16.mxu0 0
    %2054 = vmatpush1.bf16.msra.mxu0 0
    %2055 = vmatprep.subr.bf16.mxu0 0
    %2056 = vmatpush1.bf16.msra.mxu0 0
    %2057 = vmatprep.subr.bf16.mxu0 0
    %2058 = vmatpush1.bf16.msra.mxu0 0
    %2059 = vmatprep.subr.bf16.mxu0 0
    %2060 = vmatpush1.bf16.msra.mxu0 0
    %2061 = vmatprep.subr.bf16.mxu0 0
    %2062 = vmatpush1.bf16.msra.mxu0 0
    %2063 = vmatprep.subr.bf16.mxu0 0
    %2064 = vmatpush1.bf16.msra.mxu0 0
    %2065 = vmatprep.subr.bf16.mxu0 0
    %2066 = vmatpush1.bf16.msra.mxu0 0
    %2067 = vmatprep.subr.bf16.mxu0 0
    %2068 = vmatpush1.bf16.msra.mxu0 0
    %2069 = vmatprep.mubr.bf16.mxu0 0
    %2070 = vmatmul.mubr.bf16.gmra.mrb[0].mxu0 %v2035
    %v2071 = vpop.f32.mrb[0].mxu0
    %v2072 = vadd.f32 %v2021, %v2071
    %v2073 = vpop.f32.mrb[0].mxu0
    %v2074 = vpop.f32.mrb[0].mxu0
    %v2075 = vadd.f32 %v2021, %v2074
    %v2076 = vpop.f32.mrb[0].mxu0
    %2077 = vdwg.mxu0
    %v2078 = vmul.f32 %v2072, 0.5
    %v2079 = vmul.f32 %v2075, 0.5
    %v2080 = vmul.f32 %v2072, 0.044715
    %v2081 = vmul.f32 %v2075, 0.044715
    %v2082 = vmul.f32 %v2080, %v2072
    %v2083 = vmul.f32 %v2081, %v2075
    %v2084 = vmul.f32 %v2082, %v2072
    %v2085 = vmul.f32 %v2083, %v2075
    %v2086 = vadd.f32 %v2072, %v2084
    %v2087 = vadd.f32 %v2075, %v2085
    %v2088 = vmul.f32 %v2086, 0.7978846
    %v2089 = vmul.f32 %v2087, 0.7978846
    %v2090 = vtanh.pop %v2088
    %v2091 = vtanh.pop %v2089
    %v2092 = vadd.f32 %v2090, 1.0
    %v2093 = vadd.f32 %v2091, 1.0
    %v2094 = vmul.f32 %v2078, %v2092
    %v2095 = vmul.f32 %v2079, %v2093
    %v2096 = vpack.c.bf16 %v2095, %v2094
    %v2097 = vlaneseq
    %v2098 = vshrl.u32 %v2097, 7
    %v2099 = vsub.s32 5, %v2098
    %v2100 = vrot.slane %v1217, %v2099
    %v2109 = vunpack.c.l.b16 %v1208
    %v2110 = vunpack.c.l.b16 %v1209
    %v2111 = vunpack.c.l.b16 %v1210
    %v2112 = vunpack.c.l.b16 %v1211
    %v2113 = vunpack.c.l.b16 %v1212
    %v2114 = vunpack.c.l.b16 %v1213
    %v2115 = vunpack.c.l.b16 %v1214
    %v2116 = vunpack.c.l.b16 %v1215
    %v2117 = vpack.c.b16 %v2110, %v2109
    %v2118 = vpack.c.b16 %v2112, %v2111
    %v2119 = vpack.c.b16 %v2114, %v2113
    %v2120 = vpack.c.b16 %v2116, %v2115
    %v2126 = vsel %vm1113, %v2096, 0
    %2128 = vmatprep.subr.bf16.mxu0 0
    %2129 = vmatpush1.bf16.msra.mxu0 %v2117
    %2130 = vmatprep.subr.bf16.mxu0 0
    %2131 = vmatpush1.bf16.msra.mxu0 %v2118
    %2132 = vmatprep.subr.bf16.mxu0 0
    %2133 = vmatpush1.bf16.msra.mxu0 %v2119
    %2134 = vmatprep.subr.bf16.mxu0 0
    %2135 = vmatpush1.bf16.msra.mxu0 %v2120
    %2136 = vmatprep.subr.bf16.mxu0 0
    %2137 = vmatpush1.bf16.msra.mxu0 0
    %2138 = vmatprep.subr.bf16.mxu0 0
    %2139 = vmatpush1.bf16.msra.mxu0 0
    %2140 = vmatprep.subr.bf16.mxu0 0
    %2141 = vmatpush1.bf16.msra.mxu0 0
    %2142 = vmatprep.subr.bf16.mxu0 0
    %2143 = vmatpush1.bf16.msra.mxu0 0
    %2144 = vmatprep.subr.bf16.mxu0 0
    %2145 = vmatpush1.bf16.msra.mxu0 0
    %2146 = vmatprep.subr.bf16.mxu0 0
    %2147 = vmatpush1.bf16.msra.mxu0 0
    %2148 = vmatprep.subr.bf16.mxu0 0
    %2149 = vmatpush1.bf16.msra.mxu0 0
    %2150 = vmatprep.subr.bf16.mxu0 0
    %2151 = vmatpush1.bf16.msra.mxu0 0
    %2152 = vmatprep.subr.bf16.mxu0 0
    %2153 = vmatpush1.bf16.msra.mxu0 0
    %2154 = vmatprep.subr.bf16.mxu0 0
    %2155 = vmatpush1.bf16.msra.mxu0 0
    %2156 = vmatprep.subr.bf16.mxu0 0
    %2157 = vmatpush1.bf16.msra.mxu0 0
    %2158 = vmatprep.subr.bf16.mxu0 0
    %2159 = vmatpush1.bf16.msra.mxu0 0
    %2160 = vmatprep.mubr.bf16.mxu0 0
    %2161 = vmatmul.mubr.bf16.gmra.mrb[0].mxu0 %v2126
    %v2162 = vpop.f32.mrb[0].mxu0
    %v2163 = vadd.f32 %v2100, %v2162
    %v2164 = vpop.f32.mrb[0].mxu0
    %v2165 = vpop.f32.mrb[0].mxu0
    %v2166 = vadd.f32 %v2100, %v2165
    %v2167 = vpop.f32.mrb[0].mxu0
    %2168 = vdwg.mxu0
    %v2169 = vadd.f32 %v2015, %v2163
    %v2170 = vadd.f32 %v2016, %v2166
    %v2171 = vsel %vm144, %v2169, 0.0
    %2172 = vadd.xlane.f32.xlu0 %v2171
    %v2173 = vpop.xlane.xlu0 %2172
    %v2174 = vsel %vm144, %v2170, 0.0
    %2175 = vadd.xlane.f32.xlu0 %v2174
    %v2176 = vpop.xlane.xlu0 %2175
    %v2177 = vmul.f32 %v2173, %v151
    %v2178 = vmul.f32 %v2176, %v151
    %v2179 = vsub.f32 %v2169, %v2177
    %v2180 = vsub.f32 %v2170, %v2178
    %v2181 = vmul.f32 %v2179, %v2179
    %v2182 = vmul.f32 %v2180, %v2180
    %v2183 = vsel %vm144, %v2181, 0.0
    %2184 = vadd.xlane.f32.xlu0 %v2183
    %v2185 = vpop.xlane.xlu0 %2184
    %v2186 = vsel %vm144, %v2182, 0.0
    %2187 = vadd.xlane.f32.xlu0 %v2186
    %v2188 = vpop.xlane.xlu0 %2187
    %v2189 = vmul.f32 %v2185, %v151
    %v2190 = vmul.f32 %v2188, %v151
    %v2191 = vadd.f32 %v2189, 1e-12
    %v2192 = vadd.f32 %v2190, 1e-12
    %v2193 = vrsqrt.pop %v2191
    %v2194 = vrsqrt.pop %v2192
    %v2195 = vmul.f32 %v2179, %v2193
    %v2196 = vmul.f32 %v2180, %v2194
    %v2197 = vlaneseq
    %v2198 = vshrl.u32 %v2197, 7
    %v2199 = vsub.s32 6, %v2198
    %v2200 = vrot.slane %v1217, %v2199
    %v2201 = vmul.f32 %v2195, %v2200
    %v2202 = vmul.f32 %v2196, %v2200
    %v2203 = vlaneseq
    %v2204 = vshrl.u32 %v2203, 7
    %v2205 = vsub.s32 7, %v2204
    %v2206 = vrot.slane %v1217, %v2205
    %v2207 = vadd.f32 %v2201, %v2206
    %v2208 = vadd.f32 %v2202, %v2206
    %v2209 = vld [vmem:[%s6] sm:$0xff]
    %v2210 = vld [vmem:[%s6 + $0x8] sm:$0xff]
    %v2211 = vld [vmem:[%s6 + $0x10] sm:$0xff]
    %v2212 = vld [vmem:[%s6 + $0x18] sm:$0xff]
    %v2213 = vlaneseq
    %v2214 = vshrl.u32 %v2213, 7
    %v2215 = vmul.u32 %v2214, 8
    %vm2216 = vcmp.eq.s32.totalorder %v34, %v2215
    %v2217 = vsel %vm2216, 1.0, 0.0
    %v2218 = vpack.c.bf16 %v2217, %v2217
    %v2219 = vpack.c.bf16 %v2208, %v2207
    %v2221 = vsel %vm319, %v2218, 0
    %2223 = vmatprep.subr.bf16.mxu0 0
    %2224 = vmatpush1.bf16.msra.mxu0 %v2219
    %2225 = vmatprep.subr.bf16.mxu0 0
    %2226 = vmatpush1.bf16.msra.mxu0 0
    %2227 = vmatprep.subr.bf16.mxu0 0
    %2228 = vmatpush1.bf16.msra.mxu0 0
    %2229 = vmatprep.subr.bf16.mxu0 0
    %2230 = vmatpush1.bf16.msra.mxu0 0
    %2231 = vmatprep.subr.bf16.mxu0 0
    %2232 = vmatpush1.bf16.msra.mxu0 0
    %2233 = vmatprep.subr.bf16.mxu0 0
    %2234 = vmatpush1.bf16.msra.mxu0 0
    %2235 = vmatprep.subr.bf16.mxu0 0
    %2236 = vmatpush1.bf16.msra.mxu0 0
    %2237 = vmatprep.subr.bf16.mxu0 0
    %2238 = vmatpush1.bf16.msra.mxu0 0
    %2239 = vmatprep.subr.bf16.mxu0 0
    %2240 = vmatpush1.bf16.msra.mxu0 0
    %2241 = vmatprep.subr.bf16.mxu0 0
    %2242 = vmatpush1.bf16.msra.mxu0 0
    %2243 = vmatprep.subr.bf16.mxu0 0
    %2244 = vmatpush1.bf16.msra.mxu0 0
    %2245 = vmatprep.subr.bf16.mxu0 0
    %2246 = vmatpush1.bf16.msra.mxu0 0
    %2247 = vmatprep.subr.bf16.mxu0 0
    %2248 = vmatpush1.bf16.msra.mxu0 0
    %2249 = vmatprep.subr.bf16.mxu0 0
    %2250 = vmatpush1.bf16.msra.mxu0 0
    %2251 = vmatprep.subr.bf16.mxu0 0
    %2252 = vmatpush1.bf16.msra.mxu0 0
    %2253 = vmatprep.subr.bf16.mxu0 0
    %2254 = vmatpush1.bf16.msra.mxu0 0
    %2255 = vmatprep.mubr.bf16.mxu0 0
    %2256 = vmatmul.mubr.bf16.gmra.mrb[0].mxu0 %v2221
    %v2257 = vpop.f32.mrb[0].mxu0
    %v2258 = vadd.f32 0.0, %v2257
    %v2259 = vpop.f32.mrb[0].mxu0
    %v2260 = vpop.f32.mrb[0].mxu0
    %v2261 = vpop.f32.mrb[0].mxu0
    %2262 = vdwg.mxu0
    %v2263 = vpack.c.bf16 %v2258, %v2258
    %v2264 = vlaneseq
    %v2265 = vshrl.u32 %v2264, 7
    %v2266 = vsub.s32 2, %v2265
    %v2267 = vrot.slane %v143, %v2266
    %v2272 = vunpack.c.l.b16 %v2209
    %v2273 = vunpack.c.l.b16 %v2210
    %v2274 = vunpack.c.l.b16 %v2211
    %v2275 = vunpack.c.l.b16 %v2212
    %v2276 = vpack.c.b16 %v2273, %v2272
    %v2277 = vpack.c.b16 %v2275, %v2274
    %v2281 = vsel %vm144, %v2263, 0
    %2283 = vmatprep.subr.bf16.mxu0 0
    %2284 = vmatpush1.bf16.msra.mxu0 %v2276
    %2285 = vmatprep.subr.bf16.mxu0 0
    %2286 = vmatpush1.bf16.msra.mxu0 %v2277
    %2287 = vmatprep.subr.bf16.mxu0 0
    %2288 = vmatpush1.bf16.msra.mxu0 0
    %2289 = vmatprep.subr.bf16.mxu0 0
    %2290 = vmatpush1.bf16.msra.mxu0 0
    %2291 = vmatprep.subr.bf16.mxu0 0
    %2292 = vmatpush1.bf16.msra.mxu0 0
    %2293 = vmatprep.subr.bf16.mxu0 0
    %2294 = vmatpush1.bf16.msra.mxu0 0
    %2295 = vmatprep.subr.bf16.mxu0 0
    %2296 = vmatpush1.bf16.msra.mxu0 0
    %2297 = vmatprep.subr.bf16.mxu0 0
    %2298 = vmatpush1.bf16.msra.mxu0 0
    %2299 = vmatprep.subr.bf16.mxu0 0
    %2300 = vmatpush1.bf16.msra.mxu0 0
    %2301 = vmatprep.subr.bf16.mxu0 0
    %2302 = vmatpush1.bf16.msra.mxu0 0
    %2303 = vmatprep.subr.bf16.mxu0 0
    %2304 = vmatpush1.bf16.msra.mxu0 0
    %2305 = vmatprep.subr.bf16.mxu0 0
    %2306 = vmatpush1.bf16.msra.mxu0 0
    %2307 = vmatprep.subr.bf16.mxu0 0
    %2308 = vmatpush1.bf16.msra.mxu0 0
    %2309 = vmatprep.subr.bf16.mxu0 0
    %2310 = vmatpush1.bf16.msra.mxu0 0
    %2311 = vmatprep.subr.bf16.mxu0 0
    %2312 = vmatpush1.bf16.msra.mxu0 0
    %2313 = vmatprep.subr.bf16.mxu0 0
    %2314 = vmatpush1.bf16.msra.mxu0 0
    %2315 = vmatprep.mubr.bf16.mxu0 0
    %2316 = vmatmul.mubr.bf16.gmra.mrb[0].mxu0 %v2281
    %v2317 = vpop.f32.mrb[0].mxu0
    %v2318 = vadd.f32 %v2267, %v2317
    %v2319 = vpop.f32.mrb[0].mxu0
    %v2320 = vpop.f32.mrb[0].mxu0
    %v2321 = vpop.f32.mrb[0].mxu0
    %2322 = vdwg.mxu0
    %v2323 = vtanh.pop %v2318
    %v2324 = vpack.c.bf16 %v2323, %v2323
    %v2325 = vlaneseq
    %v2326 = vshrl.u32 %v2325, 7
    %v2327 = vsub.s32 3, %v2326
    %v2328 = vrot.slane %v143, %v2327
    %v2329 = vunpack.c.h.b16 %v2209
    %v2330 = vunpack.c.h.b16 %v2210
    %v2331 = vunpack.c.h.b16 %v2211
    %v2332 = vunpack.c.h.b16 %v2212
    %v2333 = vpack.c.b16 %v2330, %v2329
    %v2334 = vpack.c.b16 %v2332, %v2331
    %v2338 = vsel %vm144, %v2324, 0
    %2340 = vmatprep.subr.bf16.mxu0 0
    %2341 = vmatpush1.bf16.msra.mxu0 %v2333
    %2342 = vmatprep.subr.bf16.mxu0 0
    %2343 = vmatpush1.bf16.msra.mxu0 %v2334
    %2344 = vmatprep.subr.bf16.mxu0 0
    %2345 = vmatpush1.bf16.msra.mxu0 0
    %2346 = vmatprep.subr.bf16.mxu0 0
    %2347 = vmatpush1.bf16.msra.mxu0 0
    %2348 = vmatprep.subr.bf16.mxu0 0
    %2349 = vmatpush1.bf16.msra.mxu0 0
    %2350 = vmatprep.subr.bf16.mxu0 0
    %2351 = vmatpush1.bf16.msra.mxu0 0
    %2352 = vmatprep.subr.bf16.mxu0 0
    %2353 = vmatpush1.bf16.msra.mxu0 0
    %2354 = vmatprep.subr.bf16.mxu0 0
    %2355 = vmatpush1.bf16.msra.mxu0 0
    %2356 = vmatprep.subr.bf16.mxu0 0
    %2357 = vmatpush1.bf16.msra.mxu0 0
    %2358 = vmatprep.subr.bf16.mxu0 0
    %2359 = vmatpush1.bf16.msra.mxu0 0
    %2360 = vmatprep.subr.bf16.mxu0 0
    %2361 = vmatpush1.bf16.msra.mxu0 0
    %2362 = vmatprep.subr.bf16.mxu0 0
    %2363 = vmatpush1.bf16.msra.mxu0 0
    %2364 = vmatprep.subr.bf16.mxu0 0
    %2365 = vmatpush1.bf16.msra.mxu0 0
    %2366 = vmatprep.subr.bf16.mxu0 0
    %2367 = vmatpush1.bf16.msra.mxu0 0
    %2368 = vmatprep.subr.bf16.mxu0 0
    %2369 = vmatpush1.bf16.msra.mxu0 0
    %2370 = vmatprep.subr.bf16.mxu0 0
    %2371 = vmatpush1.bf16.msra.mxu0 0
    %2372 = vmatprep.mubr.bf16.mxu0 0
    %2373 = vmatmul.mubr.bf16.gmra.mrb[0].mxu0 %v2338
    %v2374 = vpop.f32.mrb[0].mxu0
    %v2375 = vadd.f32 %v2328, %v2374
    %v2376 = vpop.f32.mrb[0].mxu0
    %v2377 = vpop.f32.mrb[0].mxu0
    %v2378 = vpop.f32.mrb[0].mxu0
    %2379 = vdwg.mxu0
    %vm2380 = vcmask 9216
    %2381 = vst.msk [vmem:[#allocation2] sm:$0x3] %vm2380, %v2375
    // Predicated region
    $region34: #{bert_forward.1} parent=1 // pred_check
      _
    $region35: #{bert_forward.1} parent=1 // pred_check_branch
      %2383 = sbr.rel (0) target = $region37
    $region36: #{bert_forward.1} parent=1 // pred_region
      %s2385 = ssub.s32 32, 32
      %2386 = vsyncadd [#allocation3], %s2385
      %s2388 = sshll.u32 [#allocation2], 4
      %s2389 = int_to_ptr.vmem [resolvable:$true] %s2388
      %2391 = dma.vmem_to_hbm [thread:$0]  %s2389, 32, %s8, [#allocation3]
    $region37: #{bert_forward.1} parent=1 // pred_fallthru
      _
    // Predicated region
    $region38: #{bert_forward.1} parent=1 // pred_check
      _
    $region39: #{bert_forward.1} parent=1 // pred_check_branch
      %2393 = sbr.rel (0) target = $region41
    $region40: #{bert_forward.1} parent=1 // pred_region
      %2394 = dma.done [#allocation3], 32
    $region41: #{bert_forward.1} parent=1 // pred_fallthru
      _
    %2395 = vsyncpa [#allocation3], 1

</llo_original>
